<compile_context>
chip_gen: v6e
topology: v6e:2x2x1
jax: 0.10.0
libtpu: 0.0.40
codegen_flags: <defaults>
</compile_context>

<pallas_src>
import functools

import jax
import jax.numpy as jnp
import numpy as np
from jax.experimental import pallas as pl
from jax.experimental.pallas import tpu as pltpu


def _dgrec_kernel(flag_ref, mail_ref, src_norm_ref, sims_ref, dst_norm_ref,
                  out_ref, w_ref, *, k):
    # Per grid step:
    #   mail_ref     : [TB, N, D]
    #   src_norm_ref : [TB, N]
    #   sims_ref     : [N, N, TB]   (candidate i, covered j, batch-on-lanes)
    #   dst_norm_ref : [TB, 1]
    #   out_ref      : [TB, D]
    #   w_ref        : [TB, N] f32 scratch -> per-neighbor aggregation weight
    src_norm = src_norm_ref[...].astype(jnp.float32)            # [TB, N]

    use_selection = flag_ref[0] == 0

    @pl.when(use_selection)
    def _selection_path():
        sims = sims_ref[...].astype(jnp.float32)                # [N, N, TB]
        n_i, n_j, tb = sims.shape
        iota_i = jax.lax.broadcasted_iota(jnp.int32, (n_i, tb), 0)
        cache = jnp.zeros((n_j, tb), jnp.float32)               # covered value per j, per lane-batch
        counts = jnp.zeros((n_i, tb), jnp.float32)              # selection multiplicity per candidate

        for _ in range(k):  # k is a small static constant -> fully unrolled
            covered = jnp.maximum(sims, cache[None, :, :])       # [N, N, TB]
            gain = jnp.sum(covered - cache[None, :, :], axis=1)  # [N, TB]
            # argmax over candidates (first max index, matching torch.argmax)
            mx = jnp.max(gain, axis=0, keepdims=True)            # [1, TB]
            cand = jnp.where(gain >= mx, iota_i, n_i)
            selected = jnp.min(cand, axis=0, keepdims=True)      # [1, TB]
            one_hot = (iota_i == selected).astype(jnp.float32)   # [N, TB]
            sel_rows = jnp.sum(one_hot[:, None, :] * sims, axis=0)   # [N_j, TB]
            cache = jnp.maximum(cache, sel_rows)
            counts = counts + one_hot

        # weights = multiplicity * out-degree norm, laid out [TB, N] for aggregation
        w_ref[...] = jnp.transpose(counts, (1, 0)) * src_norm

    @pl.when(flag_ref[0] != 0)
    def _sum_all_path():
        w_ref[...] = src_norm

    mail = mail_ref[...].astype(jnp.float32)                     # [TB, N, D]
    dst_norm = dst_norm_ref[...].astype(jnp.float32)             # [TB, 1]
    agg = jnp.sum(w_ref[...][:, :, None] * mail, axis=1)         # [TB, D]
    out_ref[...] = (agg * dst_norm).astype(out_ref.dtype)


def dgrec_forward(mail, src_norm, sims, dst_norm, flag, *, k, tb=128):
    B, N, D = mail.shape
    assert B % tb == 0, "batch must be a multiple of the batch tile"
    # Batch-on-lanes layout for the greedy selection math (wrapper-side glue).
    sims_t = jnp.transpose(sims, (1, 2, 0))                      # [N, N, B]
    grid = (B // tb,)
    kernel = functools.partial(_dgrec_kernel, k=k)
    return pl.pallas_call(
        kernel,
        out_shape=jax.ShapeDtypeStruct((B, D), mail.dtype),
        grid_spec=pltpu.PrefetchScalarGridSpec(
            num_scalar_prefetch=1,
            grid=grid,
            in_specs=[
                pl.BlockSpec((tb, N, D), lambda i, flag: (i, 0, 0)),
                pl.BlockSpec((tb, N), lambda i, flag: (i, 0)),
                pl.BlockSpec((N, N, tb), lambda i, flag: (0, 0, i)),
                pl.BlockSpec((tb, 1), lambda i, flag: (i, 0)),
            ],
            out_specs=pl.BlockSpec((tb, D), lambda i, flag: (i, 0)),
            scratch_shapes=[pltpu.VMEM((tb, N), jnp.float32)],
        ),
        compiler_params=pltpu.CompilerParams(
            dimension_semantics=("parallel",)),
    )(flag, mail, src_norm, sims_t, dst_norm)


def reference_forward(mail, src_norm, sims, dst_norm, flag, k):
    """Pure numpy replica of DGRecLayer semantics on the dense formulation."""
    mail = np.asarray(mail) * np.asarray(src_norm)[:, :, None]
    sims = np.asarray(sims)
    B, N, D = mail.shape
    if flag:
        agg = mail.sum(axis=1)
    else:
        cache = np.zeros((B, 1, N), np.float32)
        picks = []
        for _ in range(k):
            gain = np.sum(np.maximum(sims, cache) - cache, axis=-1)
            selected = np.argmax(gain, axis=1)
            cache = np.maximum(sims[np.arange(B), selected][:, None, :], cache)
            picks.append(selected)
        picks = np.stack(picks).T                                   # [B, k]
        agg = mail[np.arange(B)[:, None], picks].sum(axis=1)        # [B, D]
    return agg * np.asarray(dst_norm)


if __name__ == "__main__":
    key = jax.random.PRNGKey(0)
    k_sel = 3          # args.k
    num_items = 64     # number of src (item) nodes
    B = 1024           # number of dst nodes  (grid of 8 batch tiles)
    N = 8              # neighbors (in-degree) per dst node
    D = 128            # feature dim (lane-dense output)
    TB = 128           # batch tile (lanes fully utilized in the greedy loop)

    k1, k2, k3, k4 = jax.random.split(key, 4)

    # Synthetic jaccard distance matrix -> similarity matrix (replaces .npy load).
    # Quantized to multiples of 1/256 so that the greedy gain sums are exact in
    # f32 and the kernel / numpy argmax decisions are bitwise identical.
    dist = jax.random.uniform(k1, (num_items, num_items), jnp.float32)
    dist = jnp.round(dist * 256.0) / 256.0
    dist = 0.5 * (dist + dist.T)
    dist = dist.at[jnp.arange(num_items), jnp.arange(num_items)].set(0.0)
    items_items_sims = 1.0 - dist                                   # [I, I]

    feat_src = jax.random.normal(k2, (num_items, D), jnp.float32)   # h[src]
    neighbor_idx = jax.random.randint(k3, (B, N), 0, num_items)     # src ids per dst
    categories = jax.random.randint(k4, (num_items,), 0, 5)         # no -1 -> selection path

    # --- glue: graph normalizations, mailbox gather, per-row similarity matrix ---
    out_deg = jnp.clip(
        jnp.zeros((num_items,), jnp.float32).at[neighbor_idx.reshape(-1)].add(1.0),
        1.0, None)
    norm_src = out_deg ** -0.5                                      # [I]
    src_norm = norm_src[neighbor_idx]                               # [B, N]

    in_deg = jnp.full((B,), float(N), jnp.float32)
    dst_norm = (jnp.clip(in_deg, 1.0, None) ** -0.5)[:, None]       # [B, 1]

    mail = feat_src[neighbor_idx]                                   # [B, N, D]
    sims = items_items_sims[neighbor_idx[:, :, None],
                            neighbor_idx[:, None, :]]               # [B, N, N]

    c_mail = categories[neighbor_idx]
    flag_val = jnp.logical_or(N <= k_sel, jnp.any(c_mail == -1)).astype(jnp.int32)
    flag = jnp.reshape(flag_val, (1,))

    out = dgrec_forward(mail, src_norm, sims, dst_norm, flag, k=k_sel, tb=TB)
    out = jax.block_until_ready(out)

    ref = reference_forward(mail, src_norm, sims, dst_norm, bool(flag_val), k_sel)
    assert out.shape == (B, D)
    np.testing.assert_allclose(np.asarray(out), ref, rtol=1e-5, atol=1e-5)

    print("KERNEL_OK")
</pallas_src>

<mosaic_0001>
module attributes {stable_mosaic.version = 11 : i64} {
  func.func @_dgrec_kernel(%arg0: i32, %arg1: memref<1xi32, #tpu.memory_space<smem>>, %arg2: memref<128x8x128xf32, #tpu.memory_space<vmem>>, %arg3: memref<128x8xf32, #tpu.memory_space<vmem>>, %arg4: memref<8x8x128xf32, #tpu.memory_space<vmem>>, %arg5: memref<128x1xf32, #tpu.memory_space<vmem>>, %arg6: memref<128x128xf32, #tpu.memory_space<vmem>>, %arg7: memref<128x8xf32, #tpu.memory_space<vmem>>) attributes {dimension_semantics = [#tpu.dimension_semantics<parallel>], iteration_bounds = array<i64: 8>, scalar_prefetch = 1 : i64, scratch_operands = 1 : i64, tpu.core_type = #tpu.core_type<tc>, window_params = [{transform_indices = @transform_0, window_bounds = array<i64: 128, 8, 128>}, {transform_indices = @transform_1, window_bounds = array<i64: 128, 8>}, {transform_indices = @transform_2, window_bounds = array<i64: 8, 8, 128>}, {transform_indices = @transform_3, window_bounds = array<i64: 128, 1>}, {transform_indices = @transform_4, window_bounds = array<i64: 128, 128>}]} {
    %c0 = arith.constant 0 : index
    %c0_0 = arith.constant 0 : index
    %0 = vector.load %arg3[%c0, %c0_0] : memref<128x8xf32, #tpu.memory_space<vmem>>, vector<128x8xf32>
    %c0_1 = arith.constant 0 : index
    %1 = memref.load %arg1[%c0_1] : memref<1xi32, #tpu.memory_space<smem>>
    %c0_i32 = arith.constant 0 : i32
    %2 = arith.cmpi eq, %1, %c0_i32 : i32
    %3 = arith.extui %2 : i1 to i32
    %c0_i32_2 = arith.constant 0 : i32
    %4 = arith.cmpi ne, %3, %c0_i32_2 : i32
    scf.if %4 {
      %c0_15 = arith.constant 0 : index
      %c0_16 = arith.constant 0 : index
      %c0_17 = arith.constant 0 : index
      %19 = vector.load %arg4[%c0_15, %c0_16, %c0_17] : memref<8x8x128xf32, #tpu.memory_space<vmem>>, vector<8x8x128xf32>
      %20 = tpu.iota {dimensions = array<i32: 0>} : vector<8x128xi32>
      %cst_18 = arith.constant 0.000000e+00 : f32
      %21 = vector.broadcast %cst_18 : f32 to vector<8x128xf32>
      %cst_19 = arith.constant 0.000000e+00 : f32
      %22 = vector.broadcast %cst_19 : f32 to vector<8x128xf32>
      %23 = vector.shape_cast %21 : vector<8x128xf32> to vector<1x8x128xf32>
      %24 = vector.broadcast %23 : vector<1x8x128xf32> to vector<8x8x128xf32>
      %25 = arith.maximumf %19, %24 : vector<8x8x128xf32>
      %26 = vector.shape_cast %21 : vector<8x128xf32> to vector<1x8x128xf32>
      %27 = vector.broadcast %26 : vector<1x8x128xf32> to vector<8x8x128xf32>
      %28 = arith.subf %25, %27 : vector<8x8x128xf32>
      %cst_20 = arith.constant dense<0.000000e+00> : vector<8x128xf32>
      %29 = vector.multi_reduction <add>, %28, %cst_20 [1] : vector<8x8x128xf32> to vector<8x128xf32>
      %cst_21 = arith.constant dense<0xFF800000> : vector<128xf32>
      %30 = vector.multi_reduction <maximumf>, %29, %cst_21 [0] : vector<8x128xf32> to vector<128xf32>
      %31 = vector.shape_cast %30 : vector<128xf32> to vector<1x128xf32>
      %32 = vector.broadcast %31 : vector<1x128xf32> to vector<8x128xf32>
      %33 = arith.cmpf oge, %29, %32 : vector<8x128xf32>
      %c8_i32 = arith.constant 8 : i32
      %34 = vector.broadcast %c8_i32 : i32 to vector<8x128xi32>
      %35 = arith.select %33, %20, %34 : vector<8x128xi1>, vector<8x128xi32>
      %cst_22 = arith.constant dense<2147483647> : vector<128xi32>
      %36 = vector.multi_reduction <minsi>, %35, %cst_22 [0] : vector<8x128xi32> to vector<128xi32>
      %37 = vector.shape_cast %36 : vector<128xi32> to vector<1x128xi32>
      %38 = vector.broadcast %37 : vector<1x128xi32> to vector<8x128xi32>
      %39 = arith.cmpi eq, %20, %38 : vector<8x128xi32>
      %40 = arith.extui %39 : vector<8x128xi1> to vector<8x128xi32>
      %41 = arith.sitofp %40 : vector<8x128xi32> to vector<8x128xf32>
      %42 = vector.shape_cast %41 : vector<8x128xf32> to vector<8x1x128xf32>
      %43 = vector.broadcast %42 : vector<8x1x128xf32> to vector<8x8x128xf32>
      %44 = arith.mulf %43, %19 : vector<8x8x128xf32>
      %cst_23 = arith.constant dense<0.000000e+00> : vector<8x128xf32>
      %45 = vector.multi_reduction <add>, %44, %cst_23 [0] : vector<8x8x128xf32> to vector<8x128xf32>
      %46 = arith.maximumf %21, %45 : vector<8x128xf32>
      %47 = arith.addf %22, %41 : vector<8x128xf32>
      %48 = vector.shape_cast %46 : vector<8x128xf32> to vector<1x8x128xf32>
      %49 = vector.broadcast %48 : vector<1x8x128xf32> to vector<8x8x128xf32>
      %50 = arith.maximumf %19, %49 : vector<8x8x128xf32>
      %51 = vector.shape_cast %46 : vector<8x128xf32> to vector<1x8x128xf32>
      %52 = vector.broadcast %51 : vector<1x8x128xf32> to vector<8x8x128xf32>
      %53 = arith.subf %50, %52 : vector<8x8x128xf32>
      %cst_24 = arith.constant dense<0.000000e+00> : vector<8x128xf32>
      %54 = vector.multi_reduction <add>, %53, %cst_24 [1] : vector<8x8x128xf32> to vector<8x128xf32>
      %cst_25 = arith.constant dense<0xFF800000> : vector<128xf32>
      %55 = vector.multi_reduction <maximumf>, %54, %cst_25 [0] : vector<8x128xf32> to vector<128xf32>
      %56 = vector.shape_cast %55 : vector<128xf32> to vector<1x128xf32>
      %57 = vector.broadcast %56 : vector<1x128xf32> to vector<8x128xf32>
      %58 = arith.cmpf oge, %54, %57 : vector<8x128xf32>
      %c8_i32_26 = arith.constant 8 : i32
      %59 = vector.broadcast %c8_i32_26 : i32 to vector<8x128xi32>
      %60 = arith.select %58, %20, %59 : vector<8x128xi1>, vector<8x128xi32>
      %cst_27 = arith.constant dense<2147483647> : vector<128xi32>
      %61 = vector.multi_reduction <minsi>, %60, %cst_27 [0] : vector<8x128xi32> to vector<128xi32>
      %62 = vector.shape_cast %61 : vector<128xi32> to vector<1x128xi32>
      %63 = vector.broadcast %62 : vector<1x128xi32> to vector<8x128xi32>
      %64 = arith.cmpi eq, %20, %63 : vector<8x128xi32>
      %65 = arith.extui %64 : vector<8x128xi1> to vector<8x128xi32>
      %66 = arith.sitofp %65 : vector<8x128xi32> to vector<8x128xf32>
      %67 = vector.shape_cast %66 : vector<8x128xf32> to vector<8x1x128xf32>
      %68 = vector.broadcast %67 : vector<8x1x128xf32> to vector<8x8x128xf32>
      %69 = arith.mulf %68, %19 : vector<8x8x128xf32>
      %cst_28 = arith.constant dense<0.000000e+00> : vector<8x128xf32>
      %70 = vector.multi_reduction <add>, %69, %cst_28 [0] : vector<8x8x128xf32> to vector<8x128xf32>
      %71 = arith.maximumf %46, %70 : vector<8x128xf32>
      %72 = arith.addf %47, %66 : vector<8x128xf32>
      %73 = vector.shape_cast %71 : vector<8x128xf32> to vector<1x8x128xf32>
      %74 = vector.broadcast %73 : vector<1x8x128xf32> to vector<8x8x128xf32>
      %75 = arith.maximumf %19, %74 : vector<8x8x128xf32>
      %76 = vector.shape_cast %71 : vector<8x128xf32> to vector<1x8x128xf32>
      %77 = vector.broadcast %76 : vector<1x8x128xf32> to vector<8x8x128xf32>
      %78 = arith.subf %75, %77 : vector<8x8x128xf32>
      %cst_29 = arith.constant dense<0.000000e+00> : vector<8x128xf32>
      %79 = vector.multi_reduction <add>, %78, %cst_29 [1] : vector<8x8x128xf32> to vector<8x128xf32>
      %cst_30 = arith.constant dense<0xFF800000> : vector<128xf32>
      %80 = vector.multi_reduction <maximumf>, %79, %cst_30 [0] : vector<8x128xf32> to vector<128xf32>
      %81 = vector.shape_cast %80 : vector<128xf32> to vector<1x128xf32>
      %82 = vector.broadcast %81 : vector<1x128xf32> to vector<8x128xf32>
      %83 = arith.cmpf oge, %79, %82 : vector<8x128xf32>
      %c8_i32_31 = arith.constant 8 : i32
      %84 = vector.broadcast %c8_i32_31 : i32 to vector<8x128xi32>
      %85 = arith.select %83, %20, %84 : vector<8x128xi1>, vector<8x128xi32>
      %cst_32 = arith.constant dense<2147483647> : vector<128xi32>
      %86 = vector.multi_reduction <minsi>, %85, %cst_32 [0] : vector<8x128xi32> to vector<128xi32>
      %87 = vector.shape_cast %86 : vector<128xi32> to vector<1x128xi32>
      %88 = vector.broadcast %87 : vector<1x128xi32> to vector<8x128xi32>
      %89 = arith.cmpi eq, %20, %88 : vector<8x128xi32>
      %90 = arith.extui %89 : vector<8x128xi1> to vector<8x128xi32>
      %91 = arith.sitofp %90 : vector<8x128xi32> to vector<8x128xf32>
      %92 = arith.addf %72, %91 : vector<8x128xf32>
      %93 = tpu.transpose %92, [1, 0] : vector<8x128xf32> -> vector<128x8xf32>
      %94 = arith.mulf %93, %0 : vector<128x8xf32>
      %c0_33 = arith.constant 0 : index
      %c0_34 = arith.constant 0 : index
      %95 = vector.load %arg7[%c0_33, %c0_34] : memref<128x8xf32, #tpu.memory_space<vmem>>, vector<128x8xf32>
      tpu.vector_store %arg7[%c0_33, %c0_34], %94 {strides = array<i32>} : memref<128x8xf32, #tpu.memory_space<vmem>>, vector<128x8xf32>,
    } else {
    }
    %c0_3 = arith.constant 0 : index
    %5 = memref.load %arg1[%c0_3] : memref<1xi32, #tpu.memory_space<smem>>
    %c0_i32_4 = arith.constant 0 : i32
    %6 = arith.cmpi ne, %5, %c0_i32_4 : i32
    %7 = arith.extui %6 : i1 to i32
    %c0_i32_5 = arith.constant 0 : i32
    %8 = arith.cmpi ne, %7, %c0_i32_5 : i32
    scf.if %8 {
      %c0_15 = arith.constant 0 : index
      %c0_16 = arith.constant 0 : index
      %19 = vector.load %arg7[%c0_15, %c0_16] : memref<128x8xf32, #tpu.memory_space<vmem>>, vector<128x8xf32>
      tpu.vector_store %arg7[%c0_15, %c0_16], %0 {strides = array<i32>} : memref<128x8xf32, #tpu.memory_space<vmem>>, vector<128x8xf32>,
    } else {
    }
    %c0_6 = arith.constant 0 : index
    %c0_7 = arith.constant 0 : index
    %c0_8 = arith.constant 0 : index
    %9 = vector.load %arg2[%c0_6, %c0_7, %c0_8] : memref<128x8x128xf32, #tpu.memory_space<vmem>>, vector<128x8x128xf32>
    %c0_9 = arith.constant 0 : index
    %c0_10 = arith.constant 0 : index
    %10 = vector.load %arg5[%c0_9, %c0_10] : memref<128x1xf32, #tpu.memory_space<vmem>>, vector<128x1xf32>
    %c0_11 = arith.constant 0 : index
    %c0_12 = arith.constant 0 : index
    %11 = vector.load %arg7[%c0_11, %c0_12] : memref<128x8xf32, #tpu.memory_space<vmem>>, vector<128x8xf32>
    %12 = vector.shape_cast %11 : vector<128x8xf32> to vector<128x8x1xf32>
    %13 = vector.broadcast %12 : vector<128x8x1xf32> to vector<128x8x128xf32>
    %14 = arith.mulf %13, %9 : vector<128x8x128xf32>
    %cst = arith.constant dense<0.000000e+00> : vector<128x128xf32>
    %15 = vector.multi_reduction <add>, %14, %cst [1] : vector<128x8x128xf32> to vector<128x128xf32>
    %16 = vector.broadcast %10 : vector<128x1xf32> to vector<128x128xf32>
    %17 = arith.mulf %15, %16 : vector<128x128xf32>
    %c0_13 = arith.constant 0 : index
    %c0_14 = arith.constant 0 : index
    %18 = vector.load %arg6[%c0_13, %c0_14] : memref<128x128xf32, #tpu.memory_space<vmem>>, vector<128x128xf32>
    tpu.vector_store %arg6[%c0_13, %c0_14], %17 {strides = array<i32>} : memref<128x128xf32, #tpu.memory_space<vmem>>, vector<128x128xf32>,
    return
  }
  func.func @transform_0(%arg0: i32, %arg1: memref<1xi32, #tpu.memory_space<smem>>) -> (i32, i32, i32) {
    %c0_i32 = arith.constant 0 : i32
    %c0_i32_0 = arith.constant 0 : i32
    %c0_i32_1 = arith.constant 0 : i32
    return %arg0, %c0_i32, %c0_i32_0 : i32, i32, i32
  }
  func.func @transform_1(%arg0: i32, %arg1: memref<1xi32, #tpu.memory_space<smem>>) -> (i32, i32) {
    %c0_i32 = arith.constant 0 : i32
    %c0_i32_0 = arith.constant 0 : i32
    return %arg0, %c0_i32 : i32, i32
  }
  func.func @transform_2(%arg0: i32, %arg1: memref<1xi32, #tpu.memory_space<smem>>) -> (i32, i32, i32) {
    %c0_i32 = arith.constant 0 : i32
    %c0_i32_0 = arith.constant 0 : i32
    %c0_i32_1 = arith.constant 0 : i32
    return %c0_i32, %c0_i32_0, %arg0 : i32, i32, i32
  }
  func.func @transform_3(%arg0: i32, %arg1: memref<1xi32, #tpu.memory_space<smem>>) -> (i32, i32) {
    %c0_i32 = arith.constant 0 : i32
    %c0_i32_0 = arith.constant 0 : i32
    return %arg0, %c0_i32 : i32, i32
  }
  func.func @transform_4(%arg0: i32, %arg1: memref<1xi32, #tpu.memory_space<smem>>) -> (i32, i32) {
    %c0_i32 = arith.constant 0 : i32
    %c0_i32_0 = arith.constant 0 : i32
    return %arg0, %c0_i32 : i32, i32
  }
}

</mosaic_0001>

<llo_original>
// kernel: tpu_custom_call.1
$region0: #{tpu_custom_call.1}
  #allocation0 [shape = 'u32[]', space=smem, size = 0x4, offset = 0x4, fixed_abs, tag = 'smem constant byte address 0x4 - core index']
  #allocation1 [shape = 'u32[144,128]{1,0:T(1,128)}', space=vmem, size = 0x12000, scoped, tag = 'internal scratch']
  #allocation2 [shape = 'f32[128,8]{1,0:T(8,128)}', space=vmem, size = 0x10000, scoped, tag = 'scratch operand']
  #allocation3 [shape = 's32[1]{0}', space=sflag, size = 0x4, scoped, tag = 'scoped memory for tpu_custom_call.1']
  #allocation4 [shape = 's32[1]{0:T(128)S(6)}', space=smem, size = 0x200, scoped, tag = 'prefetched SMEM operand 0']
  %s0 = inlined_call_operand.<no memory space> [shape: s32[1], index: 0, kind: input, shape index: {}]
  %s1 = inlined_call_operand.hbm [shape: f32[1024,8,128], index: 1, kind: input, shape index: {}]
  %s2 = inlined_call_operand.vmem [shape: f32[1024,8], index: 2, kind: input, shape index: {}]
  %s3 = inlined_call_operand.hbm [shape: f32[8,8,1024], index: 3, kind: input, shape index: {}]
  %s4 = inlined_call_operand.vmem [shape: f32[1024,1], index: 4, kind: input, shape index: {}]
  %s5 = inlined_call_operand.hbm [shape: f32[1024,128], index: 5, kind: output, shape index: {}]
  %s6 = sld [smem:[#allocation0]]
  $region65: #{tpu_custom_call.1} parent=0
    _
  %s8 = ssub.s32 1, %s6
  %s9 = scalar_select 0, %s8, %s6
  %10 = sst [smem:[#allocation4]] %s0
  $region1: #{tpu_custom_call.1} parent=0
    #allocation5 [shape = 'u8[1048576]{0}', space=vmem, size = 0x100000, scoped, tag = 'input window, operand 1']
    #allocation6 [shape = 's32[2]{0}', space=sflag, size = 0x8, scoped, tag = 'scoped memory for tpu_custom_call.1']
    #allocation7 [shape = 's32[2]{0}', space=sflag, size = 0x8, scoped, tag = 'scoped memory for tpu_custom_call.1']
    #allocation8 [shape = 'u8[65536]{0}', space=vmem, size = 0x10000, scoped, tag = 'input window, operand 3']
    #allocation9 [shape = 's32[2]{0}', space=sflag, size = 0x8, scoped, tag = 'scoped memory for tpu_custom_call.1']
    #allocation10 [shape = 'u8[131072]{0}', space=vmem, size = 0x20000, scoped, tag = 'output window, operand 0']
    %11 = vsyncpa [#allocation6], 0
    %s12 = scalar_lea.sflag [#allocation6], 1
    %13 = vsyncpa %s12, 0
    %14 = vsyncpa [#allocation9], 0
    %s15 = scalar_lea.sflag [#allocation9], 1
    %16 = vsyncpa %s15, 0
    %17 = vsyncpa [#allocation7], 0
    %s18 = scalar_lea.sflag [#allocation7], 1
    %19 = vsyncpa %s18, 0
    loop: start=0, step=1, limit=10
    $region2: #{tpu_custom_call.1} parent=1 // loop_pre_header
      _
    $region3: #{tpu_custom_call.1} parent=1 // loop_header
      %s21 = sphi 0, %s25
      %p22 = scmp.ge.s32.totalorder %s21, 10
      %s31 = sphi 0, %s33
      %s34 = sphi 0, %s31
      %s35 = sphi 0, %s34
      %s51 = sphi 0, %s35
      %s57 = sphi 0, %s59
      %s60 = sphi 0, %s57
      %s61 = sphi 0, %s60
      %s77 = sphi 0, %s61
      %s83 = sphi 0, %s85
      %s86 = sphi 0, %s83
      %s87 = sphi 0, %s86
      %s103 = sphi 0, %s87
      %s109 = sphi 0, %s111
      %s112 = sphi 0, %s109
      %s113 = sphi 0, %s112
      %s129 = sphi 0, %s113
      %s135 = sphi 0, %s137
      %s138 = sphi 0, %s135
      %s139 = sphi 0, %s138
      %s155 = sphi 0, %s139
    $region4: #{tpu_custom_call.1} parent=1 // loop_header_branch
      %24 = sbr.rel (%p22) target = $region8
    $region5: #{tpu_custom_call.1} parent=1 // loop_body
      %s26 = ssub.s32 %s21, 1
      %s27 = ssub.s32 %s21, 2
      %s28 = sadd.s32 %s21, 1
      %s29 = ssub.s32 %s21, %s28
      %p30 = scmp.eq.s32.totalorder %s29, 0
      %s32 = sadd.s32 %s31, 1
      %s33 = scalar_select %p30, %s31, %s32
      %p36 = pneg %p30
      %p37 = scmp.eq.s32.totalorder %s21, 7
      %p38 = por %p36, %p37
      %p39 = scmp.ne.s32.totalorder %s31, %s34
      %p40 = scmp.eq.s32.totalorder %s21, 0
      %p41 = por %p39, %p40
      %p42 = scmp.ne.s32.totalorder %s31, %s34
      %p43 = scmp.eq.s32.totalorder %s26, 7
      %p44 = por %p42, %p43
      %p45 = scmp.ne.s32.totalorder %s34, %s35
      %p46 = scmp.eq.s32.totalorder %s26, 0
      %p47 = por %p45, %p46
      %p48 = scmp.ne.s32.totalorder %s34, %s35
      %p49 = scmp.eq.s32.totalorder %s27, 7
      %p50 = por %p48, %p49
      %p52 = scmp.ne.s32.totalorder %s35, %s51
      %p53 = scmp.eq.s32.totalorder %s27, 0
      %p54 = por %p52, %p53
      %s55 = ssub.s32 %s21, %s28
      %p56 = scmp.eq.s32.totalorder %s55, 0
      %s58 = sadd.s32 %s57, 1
      %s59 = scalar_select %p56, %s57, %s58
      %p62 = pneg %p56
      %p63 = scmp.eq.s32.totalorder %s21, 7
      %p64 = por %p62, %p63
      %p65 = scmp.ne.s32.totalorder %s57, %s60
      %p66 = scmp.eq.s32.totalorder %s21, 0
      %p67 = por %p65, %p66
      %p68 = scmp.ne.s32.totalorder %s57, %s60
      %p69 = scmp.eq.s32.totalorder %s26, 7
      %p70 = por %p68, %p69
      %p71 = scmp.ne.s32.totalorder %s60, %s61
      %p72 = scmp.eq.s32.totalorder %s26, 0
      %p73 = por %p71, %p72
      %p74 = scmp.ne.s32.totalorder %s60, %s61
      %p75 = scmp.eq.s32.totalorder %s27, 7
      %p76 = por %p74, %p75
      %p78 = scmp.ne.s32.totalorder %s61, %s77
      %p79 = scmp.eq.s32.totalorder %s27, 0
      %p80 = por %p78, %p79
      %s81 = ssub.s32 %s21, %s28
      %p82 = scmp.eq.s32.totalorder %s81, 0
      %s84 = sadd.s32 %s83, 1
      %s85 = scalar_select %p82, %s83, %s84
      %p88 = pneg %p82
      %p89 = scmp.eq.s32.totalorder %s21, 7
      %p90 = por %p88, %p89
      %p91 = scmp.ne.s32.totalorder %s83, %s86
      %p92 = scmp.eq.s32.totalorder %s21, 0
      %p93 = por %p91, %p92
      %p94 = scmp.ne.s32.totalorder %s83, %s86
      %p95 = scmp.eq.s32.totalorder %s26, 7
      %p96 = por %p94, %p95
      %p97 = scmp.ne.s32.totalorder %s86, %s87
      %p98 = scmp.eq.s32.totalorder %s26, 0
      %p99 = por %p97, %p98
      %p100 = scmp.ne.s32.totalorder %s86, %s87
      %p101 = scmp.eq.s32.totalorder %s27, 7
      %p102 = por %p100, %p101
      %p104 = scmp.ne.s32.totalorder %s87, %s103
      %p105 = scmp.eq.s32.totalorder %s27, 0
      %p106 = por %p104, %p105
      %s107 = ssub.s32 %s21, %s28
      %p108 = scmp.eq.s32.totalorder %s107, 0
      %s110 = sadd.s32 %s109, 1
      %s111 = scalar_select %p108, %s109, %s110
      %p114 = pneg %p108
      %p115 = scmp.eq.s32.totalorder %s21, 7
      %p116 = por %p114, %p115
      %p117 = scmp.ne.s32.totalorder %s109, %s112
      %p118 = scmp.eq.s32.totalorder %s21, 0
      %p119 = por %p117, %p118
      %p120 = scmp.ne.s32.totalorder %s109, %s112
      %p121 = scmp.eq.s32.totalorder %s26, 7
      %p122 = por %p120, %p121
      %p123 = scmp.ne.s32.totalorder %s112, %s113
      %p124 = scmp.eq.s32.totalorder %s26, 0
      %p125 = por %p123, %p124
      %p126 = scmp.ne.s32.totalorder %s112, %s113
      %p127 = scmp.eq.s32.totalorder %s27, 7
      %p128 = por %p126, %p127
      %p130 = scmp.ne.s32.totalorder %s113, %s129
      %p131 = scmp.eq.s32.totalorder %s27, 0
      %p132 = por %p130, %p131
      %s133 = ssub.s32 %s21, %s28
      %p134 = scmp.eq.s32.totalorder %s133, 0
      %s136 = sadd.s32 %s135, 1
      %s137 = scalar_select %p134, %s135, %s136
      %p140 = pneg %p134
      %p141 = scmp.eq.s32.totalorder %s21, 7
      %p142 = por %p140, %p141
      %p143 = scmp.ne.s32.totalorder %s135, %s138
      %p144 = scmp.eq.s32.totalorder %s21, 0
      %p145 = por %p143, %p144
      %p146 = scmp.ne.s32.totalorder %s135, %s138
      %p147 = scmp.eq.s32.totalorder %s26, 7
      %p148 = por %p146, %p147
      %p149 = scmp.ne.s32.totalorder %s138, %s139
      %p150 = scmp.eq.s32.totalorder %s26, 0
      %p151 = por %p149, %p150
      %p152 = scmp.ne.s32.totalorder %s138, %s139
      %p153 = scmp.eq.s32.totalorder %s27, 7
      %p154 = por %p152, %p153
      %p156 = scmp.ne.s32.totalorder %s139, %s155
      %p157 = scmp.eq.s32.totalorder %s27, 0
      %p158 = por %p156, %p157
      %p159 = scmp.le.s32.totalorder 1, %s21
      %p160 = scmp.lt.s32.totalorder %s21, 9
      %p161 = pnand %p159, %p160
      %p162 = pneg %p161
      // Predicated region
      $region9: #{tpu_custom_call.1} parent=5 // pred_check
        _
      $region10: #{tpu_custom_call.1} parent=5 // pred_check_branch
        %164 = sbr.rel (%p161) target = $region12
      $region11: #{tpu_custom_call.1} parent=5 // pred_region
        %s165 = ssub.s32 %s21, 1
      $region12: #{tpu_custom_call.1} parent=5 // pred_fallthru
        _
      %p166 = scmp.lt.s32.totalorder %s21, 8
      // Predicated region
      $region13: #{tpu_custom_call.1} parent=5 // pred_check
        %p167 = pneg %p166
      $region14: #{tpu_custom_call.1} parent=5 // pred_check_branch
        %169 = sbr.rel (%p167) target = $region16
      $region15: #{tpu_custom_call.1} parent=5 // pred_region
        // Predicated region
        $region17: #{tpu_custom_call.1} parent=15 // pred_check
          %p170 = pneg %p41
        $region18: #{tpu_custom_call.1} parent=15 // pred_check_branch
          %172 = sbr.rel (%p170) target = $region20
        $region19: #{tpu_custom_call.1} parent=15 // pred_region
          %s173 = sand.u32 %s31, 1
          %s174 = scalar_lea.sflag [#allocation6], %s173
          %s175 = sand.u32 %s31, 1
          %s176 = smul.addr %s175, 1024
          %s177 = scalar_lea.vmem [#allocation5], %s176
          %s178 = smul.u32 128, %s21
          %s180 = ssub.s32 16384, 16384
          %181 = vsyncadd %s174, %s180
          %s182 = smul.addr %s178, 128
          %s183 = scalar_lea.hbm %s1, %s182
          %s184 = sshll.u32 %s177, 4
          %s185 = int_to_ptr.vmem [resolvable:$true] %s184
          %190 = dma.hbm_to_vmem [thread:$0]  %s183, 16384, %s185, %s174, 128, 128, 8
        $region20: #{tpu_custom_call.1} parent=15 // pred_fallthru
          _
        // Predicated region
        $region21: #{tpu_custom_call.1} parent=15 // pred_check
          %p191 = pneg %p67
        $region22: #{tpu_custom_call.1} parent=15 // pred_check_branch
          %193 = sbr.rel (%p191) target = $region24
        $region23: #{tpu_custom_call.1} parent=15 // pred_region
          %s194 = smul.u32 16, %s21
          %p195 = scmp.lt.s32.totalorder %s194, 127
          %s196 = scalar_select %p195, %s194, 127
          %s197 = smul.addr %s196, 8
          %s198 = scalar_lea.vmem %s2, %s197
          %s199 = smul.u32 16, %s21
        $region24: #{tpu_custom_call.1} parent=15 // pred_fallthru
          _
        // Predicated region
        $region25: #{tpu_custom_call.1} parent=15 // pred_check
          %p200 = pneg %p93
        $region26: #{tpu_custom_call.1} parent=15 // pred_check_branch
          %202 = sbr.rel (%p200) target = $region28
        $region27: #{tpu_custom_call.1} parent=15 // pred_region
          %s203 = sand.u32 %s83, 1
          %s204 = scalar_lea.sflag [#allocation9], %s203
          %s205 = sand.u32 %s83, 1
          %s206 = smul.addr %s205, 64
          %s207 = scalar_lea.vmem [#allocation8], %s206
          %s209 = ssub.s32 1024, 1024
          %210 = vsyncadd %s204, %s209
          %s211 = smul.addr %s21, 128
          %s212 = scalar_lea.hbm %s3, %s211
          %s213 = sshll.u32 %s207, 4
          %s214 = int_to_ptr.vmem [resolvable:$true] %s213
          %219 = dma.hbm_to_vmem [thread:$0]  %s212, 1024, %s214, %s204, 1024, 128, 8
        $region28: #{tpu_custom_call.1} parent=15 // pred_fallthru
          _
        // Predicated region
        $region29: #{tpu_custom_call.1} parent=15 // pred_check
          %p220 = pneg %p119
        $region30: #{tpu_custom_call.1} parent=15 // pred_check_branch
          %222 = sbr.rel (%p220) target = $region32
        $region31: #{tpu_custom_call.1} parent=15 // pred_region
          %s223 = smul.u32 16, %s21
          %p224 = scmp.lt.s32.totalorder %s223, 127
          %s225 = scalar_select %p224, %s223, 127
          %s226 = smul.addr %s225, 8
          %s227 = scalar_lea.vmem %s4, %s226
          %s228 = smul.u32 16, %s21
        $region32: #{tpu_custom_call.1} parent=15 // pred_fallthru
          _
      $region16: #{tpu_custom_call.1} parent=5 // pred_fallthru
        _
      %p229 = scmp.le.s32.totalorder 1, %s21
      %p230 = scmp.lt.s32.totalorder %s21, 9
      %p231 = pnand %p229, %p230
      %p232 = pneg %p231
      // Predicated region
      $region33: #{tpu_custom_call.1} parent=5 // pred_check
        _
      $region34: #{tpu_custom_call.1} parent=5 // pred_check_branch
        %234 = sbr.rel (%p231) target = $region36
      $region35: #{tpu_custom_call.1} parent=5 // pred_region
        %s235 = ssub.s32 %s21, 1
        %s236 = sand.u32 %s34, 1
        %s237 = scalar_lea.sflag [#allocation6], %s236
        %s238 = sand.u32 %s34, 1
        %s239 = smul.addr %s238, 1024
        %s240 = scalar_lea.vmem [#allocation5], %s239
        // Predicated region
        $region37: #{tpu_custom_call.1} parent=35 // pred_check
          %p241 = pneg %p47
        $region38: #{tpu_custom_call.1} parent=35 // pred_check_branch
          %243 = sbr.rel (%p241) target = $region40
        $region39: #{tpu_custom_call.1} parent=35 // pred_region
          %244 = dma.done %s237, 16384
        $region40: #{tpu_custom_call.1} parent=35 // pred_fallthru
          _
        %s245 = sand.u32 %s86, 1
        %s246 = scalar_lea.sflag [#allocation9], %s245
        %s247 = sand.u32 %s86, 1
        %s248 = smul.addr %s247, 64
        %s249 = scalar_lea.vmem [#allocation8], %s248
        // Predicated region
        $region41: #{tpu_custom_call.1} parent=35 // pred_check
          %p250 = pneg %p99
        $region42: #{tpu_custom_call.1} parent=35 // pred_check_branch
          %252 = sbr.rel (%p250) target = $region44
        $region43: #{tpu_custom_call.1} parent=35 // pred_region
          %253 = dma.done %s246, 1024
        $region44: #{tpu_custom_call.1} parent=35 // pred_fallthru
          _
        %s254 = sand.u32 %s34, 1
        %s255 = scalar_lea.sflag [#allocation6], %s254
        %s256 = sand.u32 %s34, 1
        %s257 = smul.addr %s256, 1024
        %s258 = scalar_lea.vmem [#allocation5], %s257
        %p259 = pneg %p47
        %p260 = pneg %p44
        %s261 = smul.u32 16, %s26
        %p262 = scmp.lt.s32.totalorder %s261, 127
        %s263 = scalar_select %p262, %s261, 127
        %s264 = smul.addr %s263, 8
        %s265 = scalar_lea.vmem %s2, %s264
        %p266 = pneg %p73
        %p267 = pneg %p70
        %s268 = sand.u32 %s86, 1
        %s269 = scalar_lea.sflag [#allocation9], %s268
        %s270 = sand.u32 %s86, 1
        %s271 = smul.addr %s270, 64
        %s272 = scalar_lea.vmem [#allocation8], %s271
        %p273 = pneg %p99
        %p274 = pneg %p96
        %s275 = smul.u32 16, %s26
        %p276 = scmp.lt.s32.totalorder %s275, 127
        %s277 = scalar_select %p276, %s275, 127
        %s278 = smul.addr %s277, 8
        %s279 = scalar_lea.vmem %s4, %s278
        %p280 = pneg %p125
        %p281 = pneg %p122
        %p282 = pneg %p151
        %p283 = pneg %p148
        %s284 = sand.u32 %s138, 1
        %s285 = scalar_lea.sflag [#allocation7], %s284
        %s286 = sand.u32 %s138, 1
        %s287 = smul.addr %s286, 128
        %s288 = scalar_lea.vmem [#allocation10], %s287
        %s289 = smul.u32 128, %s26
        %s290 = smul.u32 16, %s26
        %p291 = scmp.lt.s32.totalorder %s290, 127
        %s292 = scalar_select %p291, %s290, 127
        %s293 = smul.addr %s292, 8
        %s294 = scalar_lea.vmem %s2, %s293
        %s295 = smul.u32 16, %s26
        %s296 = smul.u32 16, %s26
        %p297 = scmp.lt.s32.totalorder %s296, 127
        %s298 = scalar_select %p297, %s296, 127
        %s299 = smul.addr %s298, 8
        %s300 = scalar_lea.vmem %s4, %s299
        %s301 = smul.u32 16, %s26
        %s302 = smul.u32 16, %s26
        %v303 = vld [vmem:[%s294] sm:$0xff]
        %v304 = vld [vmem:[%s294 + $0x8] sm:$0xff]
        %v305 = vld [vmem:[%s294 + $0x10] sm:$0xff]
        %v306 = vld [vmem:[%s294 + $0x18] sm:$0xff]
        %v307 = vld [vmem:[%s294 + $0x20] sm:$0xff]
        %v308 = vld [vmem:[%s294 + $0x28] sm:$0xff]
        %v309 = vld [vmem:[%s294 + $0x30] sm:$0xff]
        %v310 = vld [vmem:[%s294 + $0x38] sm:$0xff]
        %v311 = vld [vmem:[%s294 + $0x40] sm:$0xff]
        %v312 = vld [vmem:[%s294 + $0x48] sm:$0xff]
        %v313 = vld [vmem:[%s294 + $0x50] sm:$0xff]
        %v314 = vld [vmem:[%s294 + $0x58] sm:$0xff]
        %v315 = vld [vmem:[%s294 + $0x60] sm:$0xff]
        %v316 = vld [vmem:[%s294 + $0x68] sm:$0xff]
        %v317 = vld [vmem:[%s294 + $0x70] sm:$0xff]
        %v318 = vld [vmem:[%s294 + $0x78] sm:$0xff]
        %s319 = sld [smem:[#allocation4]]
        %p320 = scmp.eq.s32.totalorder %s319, 0
        // Predicated region
        $region45: #{tpu_custom_call.1} parent=35 // pred_check
          %p321 = pneg %p320
        $region46: #{tpu_custom_call.1} parent=35 // pred_check_branch
          %323 = sbr.rel (%p321) target = $region48
        $region47: #{tpu_custom_call.1} parent=35 // pred_region
          %v324 = vld [vmem:[%s249] sm:$0xff]
          %v325 = vld [vmem:[%s249 + $0x8] sm:$0xff]
          %v326 = vld [vmem:[%s249 + $0x10] sm:$0xff]
          %v327 = vld [vmem:[%s249 + $0x18] sm:$0xff]
          %v328 = vld [vmem:[%s249 + $0x20] sm:$0xff]
          %v329 = vld [vmem:[%s249 + $0x28] sm:$0xff]
          %v330 = vld [vmem:[%s249 + $0x30] sm:$0xff]
          %v331 = vld [vmem:[%s249 + $0x38] sm:$0xff]
          %v332 = vlaneseq
          %v333 = vshrl.u32 %v332, 7
          %v334 = vmax.f32 %v324, 0.0
          %v335 = vmax.f32 %v325, 0.0
          %v336 = vmax.f32 %v326, 0.0
          %v337 = vmax.f32 %v327, 0.0
          %v338 = vmax.f32 %v328, 0.0
          %v339 = vmax.f32 %v329, 0.0
          %v340 = vmax.f32 %v330, 0.0
          %v341 = vmax.f32 %v331, 0.0
          %v342 = vrot.slane %v334, 4
          %v343 = vadd.f32 %v334, %v342
          %v344 = vrot.slane %v343, 2
          %v345 = vadd.f32 %v343, %v344
          %v346 = vrot.slane %v345, 1
          %v347 = vadd.f32 %v345, %v346
          %v348 = vrot.slane %v335, 4
          %v349 = vadd.f32 %v335, %v348
          %v350 = vrot.slane %v349, 2
          %v351 = vadd.f32 %v349, %v350
          %v352 = vrot.slane %v351, 1
          %v353 = vadd.f32 %v351, %v352
          %v354 = vrot.slane %v336, 4
          %v355 = vadd.f32 %v336, %v354
          %v356 = vrot.slane %v355, 2
          %v357 = vadd.f32 %v355, %v356
          %v358 = vrot.slane %v357, 1
          %v359 = vadd.f32 %v357, %v358
          %v360 = vrot.slane %v337, 4
          %v361 = vadd.f32 %v337, %v360
          %v362 = vrot.slane %v361, 2
          %v363 = vadd.f32 %v361, %v362
          %v364 = vrot.slane %v363, 1
          %v365 = vadd.f32 %v363, %v364
          %v366 = vrot.slane %v338, 4
          %v367 = vadd.f32 %v338, %v366
          %v368 = vrot.slane %v367, 2
          %v369 = vadd.f32 %v367, %v368
          %v370 = vrot.slane %v369, 1
          %v371 = vadd.f32 %v369, %v370
          %v372 = vrot.slane %v339, 4
          %v373 = vadd.f32 %v339, %v372
          %v374 = vrot.slane %v373, 2
          %v375 = vadd.f32 %v373, %v374
          %v376 = vrot.slane %v375, 1
          %v377 = vadd.f32 %v375, %v376
          %v378 = vrot.slane %v340, 4
          %v379 = vadd.f32 %v340, %v378
          %v380 = vrot.slane %v379, 2
          %v381 = vadd.f32 %v379, %v380
          %v382 = vrot.slane %v381, 1
          %v383 = vadd.f32 %v381, %v382
          %v384 = vrot.slane %v341, 4
          %v385 = vadd.f32 %v341, %v384
          %v386 = vrot.slane %v385, 2
          %v387 = vadd.f32 %v385, %v386
          %v388 = vrot.slane %v387, 1
          %v389 = vadd.f32 %v387, %v388
          %v390 = vmax.f32 %v347, %v371
          %v391 = vmax.f32 %v353, %v377
          %v392 = vmax.f32 %v359, %v383
          %v393 = vmax.f32 %v365, %v389
          %v394 = vmax.f32 %v390, %v391
          %v395 = vmax.f32 %v392, %v393
          %v396 = vmax.f32 %v394, %v395
          %vm397 = vcmp.ge.f32.partialorder %v347, %v396
          %vm398 = vcmp.ge.f32.partialorder %v353, %v396
          %vm399 = vcmp.ge.f32.partialorder %v359, %v396
          %vm400 = vcmp.ge.f32.partialorder %v365, %v396
          %vm401 = vcmp.ge.f32.partialorder %v371, %v396
          %vm402 = vcmp.ge.f32.partialorder %v377, %v396
          %vm403 = vcmp.ge.f32.partialorder %v383, %v396
          %vm404 = vcmp.ge.f32.partialorder %v389, %v396
          %v405 = vrot.slane %v333, 1
          %v406 = vrot.slane %v333, 2
          %v407 = vrot.slane %v333, 3
          %v408 = vrot.slane %v333, 4
          %v409 = vrot.slane %v333, 5
          %v410 = vrot.slane %v333, 6
          %v411 = vrot.slane %v333, 7
          %v412 = vsel %vm397, %v333, 8
          %v413 = vsel %vm398, %v405, 8
          %v414 = vsel %vm399, %v406, 8
          %v415 = vsel %vm400, %v407, 8
          %v416 = vsel %vm401, %v408, 8
          %v417 = vsel %vm402, %v409, 8
          %v418 = vsel %vm403, %v410, 8
          %v419 = vsel %vm404, %v411, 8
          %vm420 = vcmask 1040384
          %v421 = vsel %vm420, %v412, 2147483647
          %v422 = vsel %vm420, %v413, 2147483647
          %v423 = vsel %vm420, %v414, 2147483647
          %v424 = vsel %vm420, %v415, 2147483647
          %v425 = vsel %vm420, %v416, 2147483647
          %vm426 = vcmp.lt.s32.totalorder %v421, %v425
          %v427 = vsel %vm426, %v421, %v425
          %v428 = vsel %vm420, %v417, 2147483647
          %vm429 = vcmp.lt.s32.totalorder %v422, %v428
          %v430 = vsel %vm429, %v422, %v428
          %v431 = vsel %vm420, %v418, 2147483647
          %vm432 = vcmp.lt.s32.totalorder %v423, %v431
          %v433 = vsel %vm432, %v423, %v431
          %v434 = vsel %vm420, %v419, 2147483647
          %vm435 = vcmp.lt.s32.totalorder %v424, %v434
          %v436 = vsel %vm435, %v424, %v434
          %vm437 = vcmp.lt.s32.totalorder %v427, %v430
          %v438 = vsel %vm437, %v427, %v430
          %vm439 = vcmp.lt.s32.totalorder %v433, %v436
          %v440 = vsel %vm439, %v433, %v436
          %vm441 = vcmp.lt.s32.totalorder %v438, %v440
          %v442 = vsel %vm441, %v438, %v440
          %v443 = vlaneseq
          %v444 = vshrl.u32 %v443, 7
          %v445 = vsub.s32 0, %v444
          %v446 = vrot.slane %v442, %v445
          %vm447 = vcmp.eq.s32.totalorder %v333, %v446
          %v448 = vsel %vm447, 1, 0
          %v449 = vcvt.s32.f32 %v448
          %v451 = vcombine.high %v449, %v449
          %v453 = vunpack.c.l.s4 1966171168
          %v454 = vunpack.c.0.s8 %v453
          %v455 = vlaneseq
          %v456 = vshrl.u32 %v455, 7
          %v457 = vsub.s32 %v454, %v456
          %v458 = vrot.slane %v449, %v457
          %v460 = vunpack.c.l.s4 1966171168
          %v461 = vunpack.c.0.s8 %v460
          %v462 = vlaneseq
          %v463 = vshrl.u32 %v462, 7
          %v464 = vsub.s32 %v461, %v463
          %v465 = vrot.slane %v451, %v464
          %v466 = vcombine.high %v458, %v458
          %v467 = vcombine.high %v465, %v465
          %v469 = vunpack.c.l.s4 1966171168
          %v470 = vunpack.c.0.s8 %v469
          %v471 = vlaneseq
          %v472 = vshrl.u32 %v471, 7
          %v473 = vsub.s32 %v470, %v472
          %v474 = vrot.slane %v458, %v473
          %v476 = vunpack.c.l.s4 1966171168
          %v477 = vunpack.c.0.s8 %v476
          %v478 = vlaneseq
          %v479 = vshrl.u32 %v478, 7
          %v480 = vsub.s32 %v477, %v479
          %v481 = vrot.slane %v465, %v480
          %v483 = vunpack.c.l.s4 1966171168
          %v484 = vunpack.c.0.s8 %v483
          %v485 = vlaneseq
          %v486 = vshrl.u32 %v485, 7
          %v487 = vsub.s32 %v484, %v486
          %v488 = vrot.slane %v466, %v487
          %v490 = vunpack.c.l.s4 1966171168
          %v491 = vunpack.c.0.s8 %v490
          %v492 = vlaneseq
          %v493 = vshrl.u32 %v492, 7
          %v494 = vsub.s32 %v491, %v493
          %v495 = vrot.slane %v467, %v494
          %v496 = vcombine.high %v474, %v474
          %v497 = vcombine.high %v481, %v481
          %v498 = vcombine.high %v488, %v488
          %v499 = vcombine.high %v495, %v495
          %v500 = vlaneseq
          %v501 = vshrl.u32 %v500, 7
          %v502 = vsub.s32 0, %v501
          %v503 = vrot.slane %v474, %v502
          %v504 = vlaneseq
          %v505 = vshrl.u32 %v504, 7
          %v506 = vsub.s32 0, %v505
          %v507 = vrot.slane %v488, %v506
          %v508 = vlaneseq
          %v509 = vshrl.u32 %v508, 7
          %v510 = vsub.s32 0, %v509
          %v511 = vrot.slane %v496, %v510
          %v512 = vlaneseq
          %v513 = vshrl.u32 %v512, 7
          %v514 = vsub.s32 0, %v513
          %v515 = vrot.slane %v498, %v514
          %v516 = vlaneseq
          %v517 = vshrl.u32 %v516, 7
          %v518 = vsub.s32 0, %v517
          %v519 = vrot.slane %v481, %v518
          %v520 = vlaneseq
          %v521 = vshrl.u32 %v520, 7
          %v522 = vsub.s32 0, %v521
          %v523 = vrot.slane %v495, %v522
          %v524 = vlaneseq
          %v525 = vshrl.u32 %v524, 7
          %v526 = vsub.s32 0, %v525
          %v527 = vrot.slane %v497, %v526
          %v528 = vlaneseq
          %v529 = vshrl.u32 %v528, 7
          %v530 = vsub.s32 0, %v529
          %v531 = vrot.slane %v499, %v530
          %v540 = vmul.f32 %v503, %v324
          %v541 = vmul.f32 %v507, %v325
          %v542 = vmul.f32 %v511, %v326
          %v543 = vmul.f32 %v515, %v327
          %v544 = vmul.f32 %v519, %v328
          %v545 = vmul.f32 %v523, %v329
          %v546 = vmul.f32 %v527, %v330
          %v547 = vmul.f32 %v531, %v331
          %v548 = vadd.f32 %v540, %v541
          %v549 = vadd.f32 %v548, %v542
          %v550 = vadd.f32 %v549, %v543
          %v551 = vadd.f32 %v550, %v544
          %v552 = vadd.f32 %v551, %v545
          %v553 = vadd.f32 %v552, %v546
          %v554 = vadd.f32 %v553, %v547
          %v555 = vmax.f32 %v554, 0.0
          %v556 = vadd.f32 %v449, 0.0
          %v557 = vmax.f32 %v324, %v555
          %v558 = vmax.f32 %v325, %v555
          %v559 = vmax.f32 %v326, %v555
          %v560 = vmax.f32 %v327, %v555
          %v561 = vmax.f32 %v328, %v555
          %v562 = vmax.f32 %v329, %v555
          %v563 = vmax.f32 %v330, %v555
          %v564 = vmax.f32 %v331, %v555
          %v565 = vsub.f32 %v557, %v555
          %v566 = vsub.f32 %v558, %v555
          %v567 = vsub.f32 %v559, %v555
          %v568 = vsub.f32 %v560, %v555
          %v569 = vsub.f32 %v561, %v555
          %v570 = vsub.f32 %v562, %v555
          %v571 = vsub.f32 %v563, %v555
          %v572 = vsub.f32 %v564, %v555
          %v573 = vrot.slane %v565, 4
          %v574 = vadd.f32 %v565, %v573
          %v575 = vrot.slane %v574, 2
          %v576 = vadd.f32 %v574, %v575
          %v577 = vrot.slane %v576, 1
          %v578 = vadd.f32 %v576, %v577
          %v579 = vrot.slane %v566, 4
          %v580 = vadd.f32 %v566, %v579
          %v581 = vrot.slane %v580, 2
          %v582 = vadd.f32 %v580, %v581
          %v583 = vrot.slane %v582, 1
          %v584 = vadd.f32 %v582, %v583
          %v585 = vrot.slane %v567, 4
          %v586 = vadd.f32 %v567, %v585
          %v587 = vrot.slane %v586, 2
          %v588 = vadd.f32 %v586, %v587
          %v589 = vrot.slane %v588, 1
          %v590 = vadd.f32 %v588, %v589
          %v591 = vrot.slane %v568, 4
          %v592 = vadd.f32 %v568, %v591
          %v593 = vrot.slane %v592, 2
          %v594 = vadd.f32 %v592, %v593
          %v595 = vrot.slane %v594, 1
          %v596 = vadd.f32 %v594, %v595
          %v597 = vrot.slane %v569, 4
          %v598 = vadd.f32 %v569, %v597
          %v599 = vrot.slane %v598, 2
          %v600 = vadd.f32 %v598, %v599
          %v601 = vrot.slane %v600, 1
          %v602 = vadd.f32 %v600, %v601
          %v603 = vrot.slane %v570, 4
          %v604 = vadd.f32 %v570, %v603
          %v605 = vrot.slane %v604, 2
          %v606 = vadd.f32 %v604, %v605
          %v607 = vrot.slane %v606, 1
          %v608 = vadd.f32 %v606, %v607
          %v609 = vrot.slane %v571, 4
          %v610 = vadd.f32 %v571, %v609
          %v611 = vrot.slane %v610, 2
          %v612 = vadd.f32 %v610, %v611
          %v613 = vrot.slane %v612, 1
          %v614 = vadd.f32 %v612, %v613
          %v615 = vrot.slane %v572, 4
          %v616 = vadd.f32 %v572, %v615
          %v617 = vrot.slane %v616, 2
          %v618 = vadd.f32 %v616, %v617
          %v619 = vrot.slane %v618, 1
          %v620 = vadd.f32 %v618, %v619
          %v621 = vmax.f32 %v578, %v602
          %v622 = vmax.f32 %v584, %v608
          %v623 = vmax.f32 %v590, %v614
          %v624 = vmax.f32 %v596, %v620
          %v625 = vmax.f32 %v621, %v622
          %v626 = vmax.f32 %v623, %v624
          %v627 = vmax.f32 %v625, %v626
          %vm628 = vcmp.ge.f32.partialorder %v578, %v627
          %vm629 = vcmp.ge.f32.partialorder %v584, %v627
          %vm630 = vcmp.ge.f32.partialorder %v590, %v627
          %vm631 = vcmp.ge.f32.partialorder %v596, %v627
          %vm632 = vcmp.ge.f32.partialorder %v602, %v627
          %vm633 = vcmp.ge.f32.partialorder %v608, %v627
          %vm634 = vcmp.ge.f32.partialorder %v614, %v627
          %vm635 = vcmp.ge.f32.partialorder %v620, %v627
          %v636 = vsel %vm628, %v333, 8
          %v637 = vsel %vm629, %v405, 8
          %v638 = vsel %vm630, %v406, 8
          %v639 = vsel %vm631, %v407, 8
          %v640 = vsel %vm632, %v408, 8
          %v641 = vsel %vm633, %v409, 8
          %v642 = vsel %vm634, %v410, 8
          %v643 = vsel %vm635, %v411, 8
          %v644 = vsel %vm420, %v636, 2147483647
          %v645 = vsel %vm420, %v637, 2147483647
          %v646 = vsel %vm420, %v638, 2147483647
          %v647 = vsel %vm420, %v639, 2147483647
          %v648 = vsel %vm420, %v640, 2147483647
          %vm649 = vcmp.lt.s32.totalorder %v644, %v648
          %v650 = vsel %vm649, %v644, %v648
          %v651 = vsel %vm420, %v641, 2147483647
          %vm652 = vcmp.lt.s32.totalorder %v645, %v651
          %v653 = vsel %vm652, %v645, %v651
          %v654 = vsel %vm420, %v642, 2147483647
          %vm655 = vcmp.lt.s32.totalorder %v646, %v654
          %v656 = vsel %vm655, %v646, %v654
          %v657 = vsel %vm420, %v643, 2147483647
          %vm658 = vcmp.lt.s32.totalorder %v647, %v657
          %v659 = vsel %vm658, %v647, %v657
          %vm660 = vcmp.lt.s32.totalorder %v650, %v653
          %v661 = vsel %vm660, %v650, %v653
          %vm662 = vcmp.lt.s32.totalorder %v656, %v659
          %v663 = vsel %vm662, %v656, %v659
          %vm664 = vcmp.lt.s32.totalorder %v661, %v663
          %v665 = vsel %vm664, %v661, %v663
          %v666 = vlaneseq
          %v667 = vshrl.u32 %v666, 7
          %v668 = vsub.s32 0, %v667
          %v669 = vrot.slane %v665, %v668
          %vm670 = vcmp.eq.s32.totalorder %v333, %v669
          %v671 = vsel %vm670, 1, 0
          %v672 = vcvt.s32.f32 %v671
          %v674 = vcombine.high %v672, %v672
          %v676 = vunpack.c.l.s4 1966171168
          %v677 = vunpack.c.0.s8 %v676
          %v678 = vlaneseq
          %v679 = vshrl.u32 %v678, 7
          %v680 = vsub.s32 %v677, %v679
          %v681 = vrot.slane %v672, %v680
          %v683 = vunpack.c.l.s4 1966171168
          %v684 = vunpack.c.0.s8 %v683
          %v685 = vlaneseq
          %v686 = vshrl.u32 %v685, 7
          %v687 = vsub.s32 %v684, %v686
          %v688 = vrot.slane %v674, %v687
          %v689 = vcombine.high %v681, %v681
          %v690 = vcombine.high %v688, %v688
          %v692 = vunpack.c.l.s4 1966171168
          %v693 = vunpack.c.0.s8 %v692
          %v694 = vlaneseq
          %v695 = vshrl.u32 %v694, 7
          %v696 = vsub.s32 %v693, %v695
          %v697 = vrot.slane %v681, %v696
          %v699 = vunpack.c.l.s4 1966171168
          %v700 = vunpack.c.0.s8 %v699
          %v701 = vlaneseq
          %v702 = vshrl.u32 %v701, 7
          %v703 = vsub.s32 %v700, %v702
          %v704 = vrot.slane %v688, %v703
          %v706 = vunpack.c.l.s4 1966171168
          %v707 = vunpack.c.0.s8 %v706
          %v708 = vlaneseq
          %v709 = vshrl.u32 %v708, 7
          %v710 = vsub.s32 %v707, %v709
          %v711 = vrot.slane %v689, %v710
          %v713 = vunpack.c.l.s4 1966171168
          %v714 = vunpack.c.0.s8 %v713
          %v715 = vlaneseq
          %v716 = vshrl.u32 %v715, 7
          %v717 = vsub.s32 %v714, %v716
          %v718 = vrot.slane %v690, %v717
          %v719 = vcombine.high %v697, %v697
          %v720 = vcombine.high %v704, %v704
          %v721 = vcombine.high %v711, %v711
          %v722 = vcombine.high %v718, %v718
          %v723 = vlaneseq
          %v724 = vshrl.u32 %v723, 7
          %v725 = vsub.s32 0, %v724
          %v726 = vrot.slane %v697, %v725
          %v727 = vlaneseq
          %v728 = vshrl.u32 %v727, 7
          %v729 = vsub.s32 0, %v728
          %v730 = vrot.slane %v711, %v729
          %v731 = vlaneseq
          %v732 = vshrl.u32 %v731, 7
          %v733 = vsub.s32 0, %v732
          %v734 = vrot.slane %v719, %v733
          %v735 = vlaneseq
          %v736 = vshrl.u32 %v735, 7
          %v737 = vsub.s32 0, %v736
          %v738 = vrot.slane %v721, %v737
          %v739 = vlaneseq
          %v740 = vshrl.u32 %v739, 7
          %v741 = vsub.s32 0, %v740
          %v742 = vrot.slane %v704, %v741
          %v743 = vlaneseq
          %v744 = vshrl.u32 %v743, 7
          %v745 = vsub.s32 0, %v744
          %v746 = vrot.slane %v718, %v745
          %v747 = vlaneseq
          %v748 = vshrl.u32 %v747, 7
          %v749 = vsub.s32 0, %v748
          %v750 = vrot.slane %v720, %v749
          %v751 = vlaneseq
          %v752 = vshrl.u32 %v751, 7
          %v753 = vsub.s32 0, %v752
          %v754 = vrot.slane %v722, %v753
          %v763 = vmul.f32 %v726, %v324
          %v764 = vmul.f32 %v730, %v325
          %v765 = vmul.f32 %v734, %v326
          %v766 = vmul.f32 %v738, %v327
          %v767 = vmul.f32 %v742, %v328
          %v768 = vmul.f32 %v746, %v329
          %v769 = vmul.f32 %v750, %v330
          %v770 = vmul.f32 %v754, %v331
          %v771 = vadd.f32 %v763, %v764
          %v772 = vadd.f32 %v771, %v765
          %v773 = vadd.f32 %v772, %v766
          %v774 = vadd.f32 %v773, %v767
          %v775 = vadd.f32 %v774, %v768
          %v776 = vadd.f32 %v775, %v769
          %v777 = vadd.f32 %v776, %v770
          %v778 = vmax.f32 %v555, %v777
          %v779 = vadd.f32 %v556, %v672
          %v780 = vmax.f32 %v324, %v778
          %v781 = vmax.f32 %v325, %v778
          %v782 = vmax.f32 %v326, %v778
          %v783 = vmax.f32 %v327, %v778
          %v784 = vmax.f32 %v328, %v778
          %v785 = vmax.f32 %v329, %v778
          %v786 = vmax.f32 %v330, %v778
          %v787 = vmax.f32 %v331, %v778
          %v788 = vsub.f32 %v780, %v778
          %v789 = vsub.f32 %v781, %v778
          %v790 = vsub.f32 %v782, %v778
          %v791 = vsub.f32 %v783, %v778
          %v792 = vsub.f32 %v784, %v778
          %v793 = vsub.f32 %v785, %v778
          %v794 = vsub.f32 %v786, %v778
          %v795 = vsub.f32 %v787, %v778
          %v796 = vrot.slane %v788, 4
          %v797 = vadd.f32 %v788, %v796
          %v798 = vrot.slane %v797, 2
          %v799 = vadd.f32 %v797, %v798
          %v800 = vrot.slane %v799, 1
          %v801 = vadd.f32 %v799, %v800
          %v802 = vrot.slane %v789, 4
          %v803 = vadd.f32 %v789, %v802
          %v804 = vrot.slane %v803, 2
          %v805 = vadd.f32 %v803, %v804
          %v806 = vrot.slane %v805, 1
          %v807 = vadd.f32 %v805, %v806
          %v808 = vrot.slane %v790, 4
          %v809 = vadd.f32 %v790, %v808
          %v810 = vrot.slane %v809, 2
          %v811 = vadd.f32 %v809, %v810
          %v812 = vrot.slane %v811, 1
          %v813 = vadd.f32 %v811, %v812
          %v814 = vrot.slane %v791, 4
          %v815 = vadd.f32 %v791, %v814
          %v816 = vrot.slane %v815, 2
          %v817 = vadd.f32 %v815, %v816
          %v818 = vrot.slane %v817, 1
          %v819 = vadd.f32 %v817, %v818
          %v820 = vrot.slane %v792, 4
          %v821 = vadd.f32 %v792, %v820
          %v822 = vrot.slane %v821, 2
          %v823 = vadd.f32 %v821, %v822
          %v824 = vrot.slane %v823, 1
          %v825 = vadd.f32 %v823, %v824
          %v826 = vrot.slane %v793, 4
          %v827 = vadd.f32 %v793, %v826
          %v828 = vrot.slane %v827, 2
          %v829 = vadd.f32 %v827, %v828
          %v830 = vrot.slane %v829, 1
          %v831 = vadd.f32 %v829, %v830
          %v832 = vrot.slane %v794, 4
          %v833 = vadd.f32 %v794, %v832
          %v834 = vrot.slane %v833, 2
          %v835 = vadd.f32 %v833, %v834
          %v836 = vrot.slane %v835, 1
          %v837 = vadd.f32 %v835, %v836
          %v838 = vrot.slane %v795, 4
          %v839 = vadd.f32 %v795, %v838
          %v840 = vrot.slane %v839, 2
          %v841 = vadd.f32 %v839, %v840
          %v842 = vrot.slane %v841, 1
          %v843 = vadd.f32 %v841, %v842
          %v844 = vmax.f32 %v801, %v825
          %v845 = vmax.f32 %v807, %v831
          %v846 = vmax.f32 %v813, %v837
          %v847 = vmax.f32 %v819, %v843
          %v848 = vmax.f32 %v844, %v845
          %v849 = vmax.f32 %v846, %v847
          %v850 = vmax.f32 %v848, %v849
          %vm851 = vcmp.ge.f32.partialorder %v801, %v850
          %vm852 = vcmp.ge.f32.partialorder %v807, %v850
          %vm853 = vcmp.ge.f32.partialorder %v813, %v850
          %vm854 = vcmp.ge.f32.partialorder %v819, %v850
          %vm855 = vcmp.ge.f32.partialorder %v825, %v850
          %vm856 = vcmp.ge.f32.partialorder %v831, %v850
          %vm857 = vcmp.ge.f32.partialorder %v837, %v850
          %vm858 = vcmp.ge.f32.partialorder %v843, %v850
          %v859 = vsel %vm851, %v333, 8
          %v860 = vsel %vm852, %v405, 8
          %v861 = vsel %vm853, %v406, 8
          %v862 = vsel %vm854, %v407, 8
          %v863 = vsel %vm855, %v408, 8
          %v864 = vsel %vm856, %v409, 8
          %v865 = vsel %vm857, %v410, 8
          %v866 = vsel %vm858, %v411, 8
          %v867 = vsel %vm420, %v859, 2147483647
          %v868 = vsel %vm420, %v860, 2147483647
          %v869 = vsel %vm420, %v861, 2147483647
          %v870 = vsel %vm420, %v862, 2147483647
          %v871 = vsel %vm420, %v863, 2147483647
          %vm872 = vcmp.lt.s32.totalorder %v867, %v871
          %v873 = vsel %vm872, %v867, %v871
          %v874 = vsel %vm420, %v864, 2147483647
          %vm875 = vcmp.lt.s32.totalorder %v868, %v874
          %v876 = vsel %vm875, %v868, %v874
          %v877 = vsel %vm420, %v865, 2147483647
          %vm878 = vcmp.lt.s32.totalorder %v869, %v877
          %v879 = vsel %vm878, %v869, %v877
          %v880 = vsel %vm420, %v866, 2147483647
          %vm881 = vcmp.lt.s32.totalorder %v870, %v880
          %v882 = vsel %vm881, %v870, %v880
          %vm883 = vcmp.lt.s32.totalorder %v873, %v876
          %v884 = vsel %vm883, %v873, %v876
          %vm885 = vcmp.lt.s32.totalorder %v879, %v882
          %v886 = vsel %vm885, %v879, %v882
          %vm887 = vcmp.lt.s32.totalorder %v884, %v886
          %v888 = vsel %vm887, %v884, %v886
          %v889 = vlaneseq
          %v890 = vshrl.u32 %v889, 7
          %v891 = vsub.s32 0, %v890
          %v892 = vrot.slane %v888, %v891
          %vm893 = vcmp.eq.s32.totalorder %v333, %v892
          %v894 = vsel %vm893, 1, 0
          %v895 = vcvt.s32.f32 %v894
          %v896 = vadd.f32 %v779, %v895
          %897 = vxpose.xlu0.b32.start [1/16] %v896, 128
          %898 = vxpose.xlu0.b32.cont [2/16] 0.0, 128
          %899 = vxpose.xlu0.b32.cont [3/16] 0.0, 128
          %900 = vxpose.xlu0.b32.cont [4/16] 0.0, 128
          %901 = vxpose.xlu0.b32.cont [5/16] 0.0, 128
          %902 = vxpose.xlu0.b32.cont [6/16] 0.0, 128
          %903 = vxpose.xlu0.b32.cont [7/16] 0.0, 128
          %904 = vxpose.xlu0.b32.cont [8/16] 0.0, 128
          %905 = vxpose.xlu0.b32.cont [9/16] 0.0, 128
          %906 = vxpose.xlu0.b32.cont [10/16] 0.0, 128
          %907 = vxpose.xlu0.b32.cont [11/16] 0.0, 128
          %908 = vxpose.xlu0.b32.cont [12/16] 0.0, 128
          %909 = vxpose.xlu0.b32.cont [13/16] 0.0, 128
          %910 = vxpose.xlu0.b32.cont [14/16] 0.0, 128
          %911 = vxpose.xlu0.b32.cont [15/16] 0.0, 128
          %912 = vxpose.xlu0.b32.end [16/16] 0.0, 128
          %v913 = vpop.trf.xlu0
          %v914 = vpop.trf.xlu0
          %v915 = vpop.trf.xlu0
          %v916 = vpop.trf.xlu0
          %v917 = vpop.trf.xlu0
          %v918 = vpop.trf.xlu0
          %v919 = vpop.trf.xlu0
          %v920 = vpop.trf.xlu0
          %v921 = vpop.trf.xlu0
          %v922 = vpop.trf.xlu0
          %v923 = vpop.trf.xlu0
          %v924 = vpop.trf.xlu0
          %v925 = vpop.trf.xlu0
          %v926 = vpop.trf.xlu0
          %v927 = vpop.trf.xlu0
          %v928 = vpop.trf.xlu0
          %v929 = vmul.f32 %v913, %v303
          %v930 = vmul.f32 %v914, %v304
          %v931 = vmul.f32 %v915, %v305
          %v932 = vmul.f32 %v916, %v306
          %v933 = vmul.f32 %v917, %v307
          %v934 = vmul.f32 %v918, %v308
          %v935 = vmul.f32 %v919, %v309
          %v936 = vmul.f32 %v920, %v310
          %v937 = vmul.f32 %v921, %v311
          %v938 = vmul.f32 %v922, %v312
          %v939 = vmul.f32 %v923, %v313
          %v940 = vmul.f32 %v924, %v314
          %v941 = vmul.f32 %v925, %v315
          %v942 = vmul.f32 %v926, %v316
          %v943 = vmul.f32 %v927, %v317
          %v944 = vmul.f32 %v928, %v318
          %vm945 = vcmask 64512
          %946 = vst.msk [vmem:[#allocation2] sm:$0xff] %vm945, %v929
          %947 = vst.msk [vmem:[#allocation2 + $0x8] sm:$0xff] %vm945, %v930
          %948 = vst.msk [vmem:[#allocation2 + $0x10] sm:$0xff] %vm945, %v931
          %949 = vst.msk [vmem:[#allocation2 + $0x18] sm:$0xff] %vm945, %v932
          %950 = vst.msk [vmem:[#allocation2 + $0x20] sm:$0xff] %vm945, %v933
          %951 = vst.msk [vmem:[#allocation2 + $0x28] sm:$0xff] %vm945, %v934
          %952 = vst.msk [vmem:[#allocation2 + $0x30] sm:$0xff] %vm945, %v935
          %953 = vst.msk [vmem:[#allocation2 + $0x38] sm:$0xff] %vm945, %v936
          %954 = vst.msk [vmem:[#allocation2 + $0x40] sm:$0xff] %vm945, %v937
          %955 = vst.msk [vmem:[#allocation2 + $0x48] sm:$0xff] %vm945, %v938
          %956 = vst.msk [vmem:[#allocation2 + $0x50] sm:$0xff] %vm945, %v939
          %957 = vst.msk [vmem:[#allocation2 + $0x58] sm:$0xff] %vm945, %v940
          %958 = vst.msk [vmem:[#allocation2 + $0x60] sm:$0xff] %vm945, %v941
          %959 = vst.msk [vmem:[#allocation2 + $0x68] sm:$0xff] %vm945, %v942
          %960 = vst.msk [vmem:[#allocation2 + $0x70] sm:$0xff] %vm945, %v943
          %961 = vst.msk [vmem:[#allocation2 + $0x78] sm:$0xff] %vm945, %v944
        $region48: #{tpu_custom_call.1} parent=35 // pred_fallthru
          _
        %s962 = sld [smem:[#allocation4]]
        %p963 = scmp.ne.s32.totalorder %s962, 0
        // Predicated region
        $region49: #{tpu_custom_call.1} parent=35 // pred_check
          %p964 = pneg %p963
        $region50: #{tpu_custom_call.1} parent=35 // pred_check_branch
          %966 = sbr.rel (%p964) target = $region52
        $region51: #{tpu_custom_call.1} parent=35 // pred_region
          %vm967 = vcmask 64512
          %968 = vst.msk [vmem:[#allocation2] sm:$0xff] %vm967, %v303
          %969 = vst.msk [vmem:[#allocation2 + $0x8] sm:$0xff] %vm967, %v304
          %970 = vst.msk [vmem:[#allocation2 + $0x10] sm:$0xff] %vm967, %v305
          %971 = vst.msk [vmem:[#allocation2 + $0x18] sm:$0xff] %vm967, %v306
          %972 = vst.msk [vmem:[#allocation2 + $0x20] sm:$0xff] %vm967, %v307
          %973 = vst.msk [vmem:[#allocation2 + $0x28] sm:$0xff] %vm967, %v308
          %974 = vst.msk [vmem:[#allocation2 + $0x30] sm:$0xff] %vm967, %v309
          %975 = vst.msk [vmem:[#allocation2 + $0x38] sm:$0xff] %vm967, %v310
          %976 = vst.msk [vmem:[#allocation2 + $0x40] sm:$0xff] %vm967, %v311
          %977 = vst.msk [vmem:[#allocation2 + $0x48] sm:$0xff] %vm967, %v312
          %978 = vst.msk [vmem:[#allocation2 + $0x50] sm:$0xff] %vm967, %v313
          %979 = vst.msk [vmem:[#allocation2 + $0x58] sm:$0xff] %vm967, %v314
          %980 = vst.msk [vmem:[#allocation2 + $0x60] sm:$0xff] %vm967, %v315
          %981 = vst.msk [vmem:[#allocation2 + $0x68] sm:$0xff] %vm967, %v316
          %982 = vst.msk [vmem:[#allocation2 + $0x70] sm:$0xff] %vm967, %v317
          %983 = vst.msk [vmem:[#allocation2 + $0x78] sm:$0xff] %vm967, %v318
        $region52: #{tpu_custom_call.1} parent=35 // pred_fallthru
          _
        %v984 = vld [vmem:[%s240] sm:$0xff]
        %v985 = vld [vmem:[%s240 + $0x8] sm:$0xff]
        %v986 = vld [vmem:[%s240 + $0x10] sm:$0xff]
        %v987 = vld [vmem:[%s240 + $0x18] sm:$0xff]
        %v988 = vld [vmem:[%s240 + $0x20] sm:$0xff]
        %v989 = vld [vmem:[%s240 + $0x28] sm:$0xff]
        %v990 = vld [vmem:[%s240 + $0x30] sm:$0xff]
        %v991 = vld [vmem:[%s240 + $0x38] sm:$0xff]
        %v992 = vld [vmem:[%s240 + $0x40] sm:$0xff]
        %v993 = vld [vmem:[%s240 + $0x48] sm:$0xff]
        %v994 = vld [vmem:[%s240 + $0x50] sm:$0xff]
        %v995 = vld [vmem:[%s240 + $0x58] sm:$0xff]
        %v996 = vld [vmem:[%s240 + $0x60] sm:$0xff]
        %v997 = vld [vmem:[%s240 + $0x68] sm:$0xff]
        %v998 = vld [vmem:[%s240 + $0x70] sm:$0xff]
        %v999 = vld [vmem:[%s240 + $0x78] sm:$0xff]
        %v1000 = vld [vmem:[%s240 + $0x80] sm:$0xff]
        %v1001 = vld [vmem:[%s240 + $0x88] sm:$0xff]
        %v1002 = vld [vmem:[%s240 + $0x90] sm:$0xff]
        %v1003 = vld [vmem:[%s240 + $0x98] sm:$0xff]
        %v1004 = vld [vmem:[%s240 + $0xa0] sm:$0xff]
        %v1005 = vld [vmem:[%s240 + $0xa8] sm:$0xff]
        %v1006 = vld [vmem:[%s240 + $0xb0] sm:$0xff]
        %v1007 = vld [vmem:[%s240 + $0xb8] sm:$0xff]
        %v1008 = vld [vmem:[%s240 + $0xc0] sm:$0xff]
        %v1009 = vld [vmem:[%s240 + $0xc8] sm:$0xff]
        %v1010 = vld [vmem:[%s240 + $0xd0] sm:$0xff]
        %v1011 = vld [vmem:[%s240 + $0xd8] sm:$0xff]
        %v1012 = vld [vmem:[%s240 + $0xe0] sm:$0xff]
        %v1013 = vld [vmem:[%s240 + $0xe8] sm:$0xff]
        %v1014 = vld [vmem:[%s240 + $0xf0] sm:$0xff]
        %v1015 = vld [vmem:[%s240 + $0xf8] sm:$0xff]
        %v1016 = vld [vmem:[%s240 + $0x100] sm:$0xff]
        %v1017 = vld [vmem:[%s240 + $0x108] sm:$0xff]
        %v1018 = vld [vmem:[%s240 + $0x110] sm:$0xff]
        %v1019 = vld [vmem:[%s240 + $0x118] sm:$0xff]
        %v1020 = vld [vmem:[%s240 + $0x120] sm:$0xff]
        %v1021 = vld [vmem:[%s240 + $0x128] sm:$0xff]
        %v1022 = vld [vmem:[%s240 + $0x130] sm:$0xff]
        %v1023 = vld [vmem:[%s240 + $0x138] sm:$0xff]
        %v1024 = vld [vmem:[%s240 + $0x140] sm:$0xff]
        %v1025 = vld [vmem:[%s240 + $0x148] sm:$0xff]
        %v1026 = vld [vmem:[%s240 + $0x150] sm:$0xff]
        %v1027 = vld [vmem:[%s240 + $0x158] sm:$0xff]
        %v1028 = vld [vmem:[%s240 + $0x160] sm:$0xff]
        %v1029 = vld [vmem:[%s240 + $0x168] sm:$0xff]
        %v1030 = vld [vmem:[%s240 + $0x170] sm:$0xff]
        %v1031 = vld [vmem:[%s240 + $0x178] sm:$0xff]
        %v1032 = vld [vmem:[%s240 + $0x180] sm:$0xff]
        %v1033 = vld [vmem:[%s240 + $0x188] sm:$0xff]
        %v1034 = vld [vmem:[%s240 + $0x190] sm:$0xff]
        %v1035 = vld [vmem:[%s240 + $0x198] sm:$0xff]
        %v1036 = vld [vmem:[%s240 + $0x1a0] sm:$0xff]
        %v1037 = vld [vmem:[%s240 + $0x1a8] sm:$0xff]
        %v1038 = vld [vmem:[%s240 + $0x1b0] sm:$0xff]
        %v1039 = vld [vmem:[%s240 + $0x1b8] sm:$0xff]
        %v1040 = vld [vmem:[%s240 + $0x1c0] sm:$0xff]
        %v1041 = vld [vmem:[%s240 + $0x1c8] sm:$0xff]
        %v1042 = vld [vmem:[%s240 + $0x1d0] sm:$0xff]
        %v1043 = vld [vmem:[%s240 + $0x1d8] sm:$0xff]
        %v1044 = vld [vmem:[%s240 + $0x1e0] sm:$0xff]
        %v1045 = vld [vmem:[%s240 + $0x1e8] sm:$0xff]
        %v1046 = vld [vmem:[%s240 + $0x1f0] sm:$0xff]
        %v1047 = vld [vmem:[%s240 + $0x1f8] sm:$0xff]
        %v1048 = vld [vmem:[%s240 + $0x200] sm:$0xff]
        %v1049 = vld [vmem:[%s240 + $0x208] sm:$0xff]
        %v1050 = vld [vmem:[%s240 + $0x210] sm:$0xff]
        %v1051 = vld [vmem:[%s240 + $0x218] sm:$0xff]
        %v1052 = vld [vmem:[%s240 + $0x220] sm:$0xff]
        %v1053 = vld [vmem:[%s240 + $0x228] sm:$0xff]
        %v1054 = vld [vmem:[%s240 + $0x230] sm:$0xff]
        %v1055 = vld [vmem:[%s240 + $0x238] sm:$0xff]
        %v1056 = vld [vmem:[%s240 + $0x240] sm:$0xff]
        %v1057 = vld [vmem:[%s240 + $0x248] sm:$0xff]
        %v1058 = vld [vmem:[%s240 + $0x250] sm:$0xff]
        %v1059 = vld [vmem:[%s240 + $0x258] sm:$0xff]
        %v1060 = vld [vmem:[%s240 + $0x260] sm:$0xff]
        %v1061 = vld [vmem:[%s240 + $0x268] sm:$0xff]
        %v1062 = vld [vmem:[%s240 + $0x270] sm:$0xff]
        %v1063 = vld [vmem:[%s240 + $0x278] sm:$0xff]
        %v1064 = vld [vmem:[%s240 + $0x280] sm:$0xff]
        %v1065 = vld [vmem:[%s240 + $0x288] sm:$0xff]
        %v1066 = vld [vmem:[%s240 + $0x290] sm:$0xff]
        %v1067 = vld [vmem:[%s240 + $0x298] sm:$0xff]
        %v1068 = vld [vmem:[%s240 + $0x2a0] sm:$0xff]
        %v1069 = vld [vmem:[%s240 + $0x2a8] sm:$0xff]
        %v1070 = vld [vmem:[%s240 + $0x2b0] sm:$0xff]
        %v1071 = vld [vmem:[%s240 + $0x2b8] sm:$0xff]
        %v1072 = vld [vmem:[%s240 + $0x2c0] sm:$0xff]
        %v1073 = vld [vmem:[%s240 + $0x2c8] sm:$0xff]
        %v1074 = vld [vmem:[%s240 + $0x2d0] sm:$0xff]
        %v1075 = vld [vmem:[%s240 + $0x2d8] sm:$0xff]
        %v1076 = vld [vmem:[%s240 + $0x2e0] sm:$0xff]
        %v1077 = vld [vmem:[%s240 + $0x2e8] sm:$0xff]
        %v1078 = vld [vmem:[%s240 + $0x2f0] sm:$0xff]
        %v1079 = vld [vmem:[%s240 + $0x2f8] sm:$0xff]
        %v1080 = vld [vmem:[%s240 + $0x300] sm:$0xff]
        %v1081 = vld [vmem:[%s240 + $0x308] sm:$0xff]
        %v1082 = vld [vmem:[%s240 + $0x310] sm:$0xff]
        %v1083 = vld [vmem:[%s240 + $0x318] sm:$0xff]
        %v1084 = vld [vmem:[%s240 + $0x320] sm:$0xff]
        %v1085 = vld [vmem:[%s240 + $0x328] sm:$0xff]
        %v1086 = vld [vmem:[%s240 + $0x330] sm:$0xff]
        %v1087 = vld [vmem:[%s240 + $0x338] sm:$0xff]
        %v1088 = vld [vmem:[%s240 + $0x340] sm:$0xff]
        %v1089 = vld [vmem:[%s240 + $0x348] sm:$0xff]
        %v1090 = vld [vmem:[%s240 + $0x350] sm:$0xff]
        %v1091 = vld [vmem:[%s240 + $0x358] sm:$0xff]
        %v1092 = vld [vmem:[%s240 + $0x360] sm:$0xff]
        %v1093 = vld [vmem:[%s240 + $0x368] sm:$0xff]
        %v1094 = vld [vmem:[%s240 + $0x370] sm:$0xff]
        %v1095 = vld [vmem:[%s240 + $0x378] sm:$0xff]
        %v1096 = vld [vmem:[%s240 + $0x380] sm:$0xff]
        %v1097 = vld [vmem:[%s240 + $0x388] sm:$0xff]
        %v1098 = vld [vmem:[%s240 + $0x390] sm:$0xff]
        %v1099 = vld [vmem:[%s240 + $0x398] sm:$0xff]
        %v1100 = vld [vmem:[%s240 + $0x3a0] sm:$0xff]
        %v1101 = vld [vmem:[%s240 + $0x3a8] sm:$0xff]
        %v1102 = vld [vmem:[%s240 + $0x3b0] sm:$0xff]
        %v1103 = vld [vmem:[%s240 + $0x3b8] sm:$0xff]
        %v1104 = vld [vmem:[%s240 + $0x3c0] sm:$0xff]
        %v1105 = vld [vmem:[%s240 + $0x3c8] sm:$0xff]
        %v1106 = vld [vmem:[%s240 + $0x3d0] sm:$0xff]
        %v1107 = vld [vmem:[%s240 + $0x3d8] sm:$0xff]
        %v1108 = vld [vmem:[%s240 + $0x3e0] sm:$0xff]
        %v1109 = vld [vmem:[%s240 + $0x3e8] sm:$0xff]
        %v1110 = vld [vmem:[%s240 + $0x3f0] sm:$0xff]
        %v1111 = vld [vmem:[%s240 + $0x3f8] sm:$0xff]
        %v1112 = vld [vmem:[%s300] sm:$0xff]
        %v1113 = vld [vmem:[%s300 + $0x8] sm:$0xff]
        %v1114 = vld [vmem:[%s300 + $0x10] sm:$0xff]
        %v1115 = vld [vmem:[%s300 + $0x18] sm:$0xff]
        %v1116 = vld [vmem:[%s300 + $0x20] sm:$0xff]
        %v1117 = vld [vmem:[%s300 + $0x28] sm:$0xff]
        %v1118 = vld [vmem:[%s300 + $0x30] sm:$0xff]
        %v1119 = vld [vmem:[%s300 + $0x38] sm:$0xff]
        %v1120 = vld [vmem:[%s300 + $0x40] sm:$0xff]
        %v1121 = vld [vmem:[%s300 + $0x48] sm:$0xff]
        %v1122 = vld [vmem:[%s300 + $0x50] sm:$0xff]
        %v1123 = vld [vmem:[%s300 + $0x58] sm:$0xff]
        %v1124 = vld [vmem:[%s300 + $0x60] sm:$0xff]
        %v1125 = vld [vmem:[%s300 + $0x68] sm:$0xff]
        %v1126 = vld [vmem:[%s300 + $0x70] sm:$0xff]
        %v1127 = vld [vmem:[%s300 + $0x78] sm:$0xff]
        %v1128 = vld [vmem:[#allocation2] sm:$0xff]
        %v1129 = vld [vmem:[#allocation2 + $0x8] sm:$0xff]
        %v1130 = vld [vmem:[#allocation2 + $0x10] sm:$0xff]
        %v1131 = vld [vmem:[#allocation2 + $0x18] sm:$0xff]
        %v1132 = vld [vmem:[#allocation2 + $0x20] sm:$0xff]
        %v1133 = vld [vmem:[#allocation2 + $0x28] sm:$0xff]
        %v1134 = vld [vmem:[#allocation2 + $0x30] sm:$0xff]
        %v1135 = vld [vmem:[#allocation2 + $0x38] sm:$0xff]
        %v1136 = vld [vmem:[#allocation2 + $0x40] sm:$0xff]
        %v1137 = vld [vmem:[#allocation2 + $0x48] sm:$0xff]
        %v1138 = vld [vmem:[#allocation2 + $0x50] sm:$0xff]
        %v1139 = vld [vmem:[#allocation2 + $0x58] sm:$0xff]
        %v1140 = vld [vmem:[#allocation2 + $0x60] sm:$0xff]
        %v1141 = vld [vmem:[#allocation2 + $0x68] sm:$0xff]
        %v1142 = vld [vmem:[#allocation2 + $0x70] sm:$0xff]
        %v1143 = vld [vmem:[#allocation2 + $0x78] sm:$0xff]
        %v1144 = vlaneseq
        %v1145 = vshrl.u32 %v1144, 7
        %v1146 = vsub.s32 0, %v1145
        %v1147 = vrot.slane %v1128, %v1146
        %1149 = vbcast.lane.b32.xlu0 %v1147, 256
        %v1150 = vpop.permute.xlu0 %1149
        %v1151 = vlaneseq
        %v1152 = vshrl.u32 %v1151, 7
        %v1153 = vsub.s32 1, %v1152
        %v1154 = vrot.slane %v1128, %v1153
        %1156 = vbcast.lane.b32.xlu0 %v1154, 256
        %v1157 = vpop.permute.xlu0 %1156
        %v1158 = vlaneseq
        %v1159 = vshrl.u32 %v1158, 7
        %v1160 = vsub.s32 2, %v1159
        %v1161 = vrot.slane %v1128, %v1160
        %1163 = vbcast.lane.b32.xlu0 %v1161, 256
        %v1164 = vpop.permute.xlu0 %1163
        %v1165 = vlaneseq
        %v1166 = vshrl.u32 %v1165, 7
        %v1167 = vsub.s32 3, %v1166
        %v1168 = vrot.slane %v1128, %v1167
        %1170 = vbcast.lane.b32.xlu0 %v1168, 256
        %v1171 = vpop.permute.xlu0 %1170
        %v1172 = vlaneseq
        %v1173 = vshrl.u32 %v1172, 7
        %v1174 = vsub.s32 4, %v1173
        %v1175 = vrot.slane %v1128, %v1174
        %1177 = vbcast.lane.b32.xlu0 %v1175, 256
        %v1178 = vpop.permute.xlu0 %1177
        %v1179 = vlaneseq
        %v1180 = vshrl.u32 %v1179, 7
        %v1181 = vsub.s32 5, %v1180
        %v1182 = vrot.slane %v1128, %v1181
        %1184 = vbcast.lane.b32.xlu0 %v1182, 256
        %v1185 = vpop.permute.xlu0 %1184
        %v1186 = vlaneseq
        %v1187 = vshrl.u32 %v1186, 7
        %v1188 = vsub.s32 6, %v1187
        %v1189 = vrot.slane %v1128, %v1188
        %1191 = vbcast.lane.b32.xlu0 %v1189, 256
        %v1192 = vpop.permute.xlu0 %1191
        %v1193 = vlaneseq
        %v1194 = vshrl.u32 %v1193, 7
        %v1195 = vsub.s32 7, %v1194
        %v1196 = vrot.slane %v1128, %v1195
        %1198 = vbcast.lane.b32.xlu0 %v1196, 256
        %v1199 = vpop.permute.xlu0 %1198
        %v1200 = vlaneseq
        %v1201 = vshrl.u32 %v1200, 7
        %v1202 = vsub.s32 0, %v1201
        %v1203 = vrot.slane %v1129, %v1202
        %1205 = vbcast.lane.b32.xlu0 %v1203, 256
        %v1206 = vpop.permute.xlu0 %1205
        %v1207 = vlaneseq
        %v1208 = vshrl.u32 %v1207, 7
        %v1209 = vsub.s32 1, %v1208
        %v1210 = vrot.slane %v1129, %v1209
        %1212 = vbcast.lane.b32.xlu0 %v1210, 256
        %v1213 = vpop.permute.xlu0 %1212
        %v1214 = vlaneseq
        %v1215 = vshrl.u32 %v1214, 7
        %v1216 = vsub.s32 2, %v1215
        %v1217 = vrot.slane %v1129, %v1216
        %1219 = vbcast.lane.b32.xlu0 %v1217, 256
        %v1220 = vpop.permute.xlu0 %1219
        %v1221 = vlaneseq
        %v1222 = vshrl.u32 %v1221, 7
        %v1223 = vsub.s32 3, %v1222
        %v1224 = vrot.slane %v1129, %v1223
        %1226 = vbcast.lane.b32.xlu0 %v1224, 256
        %v1227 = vpop.permute.xlu0 %1226
        %v1228 = vlaneseq
        %v1229 = vshrl.u32 %v1228, 7
        %v1230 = vsub.s32 4, %v1229
        %v1231 = vrot.slane %v1129, %v1230
        %1233 = vbcast.lane.b32.xlu0 %v1231, 256
        %v1234 = vpop.permute.xlu0 %1233
        %v1235 = vlaneseq
        %v1236 = vshrl.u32 %v1235, 7
        %v1237 = vsub.s32 5, %v1236
        %v1238 = vrot.slane %v1129, %v1237
        %1240 = vbcast.lane.b32.xlu0 %v1238, 256
        %v1241 = vpop.permute.xlu0 %1240
        %v1242 = vlaneseq
        %v1243 = vshrl.u32 %v1242, 7
        %v1244 = vsub.s32 6, %v1243
        %v1245 = vrot.slane %v1129, %v1244
        %1247 = vbcast.lane.b32.xlu0 %v1245, 256
        %v1248 = vpop.permute.xlu0 %1247
        %v1249 = vlaneseq
        %v1250 = vshrl.u32 %v1249, 7
        %v1251 = vsub.s32 7, %v1250
        %v1252 = vrot.slane %v1129, %v1251
        %1254 = vbcast.lane.b32.xlu0 %v1252, 256
        %v1255 = vpop.permute.xlu0 %1254
        %v1256 = vlaneseq
        %v1257 = vshrl.u32 %v1256, 7
        %v1258 = vsub.s32 0, %v1257
        %v1259 = vrot.slane %v1130, %v1258
        %1261 = vbcast.lane.b32.xlu0 %v1259, 256
        %v1262 = vpop.permute.xlu0 %1261
        %v1263 = vlaneseq
        %v1264 = vshrl.u32 %v1263, 7
        %v1265 = vsub.s32 1, %v1264
        %v1266 = vrot.slane %v1130, %v1265
        %1268 = vbcast.lane.b32.xlu0 %v1266, 256
        %v1269 = vpop.permute.xlu0 %1268
        %v1270 = vlaneseq
        %v1271 = vshrl.u32 %v1270, 7
        %v1272 = vsub.s32 2, %v1271
        %v1273 = vrot.slane %v1130, %v1272
        %1275 = vbcast.lane.b32.xlu0 %v1273, 256
        %v1276 = vpop.permute.xlu0 %1275
        %v1277 = vlaneseq
        %v1278 = vshrl.u32 %v1277, 7
        %v1279 = vsub.s32 3, %v1278
        %v1280 = vrot.slane %v1130, %v1279
        %1282 = vbcast.lane.b32.xlu0 %v1280, 256
        %v1283 = vpop.permute.xlu0 %1282
        %v1284 = vlaneseq
        %v1285 = vshrl.u32 %v1284, 7
        %v1286 = vsub.s32 4, %v1285
        %v1287 = vrot.slane %v1130, %v1286
        %1289 = vbcast.lane.b32.xlu0 %v1287, 256
        %v1290 = vpop.permute.xlu0 %1289
        %v1291 = vlaneseq
        %v1292 = vshrl.u32 %v1291, 7
        %v1293 = vsub.s32 5, %v1292
        %v1294 = vrot.slane %v1130, %v1293
        %1296 = vbcast.lane.b32.xlu0 %v1294, 256
        %v1297 = vpop.permute.xlu0 %1296
        %v1298 = vlaneseq
        %v1299 = vshrl.u32 %v1298, 7
        %v1300 = vsub.s32 6, %v1299
        %v1301 = vrot.slane %v1130, %v1300
        %1303 = vbcast.lane.b32.xlu0 %v1301, 256
        %v1304 = vpop.permute.xlu0 %1303
        %v1305 = vlaneseq
        %v1306 = vshrl.u32 %v1305, 7
        %v1307 = vsub.s32 7, %v1306
        %v1308 = vrot.slane %v1130, %v1307
        %1310 = vbcast.lane.b32.xlu0 %v1308, 256
        %v1311 = vpop.permute.xlu0 %1310
        %v1312 = vlaneseq
        %v1313 = vshrl.u32 %v1312, 7
        %v1314 = vsub.s32 0, %v1313
        %v1315 = vrot.slane %v1131, %v1314
        %1317 = vbcast.lane.b32.xlu0 %v1315, 256
        %v1318 = vpop.permute.xlu0 %1317
        %v1319 = vlaneseq
        %v1320 = vshrl.u32 %v1319, 7
        %v1321 = vsub.s32 1, %v1320
        %v1322 = vrot.slane %v1131, %v1321
        %1324 = vbcast.lane.b32.xlu0 %v1322, 256
        %v1325 = vpop.permute.xlu0 %1324
        %v1326 = vlaneseq
        %v1327 = vshrl.u32 %v1326, 7
        %v1328 = vsub.s32 2, %v1327
        %v1329 = vrot.slane %v1131, %v1328
        %1331 = vbcast.lane.b32.xlu0 %v1329, 256
        %v1332 = vpop.permute.xlu0 %1331
        %v1333 = vlaneseq
        %v1334 = vshrl.u32 %v1333, 7
        %v1335 = vsub.s32 3, %v1334
        %v1336 = vrot.slane %v1131, %v1335
        %1338 = vbcast.lane.b32.xlu0 %v1336, 256
        %v1339 = vpop.permute.xlu0 %1338
        %v1340 = vlaneseq
        %v1341 = vshrl.u32 %v1340, 7
        %v1342 = vsub.s32 4, %v1341
        %v1343 = vrot.slane %v1131, %v1342
        %1345 = vbcast.lane.b32.xlu0 %v1343, 256
        %v1346 = vpop.permute.xlu0 %1345
        %v1347 = vlaneseq
        %v1348 = vshrl.u32 %v1347, 7
        %v1349 = vsub.s32 5, %v1348
        %v1350 = vrot.slane %v1131, %v1349
        %1352 = vbcast.lane.b32.xlu0 %v1350, 256
        %v1353 = vpop.permute.xlu0 %1352
        %v1354 = vlaneseq
        %v1355 = vshrl.u32 %v1354, 7
        %v1356 = vsub.s32 6, %v1355
        %v1357 = vrot.slane %v1131, %v1356
        %1359 = vbcast.lane.b32.xlu0 %v1357, 256
        %v1360 = vpop.permute.xlu0 %1359
        %v1361 = vlaneseq
        %v1362 = vshrl.u32 %v1361, 7
        %v1363 = vsub.s32 7, %v1362
        %v1364 = vrot.slane %v1131, %v1363
        %1366 = vbcast.lane.b32.xlu0 %v1364, 256
        %v1367 = vpop.permute.xlu0 %1366
        %v1368 = vlaneseq
        %v1369 = vshrl.u32 %v1368, 7
        %v1370 = vsub.s32 0, %v1369
        %v1371 = vrot.slane %v1132, %v1370
        %1373 = vbcast.lane.b32.xlu0 %v1371, 256
        %v1374 = vpop.permute.xlu0 %1373
        %v1375 = vlaneseq
        %v1376 = vshrl.u32 %v1375, 7
        %v1377 = vsub.s32 1, %v1376
        %v1378 = vrot.slane %v1132, %v1377
        %1380 = vbcast.lane.b32.xlu0 %v1378, 256
        %v1381 = vpop.permute.xlu0 %1380
        %v1382 = vlaneseq
        %v1383 = vshrl.u32 %v1382, 7
        %v1384 = vsub.s32 2, %v1383
        %v1385 = vrot.slane %v1132, %v1384
        %1387 = vbcast.lane.b32.xlu0 %v1385, 256
        %v1388 = vpop.permute.xlu0 %1387
        %v1389 = vlaneseq
        %v1390 = vshrl.u32 %v1389, 7
        %v1391 = vsub.s32 3, %v1390
        %v1392 = vrot.slane %v1132, %v1391
        %1394 = vbcast.lane.b32.xlu0 %v1392, 256
        %v1395 = vpop.permute.xlu0 %1394
        %v1396 = vlaneseq
        %v1397 = vshrl.u32 %v1396, 7
        %v1398 = vsub.s32 4, %v1397
        %v1399 = vrot.slane %v1132, %v1398
        %1401 = vbcast.lane.b32.xlu0 %v1399, 256
        %v1402 = vpop.permute.xlu0 %1401
        %v1403 = vlaneseq
        %v1404 = vshrl.u32 %v1403, 7
        %v1405 = vsub.s32 5, %v1404
        %v1406 = vrot.slane %v1132, %v1405
        %1408 = vbcast.lane.b32.xlu0 %v1406, 256
        %v1409 = vpop.permute.xlu0 %1408
        %v1410 = vlaneseq
        %v1411 = vshrl.u32 %v1410, 7
        %v1412 = vsub.s32 6, %v1411
        %v1413 = vrot.slane %v1132, %v1412
        %1415 = vbcast.lane.b32.xlu0 %v1413, 256
        %v1416 = vpop.permute.xlu0 %1415
        %v1417 = vlaneseq
        %v1418 = vshrl.u32 %v1417, 7
        %v1419 = vsub.s32 7, %v1418
        %v1420 = vrot.slane %v1132, %v1419
        %1422 = vbcast.lane.b32.xlu0 %v1420, 256
        %v1423 = vpop.permute.xlu0 %1422
        %v1424 = vlaneseq
        %v1425 = vshrl.u32 %v1424, 7
        %v1426 = vsub.s32 0, %v1425
        %v1427 = vrot.slane %v1133, %v1426
        %1429 = vbcast.lane.b32.xlu0 %v1427, 256
        %v1430 = vpop.permute.xlu0 %1429
        %v1431 = vlaneseq
        %v1432 = vshrl.u32 %v1431, 7
        %v1433 = vsub.s32 1, %v1432
        %v1434 = vrot.slane %v1133, %v1433
        %1436 = vbcast.lane.b32.xlu0 %v1434, 256
        %v1437 = vpop.permute.xlu0 %1436
        %v1438 = vlaneseq
        %v1439 = vshrl.u32 %v1438, 7
        %v1440 = vsub.s32 2, %v1439
        %v1441 = vrot.slane %v1133, %v1440
        %1443 = vbcast.lane.b32.xlu0 %v1441, 256
        %v1444 = vpop.permute.xlu0 %1443
        %v1445 = vlaneseq
        %v1446 = vshrl.u32 %v1445, 7
        %v1447 = vsub.s32 3, %v1446
        %v1448 = vrot.slane %v1133, %v1447
        %1450 = vbcast.lane.b32.xlu0 %v1448, 256
        %v1451 = vpop.permute.xlu0 %1450
        %v1452 = vlaneseq
        %v1453 = vshrl.u32 %v1452, 7
        %v1454 = vsub.s32 4, %v1453
        %v1455 = vrot.slane %v1133, %v1454
        %1457 = vbcast.lane.b32.xlu0 %v1455, 256
        %v1458 = vpop.permute.xlu0 %1457
        %v1459 = vlaneseq
        %v1460 = vshrl.u32 %v1459, 7
        %v1461 = vsub.s32 5, %v1460
        %v1462 = vrot.slane %v1133, %v1461
        %1464 = vbcast.lane.b32.xlu0 %v1462, 256
        %v1465 = vpop.permute.xlu0 %1464
        %v1466 = vlaneseq
        %v1467 = vshrl.u32 %v1466, 7
        %v1468 = vsub.s32 6, %v1467
        %v1469 = vrot.slane %v1133, %v1468
        %1471 = vbcast.lane.b32.xlu0 %v1469, 256
        %v1472 = vpop.permute.xlu0 %1471
        %v1473 = vlaneseq
        %v1474 = vshrl.u32 %v1473, 7
        %v1475 = vsub.s32 7, %v1474
        %v1476 = vrot.slane %v1133, %v1475
        %1478 = vbcast.lane.b32.xlu0 %v1476, 256
        %v1479 = vpop.permute.xlu0 %1478
        %v1480 = vlaneseq
        %v1481 = vshrl.u32 %v1480, 7
        %v1482 = vsub.s32 0, %v1481
        %v1483 = vrot.slane %v1134, %v1482
        %1485 = vbcast.lane.b32.xlu0 %v1483, 256
        %v1486 = vpop.permute.xlu0 %1485
        %v1487 = vlaneseq
        %v1488 = vshrl.u32 %v1487, 7
        %v1489 = vsub.s32 1, %v1488
        %v1490 = vrot.slane %v1134, %v1489
        %1492 = vbcast.lane.b32.xlu0 %v1490, 256
        %v1493 = vpop.permute.xlu0 %1492
        %v1494 = vlaneseq
        %v1495 = vshrl.u32 %v1494, 7
        %v1496 = vsub.s32 2, %v1495
        %v1497 = vrot.slane %v1134, %v1496
        %1499 = vbcast.lane.b32.xlu0 %v1497, 256
        %v1500 = vpop.permute.xlu0 %1499
        %v1501 = vlaneseq
        %v1502 = vshrl.u32 %v1501, 7
        %v1503 = vsub.s32 3, %v1502
        %v1504 = vrot.slane %v1134, %v1503
        %1506 = vbcast.lane.b32.xlu0 %v1504, 256
        %v1507 = vpop.permute.xlu0 %1506
        %v1508 = vlaneseq
        %v1509 = vshrl.u32 %v1508, 7
        %v1510 = vsub.s32 4, %v1509
        %v1511 = vrot.slane %v1134, %v1510
        %1513 = vbcast.lane.b32.xlu0 %v1511, 256
        %v1514 = vpop.permute.xlu0 %1513
        %v1515 = vlaneseq
        %v1516 = vshrl.u32 %v1515, 7
        %v1517 = vsub.s32 5, %v1516
        %v1518 = vrot.slane %v1134, %v1517
        %1520 = vbcast.lane.b32.xlu0 %v1518, 256
        %v1521 = vpop.permute.xlu0 %1520
        %v1522 = vlaneseq
        %v1523 = vshrl.u32 %v1522, 7
        %v1524 = vsub.s32 6, %v1523
        %v1525 = vrot.slane %v1134, %v1524
        %1527 = vbcast.lane.b32.xlu0 %v1525, 256
        %v1528 = vpop.permute.xlu0 %1527
        %v1529 = vlaneseq
        %v1530 = vshrl.u32 %v1529, 7
        %v1531 = vsub.s32 7, %v1530
        %v1532 = vrot.slane %v1134, %v1531
        %1534 = vbcast.lane.b32.xlu0 %v1532, 256
        %v1535 = vpop.permute.xlu0 %1534
        %v1536 = vlaneseq
        %v1537 = vshrl.u32 %v1536, 7
        %v1538 = vsub.s32 0, %v1537
        %v1539 = vrot.slane %v1135, %v1538
        %1541 = vbcast.lane.b32.xlu0 %v1539, 256
        %v1542 = vpop.permute.xlu0 %1541
        %v1543 = vlaneseq
        %v1544 = vshrl.u32 %v1543, 7
        %v1545 = vsub.s32 1, %v1544
        %v1546 = vrot.slane %v1135, %v1545
        %1548 = vbcast.lane.b32.xlu0 %v1546, 256
        %v1549 = vpop.permute.xlu0 %1548
        %v1550 = vlaneseq
        %v1551 = vshrl.u32 %v1550, 7
        %v1552 = vsub.s32 2, %v1551
        %v1553 = vrot.slane %v1135, %v1552
        %1555 = vbcast.lane.b32.xlu0 %v1553, 256
        %v1556 = vpop.permute.xlu0 %1555
        %v1557 = vlaneseq
        %v1558 = vshrl.u32 %v1557, 7
        %v1559 = vsub.s32 3, %v1558
        %v1560 = vrot.slane %v1135, %v1559
        %1562 = vbcast.lane.b32.xlu0 %v1560, 256
        %v1563 = vpop.permute.xlu0 %1562
        %v1564 = vlaneseq
        %v1565 = vshrl.u32 %v1564, 7
        %v1566 = vsub.s32 4, %v1565
        %v1567 = vrot.slane %v1135, %v1566
        %1569 = vbcast.lane.b32.xlu0 %v1567, 256
        %v1570 = vpop.permute.xlu0 %1569
        %v1571 = vlaneseq
        %v1572 = vshrl.u32 %v1571, 7
        %v1573 = vsub.s32 5, %v1572
        %v1574 = vrot.slane %v1135, %v1573
        %1576 = vbcast.lane.b32.xlu0 %v1574, 256
        %v1577 = vpop.permute.xlu0 %1576
        %v1578 = vlaneseq
        %v1579 = vshrl.u32 %v1578, 7
        %v1580 = vsub.s32 6, %v1579
        %v1581 = vrot.slane %v1135, %v1580
        %1583 = vbcast.lane.b32.xlu0 %v1581, 256
        %v1584 = vpop.permute.xlu0 %1583
        %v1585 = vlaneseq
        %v1586 = vshrl.u32 %v1585, 7
        %v1587 = vsub.s32 7, %v1586
        %v1588 = vrot.slane %v1135, %v1587
        %1590 = vbcast.lane.b32.xlu0 %v1588, 256
        %v1591 = vpop.permute.xlu0 %1590
        %v1592 = vlaneseq
        %v1593 = vshrl.u32 %v1592, 7
        %v1594 = vsub.s32 0, %v1593
        %v1595 = vrot.slane %v1136, %v1594
        %1597 = vbcast.lane.b32.xlu0 %v1595, 256
        %v1598 = vpop.permute.xlu0 %1597
        %v1599 = vlaneseq
        %v1600 = vshrl.u32 %v1599, 7
        %v1601 = vsub.s32 1, %v1600
        %v1602 = vrot.slane %v1136, %v1601
        %1604 = vbcast.lane.b32.xlu0 %v1602, 256
        %v1605 = vpop.permute.xlu0 %1604
        %v1606 = vlaneseq
        %v1607 = vshrl.u32 %v1606, 7
        %v1608 = vsub.s32 2, %v1607
        %v1609 = vrot.slane %v1136, %v1608
        %1611 = vbcast.lane.b32.xlu0 %v1609, 256
        %v1612 = vpop.permute.xlu0 %1611
        %v1613 = vlaneseq
        %v1614 = vshrl.u32 %v1613, 7
        %v1615 = vsub.s32 3, %v1614
        %v1616 = vrot.slane %v1136, %v1615
        %1618 = vbcast.lane.b32.xlu0 %v1616, 256
        %v1619 = vpop.permute.xlu0 %1618
        %v1620 = vlaneseq
        %v1621 = vshrl.u32 %v1620, 7
        %v1622 = vsub.s32 4, %v1621
        %v1623 = vrot.slane %v1136, %v1622
        %1625 = vbcast.lane.b32.xlu0 %v1623, 256
        %v1626 = vpop.permute.xlu0 %1625
        %v1627 = vlaneseq
        %v1628 = vshrl.u32 %v1627, 7
        %v1629 = vsub.s32 5, %v1628
        %v1630 = vrot.slane %v1136, %v1629
        %1632 = vbcast.lane.b32.xlu0 %v1630, 256
        %v1633 = vpop.permute.xlu0 %1632
        %v1634 = vlaneseq
        %v1635 = vshrl.u32 %v1634, 7
        %v1636 = vsub.s32 6, %v1635
        %v1637 = vrot.slane %v1136, %v1636
        %1639 = vbcast.lane.b32.xlu0 %v1637, 256
        %v1640 = vpop.permute.xlu0 %1639
        %v1641 = vlaneseq
        %v1642 = vshrl.u32 %v1641, 7
        %v1643 = vsub.s32 7, %v1642
        %v1644 = vrot.slane %v1136, %v1643
        %1646 = vbcast.lane.b32.xlu0 %v1644, 256
        %v1647 = vpop.permute.xlu0 %1646
        %v1648 = vlaneseq
        %v1649 = vshrl.u32 %v1648, 7
        %v1650 = vsub.s32 0, %v1649
        %v1651 = vrot.slane %v1137, %v1650
        %1653 = vbcast.lane.b32.xlu0 %v1651, 256
        %v1654 = vpop.permute.xlu0 %1653
        %v1655 = vlaneseq
        %v1656 = vshrl.u32 %v1655, 7
        %v1657 = vsub.s32 1, %v1656
        %v1658 = vrot.slane %v1137, %v1657
        %1660 = vbcast.lane.b32.xlu0 %v1658, 256
        %v1661 = vpop.permute.xlu0 %1660
        %v1662 = vlaneseq
        %v1663 = vshrl.u32 %v1662, 7
        %v1664 = vsub.s32 2, %v1663
        %v1665 = vrot.slane %v1137, %v1664
        %1667 = vbcast.lane.b32.xlu0 %v1665, 256
        %v1668 = vpop.permute.xlu0 %1667
        %v1669 = vlaneseq
        %v1670 = vshrl.u32 %v1669, 7
        %v1671 = vsub.s32 3, %v1670
        %v1672 = vrot.slane %v1137, %v1671
        %1674 = vbcast.lane.b32.xlu0 %v1672, 256
        %v1675 = vpop.permute.xlu0 %1674
        %v1676 = vlaneseq
        %v1677 = vshrl.u32 %v1676, 7
        %v1678 = vsub.s32 4, %v1677
        %v1679 = vrot.slane %v1137, %v1678
        %1681 = vbcast.lane.b32.xlu0 %v1679, 256
        %v1682 = vpop.permute.xlu0 %1681
        %v1683 = vlaneseq
        %v1684 = vshrl.u32 %v1683, 7
        %v1685 = vsub.s32 5, %v1684
        %v1686 = vrot.slane %v1137, %v1685
        %1688 = vbcast.lane.b32.xlu0 %v1686, 256
        %v1689 = vpop.permute.xlu0 %1688
        %v1690 = vlaneseq
        %v1691 = vshrl.u32 %v1690, 7
        %v1692 = vsub.s32 6, %v1691
        %v1693 = vrot.slane %v1137, %v1692
        %1695 = vbcast.lane.b32.xlu0 %v1693, 256
        %v1696 = vpop.permute.xlu0 %1695
        %v1697 = vlaneseq
        %v1698 = vshrl.u32 %v1697, 7
        %v1699 = vsub.s32 7, %v1698
        %v1700 = vrot.slane %v1137, %v1699
        %1702 = vbcast.lane.b32.xlu0 %v1700, 256
        %v1703 = vpop.permute.xlu0 %1702
        %v1704 = vlaneseq
        %v1705 = vshrl.u32 %v1704, 7
        %v1706 = vsub.s32 0, %v1705
        %v1707 = vrot.slane %v1138, %v1706
        %1709 = vbcast.lane.b32.xlu0 %v1707, 256
        %v1710 = vpop.permute.xlu0 %1709
        %v1711 = vlaneseq
        %v1712 = vshrl.u32 %v1711, 7
        %v1713 = vsub.s32 1, %v1712
        %v1714 = vrot.slane %v1138, %v1713
        %1716 = vbcast.lane.b32.xlu0 %v1714, 256
        %v1717 = vpop.permute.xlu0 %1716
        %v1718 = vlaneseq
        %v1719 = vshrl.u32 %v1718, 7
        %v1720 = vsub.s32 2, %v1719
        %v1721 = vrot.slane %v1138, %v1720
        %1723 = vbcast.lane.b32.xlu0 %v1721, 256
        %v1724 = vpop.permute.xlu0 %1723
        %v1725 = vlaneseq
        %v1726 = vshrl.u32 %v1725, 7
        %v1727 = vsub.s32 3, %v1726
        %v1728 = vrot.slane %v1138, %v1727
        %1730 = vbcast.lane.b32.xlu0 %v1728, 256
        %v1731 = vpop.permute.xlu0 %1730
        %v1732 = vlaneseq
        %v1733 = vshrl.u32 %v1732, 7
        %v1734 = vsub.s32 4, %v1733
        %v1735 = vrot.slane %v1138, %v1734
        %1737 = vbcast.lane.b32.xlu0 %v1735, 256
        %v1738 = vpop.permute.xlu0 %1737
        %v1739 = vlaneseq
        %v1740 = vshrl.u32 %v1739, 7
        %v1741 = vsub.s32 5, %v1740
        %v1742 = vrot.slane %v1138, %v1741
        %1744 = vbcast.lane.b32.xlu0 %v1742, 256
        %v1745 = vpop.permute.xlu0 %1744
        %v1746 = vlaneseq
        %v1747 = vshrl.u32 %v1746, 7
        %v1748 = vsub.s32 6, %v1747
        %v1749 = vrot.slane %v1138, %v1748
        %1751 = vbcast.lane.b32.xlu0 %v1749, 256
        %v1752 = vpop.permute.xlu0 %1751
        %v1753 = vlaneseq
        %v1754 = vshrl.u32 %v1753, 7
        %v1755 = vsub.s32 7, %v1754
        %v1756 = vrot.slane %v1138, %v1755
        %1758 = vbcast.lane.b32.xlu0 %v1756, 256
        %v1759 = vpop.permute.xlu0 %1758
        %v1760 = vlaneseq
        %v1761 = vshrl.u32 %v1760, 7
        %v1762 = vsub.s32 0, %v1761
        %v1763 = vrot.slane %v1139, %v1762
        %1765 = vbcast.lane.b32.xlu0 %v1763, 256
        %v1766 = vpop.permute.xlu0 %1765
        %v1767 = vlaneseq
        %v1768 = vshrl.u32 %v1767, 7
        %v1769 = vsub.s32 1, %v1768
        %v1770 = vrot.slane %v1139, %v1769
        %1772 = vbcast.lane.b32.xlu0 %v1770, 256
        %v1773 = vpop.permute.xlu0 %1772
        %v1774 = vlaneseq
        %v1775 = vshrl.u32 %v1774, 7
        %v1776 = vsub.s32 2, %v1775
        %v1777 = vrot.slane %v1139, %v1776
        %1779 = vbcast.lane.b32.xlu0 %v1777, 256
        %v1780 = vpop.permute.xlu0 %1779
        %v1781 = vlaneseq
        %v1782 = vshrl.u32 %v1781, 7
        %v1783 = vsub.s32 3, %v1782
        %v1784 = vrot.slane %v1139, %v1783
        %1786 = vbcast.lane.b32.xlu0 %v1784, 256
        %v1787 = vpop.permute.xlu0 %1786
        %v1788 = vlaneseq
        %v1789 = vshrl.u32 %v1788, 7
        %v1790 = vsub.s32 4, %v1789
        %v1791 = vrot.slane %v1139, %v1790
        %1793 = vbcast.lane.b32.xlu0 %v1791, 256
        %v1794 = vpop.permute.xlu0 %1793
        %v1795 = vlaneseq
        %v1796 = vshrl.u32 %v1795, 7
        %v1797 = vsub.s32 5, %v1796
        %v1798 = vrot.slane %v1139, %v1797
        %1800 = vbcast.lane.b32.xlu0 %v1798, 256
        %v1801 = vpop.permute.xlu0 %1800
        %v1802 = vlaneseq
        %v1803 = vshrl.u32 %v1802, 7
        %v1804 = vsub.s32 6, %v1803
        %v1805 = vrot.slane %v1139, %v1804
        %1807 = vbcast.lane.b32.xlu0 %v1805, 256
        %v1808 = vpop.permute.xlu0 %1807
        %v1809 = vlaneseq
        %v1810 = vshrl.u32 %v1809, 7
        %v1811 = vsub.s32 7, %v1810
        %v1812 = vrot.slane %v1139, %v1811
        %1814 = vbcast.lane.b32.xlu0 %v1812, 256
        %v1815 = vpop.permute.xlu0 %1814
        %v1816 = vlaneseq
        %v1817 = vshrl.u32 %v1816, 7
        %v1818 = vsub.s32 0, %v1817
        %v1819 = vrot.slane %v1140, %v1818
        %1821 = vbcast.lane.b32.xlu0 %v1819, 256
        %v1822 = vpop.permute.xlu0 %1821
        %v1823 = vlaneseq
        %v1824 = vshrl.u32 %v1823, 7
        %v1825 = vsub.s32 1, %v1824
        %v1826 = vrot.slane %v1140, %v1825
        %1828 = vbcast.lane.b32.xlu0 %v1826, 256
        %v1829 = vpop.permute.xlu0 %1828
        %v1830 = vlaneseq
        %v1831 = vshrl.u32 %v1830, 7
        %v1832 = vsub.s32 2, %v1831
        %v1833 = vrot.slane %v1140, %v1832
        %1835 = vbcast.lane.b32.xlu0 %v1833, 256
        %v1836 = vpop.permute.xlu0 %1835
        %v1837 = vlaneseq
        %v1838 = vshrl.u32 %v1837, 7
        %v1839 = vsub.s32 3, %v1838
        %v1840 = vrot.slane %v1140, %v1839
        %1842 = vbcast.lane.b32.xlu0 %v1840, 256
        %v1843 = vpop.permute.xlu0 %1842
        %v1844 = vlaneseq
        %v1845 = vshrl.u32 %v1844, 7
        %v1846 = vsub.s32 4, %v1845
        %v1847 = vrot.slane %v1140, %v1846
        %1849 = vbcast.lane.b32.xlu0 %v1847, 256
        %v1850 = vpop.permute.xlu0 %1849
        %v1851 = vlaneseq
        %v1852 = vshrl.u32 %v1851, 7
        %v1853 = vsub.s32 5, %v1852
        %v1854 = vrot.slane %v1140, %v1853
        %1856 = vbcast.lane.b32.xlu0 %v1854, 256
        %v1857 = vpop.permute.xlu0 %1856
        %v1858 = vlaneseq
        %v1859 = vshrl.u32 %v1858, 7
        %v1860 = vsub.s32 6, %v1859
        %v1861 = vrot.slane %v1140, %v1860
        %1863 = vbcast.lane.b32.xlu0 %v1861, 256
        %v1864 = vpop.permute.xlu0 %1863
        %v1865 = vlaneseq
        %v1866 = vshrl.u32 %v1865, 7
        %v1867 = vsub.s32 7, %v1866
        %v1868 = vrot.slane %v1140, %v1867
        %1870 = vbcast.lane.b32.xlu0 %v1868, 256
        %v1871 = vpop.permute.xlu0 %1870
        %v1872 = vlaneseq
        %v1873 = vshrl.u32 %v1872, 7
        %v1874 = vsub.s32 0, %v1873
        %v1875 = vrot.slane %v1141, %v1874
        %1877 = vbcast.lane.b32.xlu0 %v1875, 256
        %v1878 = vpop.permute.xlu0 %1877
        %v1879 = vlaneseq
        %v1880 = vshrl.u32 %v1879, 7
        %v1881 = vsub.s32 1, %v1880
        %v1882 = vrot.slane %v1141, %v1881
        %1884 = vbcast.lane.b32.xlu0 %v1882, 256
        %v1885 = vpop.permute.xlu0 %1884
        %v1886 = vlaneseq
        %v1887 = vshrl.u32 %v1886, 7
        %v1888 = vsub.s32 2, %v1887
        %v1889 = vrot.slane %v1141, %v1888
        %1891 = vbcast.lane.b32.xlu0 %v1889, 256
        %v1892 = vpop.permute.xlu0 %1891
        %v1893 = vlaneseq
        %v1894 = vshrl.u32 %v1893, 7
        %v1895 = vsub.s32 3, %v1894
        %v1896 = vrot.slane %v1141, %v1895
        %1898 = vbcast.lane.b32.xlu0 %v1896, 256
        %v1899 = vpop.permute.xlu0 %1898
        %v1900 = vlaneseq
        %v1901 = vshrl.u32 %v1900, 7
        %v1902 = vsub.s32 4, %v1901
        %v1903 = vrot.slane %v1141, %v1902
        %1905 = vbcast.lane.b32.xlu0 %v1903, 256
        %v1906 = vpop.permute.xlu0 %1905
        %v1907 = vlaneseq
        %v1908 = vshrl.u32 %v1907, 7
        %v1909 = vsub.s32 5, %v1908
        %v1910 = vrot.slane %v1141, %v1909
        %1912 = vbcast.lane.b32.xlu0 %v1910, 256
        %v1913 = vpop.permute.xlu0 %1912
        %v1914 = vlaneseq
        %v1915 = vshrl.u32 %v1914, 7
        %v1916 = vsub.s32 6, %v1915
        %v1917 = vrot.slane %v1141, %v1916
        %1919 = vbcast.lane.b32.xlu0 %v1917, 256
        %v1920 = vpop.permute.xlu0 %1919
        %v1921 = vlaneseq
        %v1922 = vshrl.u32 %v1921, 7
        %v1923 = vsub.s32 7, %v1922
        %v1924 = vrot.slane %v1141, %v1923
        %1926 = vbcast.lane.b32.xlu0 %v1924, 256
        %v1927 = vpop.permute.xlu0 %1926
        %v1928 = vlaneseq
        %v1929 = vshrl.u32 %v1928, 7
        %v1930 = vsub.s32 0, %v1929
        %v1931 = vrot.slane %v1142, %v1930
        %1933 = vbcast.lane.b32.xlu0 %v1931, 256
        %v1934 = vpop.permute.xlu0 %1933
        %v1935 = vlaneseq
        %v1936 = vshrl.u32 %v1935, 7
        %v1937 = vsub.s32 1, %v1936
        %v1938 = vrot.slane %v1142, %v1937
        %1940 = vbcast.lane.b32.xlu0 %v1938, 256
        %v1941 = vpop.permute.xlu0 %1940
        %v1942 = vlaneseq
        %v1943 = vshrl.u32 %v1942, 7
        %v1944 = vsub.s32 2, %v1943
        %v1945 = vrot.slane %v1142, %v1944
        %1947 = vbcast.lane.b32.xlu0 %v1945, 256
        %v1948 = vpop.permute.xlu0 %1947
        %v1949 = vlaneseq
        %v1950 = vshrl.u32 %v1949, 7
        %v1951 = vsub.s32 3, %v1950
        %v1952 = vrot.slane %v1142, %v1951
        %1954 = vbcast.lane.b32.xlu0 %v1952, 256
        %v1955 = vpop.permute.xlu0 %1954
        %v1956 = vlaneseq
        %v1957 = vshrl.u32 %v1956, 7
        %v1958 = vsub.s32 4, %v1957
        %v1959 = vrot.slane %v1142, %v1958
        %1961 = vbcast.lane.b32.xlu0 %v1959, 256
        %v1962 = vpop.permute.xlu0 %1961
        %v1963 = vlaneseq
        %v1964 = vshrl.u32 %v1963, 7
        %v1965 = vsub.s32 5, %v1964
        %v1966 = vrot.slane %v1142, %v1965
        %1968 = vbcast.lane.b32.xlu0 %v1966, 256
        %v1969 = vpop.permute.xlu0 %1968
        %v1970 = vlaneseq
        %v1971 = vshrl.u32 %v1970, 7
        %v1972 = vsub.s32 6, %v1971
        %v1973 = vrot.slane %v1142, %v1972
        %1975 = vbcast.lane.b32.xlu0 %v1973, 256
        %v1976 = vpop.permute.xlu0 %1975
        %v1977 = vlaneseq
        %v1978 = vshrl.u32 %v1977, 7
        %v1979 = vsub.s32 7, %v1978
        %v1980 = vrot.slane %v1142, %v1979
        %1982 = vbcast.lane.b32.xlu0 %v1980, 256
        %v1983 = vpop.permute.xlu0 %1982
        %v1984 = vlaneseq
        %v1985 = vshrl.u32 %v1984, 7
        %v1986 = vsub.s32 0, %v1985
        %v1987 = vrot.slane %v1143, %v1986
        %1989 = vbcast.lane.b32.xlu0 %v1987, 256
        %v1990 = vpop.permute.xlu0 %1989
        %v1991 = vlaneseq
        %v1992 = vshrl.u32 %v1991, 7
        %v1993 = vsub.s32 1, %v1992
        %v1994 = vrot.slane %v1143, %v1993
        %1996 = vbcast.lane.b32.xlu0 %v1994, 256
        %v1997 = vpop.permute.xlu0 %1996
        %v1998 = vlaneseq
        %v1999 = vshrl.u32 %v1998, 7
        %v2000 = vsub.s32 2, %v1999
        %v2001 = vrot.slane %v1143, %v2000
        %2003 = vbcast.lane.b32.xlu0 %v2001, 256
        %v2004 = vpop.permute.xlu0 %2003
        %v2005 = vlaneseq
        %v2006 = vshrl.u32 %v2005, 7
        %v2007 = vsub.s32 3, %v2006
        %v2008 = vrot.slane %v1143, %v2007
        %2010 = vbcast.lane.b32.xlu0 %v2008, 256
        %v2011 = vpop.permute.xlu0 %2010
        %v2012 = vlaneseq
        %v2013 = vshrl.u32 %v2012, 7
        %v2014 = vsub.s32 4, %v2013
        %v2015 = vrot.slane %v1143, %v2014
        %2017 = vbcast.lane.b32.xlu0 %v2015, 256
        %v2018 = vpop.permute.xlu0 %2017
        %v2019 = vlaneseq
        %v2020 = vshrl.u32 %v2019, 7
        %v2021 = vsub.s32 5, %v2020
        %v2022 = vrot.slane %v1143, %v2021
        %2024 = vbcast.lane.b32.xlu0 %v2022, 256
        %v2025 = vpop.permute.xlu0 %2024
        %v2026 = vlaneseq
        %v2027 = vshrl.u32 %v2026, 7
        %v2028 = vsub.s32 6, %v2027
        %v2029 = vrot.slane %v1143, %v2028
        %2031 = vbcast.lane.b32.xlu0 %v2029, 256
        %v2032 = vpop.permute.xlu0 %2031
        %v2033 = vlaneseq
        %v2034 = vshrl.u32 %v2033, 7
        %v2035 = vsub.s32 7, %v2034
        %v2036 = vrot.slane %v1143, %v2035
        %2038 = vbcast.lane.b32.xlu0 %v2036, 256
        %v2039 = vpop.permute.xlu0 %2038
        %v2040 = vmul.f32 %v1150, %v984
        %v2041 = vmul.f32 %v1157, %v985
        %v2042 = vmul.f32 %v1164, %v986
        %v2043 = vmul.f32 %v1171, %v987
        %v2044 = vmul.f32 %v1178, %v988
        %v2045 = vmul.f32 %v1185, %v989
        %v2046 = vmul.f32 %v1192, %v990
        %v2047 = vmul.f32 %v1199, %v991
        %v2048 = vmul.f32 %v1206, %v992
        %v2049 = vmul.f32 %v1213, %v993
        %v2050 = vmul.f32 %v1220, %v994
        %v2051 = vmul.f32 %v1227, %v995
        %v2052 = vmul.f32 %v1234, %v996
        %v2053 = vmul.f32 %v1241, %v997
        %v2054 = vmul.f32 %v1248, %v998
        %v2055 = vmul.f32 %v1255, %v999
        %v2056 = vmul.f32 %v1262, %v1000
        %v2057 = vmul.f32 %v1269, %v1001
        %v2058 = vmul.f32 %v1276, %v1002
        %v2059 = vmul.f32 %v1283, %v1003
        %v2060 = vmul.f32 %v1290, %v1004
        %v2061 = vmul.f32 %v1297, %v1005
        %v2062 = vmul.f32 %v1304, %v1006
        %v2063 = vmul.f32 %v1311, %v1007
        %v2064 = vmul.f32 %v1318, %v1008
        %v2065 = vmul.f32 %v1325, %v1009
        %v2066 = vmul.f32 %v1332, %v1010
        %v2067 = vmul.f32 %v1339, %v1011
        %v2068 = vmul.f32 %v1346, %v1012
        %v2069 = vmul.f32 %v1353, %v1013
        %v2070 = vmul.f32 %v1360, %v1014
        %v2071 = vmul.f32 %v1367, %v1015
        %v2072 = vmul.f32 %v1374, %v1016
        %v2073 = vmul.f32 %v1381, %v1017
        %v2074 = vmul.f32 %v1388, %v1018
        %v2075 = vmul.f32 %v1395, %v1019
        %v2076 = vmul.f32 %v1402, %v1020
        %v2077 = vmul.f32 %v1409, %v1021
        %v2078 = vmul.f32 %v1416, %v1022
        %v2079 = vmul.f32 %v1423, %v1023
        %v2080 = vmul.f32 %v1430, %v1024
        %v2081 = vmul.f32 %v1437, %v1025
        %v2082 = vmul.f32 %v1444, %v1026
        %v2083 = vmul.f32 %v1451, %v1027
        %v2084 = vmul.f32 %v1458, %v1028
        %v2085 = vmul.f32 %v1465, %v1029
        %v2086 = vmul.f32 %v1472, %v1030
        %v2087 = vmul.f32 %v1479, %v1031
        %v2088 = vmul.f32 %v1486, %v1032
        %v2089 = vmul.f32 %v1493, %v1033
        %v2090 = vmul.f32 %v1500, %v1034
        %v2091 = vmul.f32 %v1507, %v1035
        %v2092 = vmul.f32 %v1514, %v1036
        %v2093 = vmul.f32 %v1521, %v1037
        %v2094 = vmul.f32 %v1528, %v1038
        %v2095 = vmul.f32 %v1535, %v1039
        %v2096 = vmul.f32 %v1542, %v1040
        %v2097 = vmul.f32 %v1549, %v1041
        %v2098 = vmul.f32 %v1556, %v1042
        %v2099 = vmul.f32 %v1563, %v1043
        %v2100 = vmul.f32 %v1570, %v1044
        %v2101 = vmul.f32 %v1577, %v1045
        %v2102 = vmul.f32 %v1584, %v1046
        %v2103 = vmul.f32 %v1591, %v1047
        %v2104 = vmul.f32 %v1598, %v1048
        %v2105 = vmul.f32 %v1605, %v1049
        %v2106 = vmul.f32 %v1612, %v1050
        %v2107 = vmul.f32 %v1619, %v1051
        %v2108 = vmul.f32 %v1626, %v1052
        %v2109 = vmul.f32 %v1633, %v1053
        %v2110 = vmul.f32 %v1640, %v1054
        %v2111 = vmul.f32 %v1647, %v1055
        %v2112 = vmul.f32 %v1654, %v1056
        %v2113 = vmul.f32 %v1661, %v1057
        %v2114 = vmul.f32 %v1668, %v1058
        %v2115 = vmul.f32 %v1675, %v1059
        %v2116 = vmul.f32 %v1682, %v1060
        %v2117 = vmul.f32 %v1689, %v1061
        %v2118 = vmul.f32 %v1696, %v1062
        %v2119 = vmul.f32 %v1703, %v1063
        %v2120 = vmul.f32 %v1710, %v1064
        %v2121 = vmul.f32 %v1717, %v1065
        %v2122 = vmul.f32 %v1724, %v1066
        %v2123 = vmul.f32 %v1731, %v1067
        %v2124 = vmul.f32 %v1738, %v1068
        %v2125 = vmul.f32 %v1745, %v1069
        %v2126 = vmul.f32 %v1752, %v1070
        %v2127 = vmul.f32 %v1759, %v1071
        %v2128 = vmul.f32 %v1766, %v1072
        %v2129 = vmul.f32 %v1773, %v1073
        %v2130 = vmul.f32 %v1780, %v1074
        %v2131 = vmul.f32 %v1787, %v1075
        %v2132 = vmul.f32 %v1794, %v1076
        %v2133 = vmul.f32 %v1801, %v1077
        %v2134 = vmul.f32 %v1808, %v1078
        %v2135 = vmul.f32 %v1815, %v1079
        %v2136 = vmul.f32 %v1822, %v1080
        %v2137 = vmul.f32 %v1829, %v1081
        %v2138 = vmul.f32 %v1836, %v1082
        %v2139 = vmul.f32 %v1843, %v1083
        %v2140 = vmul.f32 %v1850, %v1084
        %v2141 = vmul.f32 %v1857, %v1085
        %v2142 = vmul.f32 %v1864, %v1086
        %v2143 = vmul.f32 %v1871, %v1087
        %v2144 = vmul.f32 %v1878, %v1088
        %v2145 = vmul.f32 %v1885, %v1089
        %v2146 = vmul.f32 %v1892, %v1090
        %v2147 = vmul.f32 %v1899, %v1091
        %v2148 = vmul.f32 %v1906, %v1092
        %v2149 = vmul.f32 %v1913, %v1093
        %v2150 = vmul.f32 %v1920, %v1094
        %v2151 = vmul.f32 %v1927, %v1095
        %v2152 = vmul.f32 %v1934, %v1096
        %v2153 = vmul.f32 %v1941, %v1097
        %v2154 = vmul.f32 %v1948, %v1098
        %v2155 = vmul.f32 %v1955, %v1099
        %v2156 = vmul.f32 %v1962, %v1100
        %v2157 = vmul.f32 %v1969, %v1101
        %v2158 = vmul.f32 %v1976, %v1102
        %v2159 = vmul.f32 %v1983, %v1103
        %v2160 = vmul.f32 %v1990, %v1104
        %v2161 = vmul.f32 %v1997, %v1105
        %v2162 = vmul.f32 %v2004, %v1106
        %v2163 = vmul.f32 %v2011, %v1107
        %v2164 = vmul.f32 %v2018, %v1108
        %v2165 = vmul.f32 %v2025, %v1109
        %v2166 = vmul.f32 %v2032, %v1110
        %v2167 = vmul.f32 %v2039, %v1111
        %v2168 = vrot.slane %v2040, 4
        %v2169 = vadd.f32 %v2040, %v2168
        %v2170 = vrot.slane %v2169, 2
        %v2171 = vadd.f32 %v2169, %v2170
        %v2172 = vrot.slane %v2171, 1
        %v2173 = vadd.f32 %v2171, %v2172
        %v2174 = vrot.slane %v2041, 4
        %v2175 = vadd.f32 %v2041, %v2174
        %v2176 = vrot.slane %v2175, 2
        %v2177 = vadd.f32 %v2175, %v2176
        %v2178 = vrot.slane %v2177, 1
        %v2179 = vadd.f32 %v2177, %v2178
        %v2180 = vrot.slane %v2042, 4
        %v2181 = vadd.f32 %v2042, %v2180
        %v2182 = vrot.slane %v2181, 2
        %v2183 = vadd.f32 %v2181, %v2182
        %v2184 = vrot.slane %v2183, 1
        %v2185 = vadd.f32 %v2183, %v2184
        %v2186 = vrot.slane %v2043, 4
        %v2187 = vadd.f32 %v2043, %v2186
        %v2188 = vrot.slane %v2187, 2
        %v2189 = vadd.f32 %v2187, %v2188
        %v2190 = vrot.slane %v2189, 1
        %v2191 = vadd.f32 %v2189, %v2190
        %v2192 = vrot.slane %v2044, 4
        %v2193 = vadd.f32 %v2044, %v2192
        %v2194 = vrot.slane %v2193, 2
        %v2195 = vadd.f32 %v2193, %v2194
        %v2196 = vrot.slane %v2195, 1
        %v2197 = vadd.f32 %v2195, %v2196
        %v2198 = vrot.slane %v2045, 4
        %v2199 = vadd.f32 %v2045, %v2198
        %v2200 = vrot.slane %v2199, 2
        %v2201 = vadd.f32 %v2199, %v2200
        %v2202 = vrot.slane %v2201, 1
        %v2203 = vadd.f32 %v2201, %v2202
        %v2204 = vrot.slane %v2046, 4
        %v2205 = vadd.f32 %v2046, %v2204
        %v2206 = vrot.slane %v2205, 2
        %v2207 = vadd.f32 %v2205, %v2206
        %v2208 = vrot.slane %v2207, 1
        %v2209 = vadd.f32 %v2207, %v2208
        %v2210 = vrot.slane %v2047, 4
        %v2211 = vadd.f32 %v2047, %v2210
        %v2212 = vrot.slane %v2211, 2
        %v2213 = vadd.f32 %v2211, %v2212
        %v2214 = vrot.slane %v2213, 1
        %v2215 = vadd.f32 %v2213, %v2214
        %v2216 = vrot.slane %v2048, 4
        %v2217 = vadd.f32 %v2048, %v2216
        %v2218 = vrot.slane %v2217, 2
        %v2219 = vadd.f32 %v2217, %v2218
        %v2220 = vrot.slane %v2219, 1
        %v2221 = vadd.f32 %v2219, %v2220
        %v2222 = vrot.slane %v2049, 4
        %v2223 = vadd.f32 %v2049, %v2222
        %v2224 = vrot.slane %v2223, 2
        %v2225 = vadd.f32 %v2223, %v2224
        %v2226 = vrot.slane %v2225, 1
        %v2227 = vadd.f32 %v2225, %v2226
        %v2228 = vrot.slane %v2050, 4
        %v2229 = vadd.f32 %v2050, %v2228
        %v2230 = vrot.slane %v2229, 2
        %v2231 = vadd.f32 %v2229, %v2230
        %v2232 = vrot.slane %v2231, 1
        %v2233 = vadd.f32 %v2231, %v2232
        %v2234 = vrot.slane %v2051, 4
        %v2235 = vadd.f32 %v2051, %v2234
        %v2236 = vrot.slane %v2235, 2
        %v2237 = vadd.f32 %v2235, %v2236
        %v2238 = vrot.slane %v2237, 1
        %v2239 = vadd.f32 %v2237, %v2238
        %v2240 = vrot.slane %v2052, 4
        %v2241 = vadd.f32 %v2052, %v2240
        %v2242 = vrot.slane %v2241, 2
        %v2243 = vadd.f32 %v2241, %v2242
        %v2244 = vrot.slane %v2243, 1
        %v2245 = vadd.f32 %v2243, %v2244
        %v2246 = vrot.slane %v2053, 4
        %v2247 = vadd.f32 %v2053, %v2246
        %v2248 = vrot.slane %v2247, 2
        %v2249 = vadd.f32 %v2247, %v2248
        %v2250 = vrot.slane %v2249, 1
        %v2251 = vadd.f32 %v2249, %v2250
        %v2252 = vrot.slane %v2054, 4
        %v2253 = vadd.f32 %v2054, %v2252
        %v2254 = vrot.slane %v2253, 2
        %v2255 = vadd.f32 %v2253, %v2254
        %v2256 = vrot.slane %v2255, 1
        %v2257 = vadd.f32 %v2255, %v2256
        %v2258 = vrot.slane %v2055, 4
        %v2259 = vadd.f32 %v2055, %v2258
        %v2260 = vrot.slane %v2259, 2
        %v2261 = vadd.f32 %v2259, %v2260
        %v2262 = vrot.slane %v2261, 1
        %v2263 = vadd.f32 %v2261, %v2262
        %v2264 = vrot.slane %v2056, 4
        %v2265 = vadd.f32 %v2056, %v2264
        %v2266 = vrot.slane %v2265, 2
        %v2267 = vadd.f32 %v2265, %v2266
        %v2268 = vrot.slane %v2267, 1
        %v2269 = vadd.f32 %v2267, %v2268
        %v2270 = vrot.slane %v2057, 4
        %v2271 = vadd.f32 %v2057, %v2270
        %v2272 = vrot.slane %v2271, 2
        %v2273 = vadd.f32 %v2271, %v2272
        %v2274 = vrot.slane %v2273, 1
        %v2275 = vadd.f32 %v2273, %v2274
        %v2276 = vrot.slane %v2058, 4
        %v2277 = vadd.f32 %v2058, %v2276
        %v2278 = vrot.slane %v2277, 2
        %v2279 = vadd.f32 %v2277, %v2278
        %v2280 = vrot.slane %v2279, 1
        %v2281 = vadd.f32 %v2279, %v2280
        %v2282 = vrot.slane %v2059, 4
        %v2283 = vadd.f32 %v2059, %v2282
        %v2284 = vrot.slane %v2283, 2
        %v2285 = vadd.f32 %v2283, %v2284
        %v2286 = vrot.slane %v2285, 1
        %v2287 = vadd.f32 %v2285, %v2286
        %v2288 = vrot.slane %v2060, 4
        %v2289 = vadd.f32 %v2060, %v2288
        %v2290 = vrot.slane %v2289, 2
        %v2291 = vadd.f32 %v2289, %v2290
        %v2292 = vrot.slane %v2291, 1
        %v2293 = vadd.f32 %v2291, %v2292
        %v2294 = vrot.slane %v2061, 4
        %v2295 = vadd.f32 %v2061, %v2294
        %v2296 = vrot.slane %v2295, 2
        %v2297 = vadd.f32 %v2295, %v2296
        %v2298 = vrot.slane %v2297, 1
        %v2299 = vadd.f32 %v2297, %v2298
        %v2300 = vrot.slane %v2062, 4
        %v2301 = vadd.f32 %v2062, %v2300
        %v2302 = vrot.slane %v2301, 2
        %v2303 = vadd.f32 %v2301, %v2302
        %v2304 = vrot.slane %v2303, 1
        %v2305 = vadd.f32 %v2303, %v2304
        %v2306 = vrot.slane %v2063, 4
        %v2307 = vadd.f32 %v2063, %v2306
        %v2308 = vrot.slane %v2307, 2
        %v2309 = vadd.f32 %v2307, %v2308
        %v2310 = vrot.slane %v2309, 1
        %v2311 = vadd.f32 %v2309, %v2310
        %v2312 = vrot.slane %v2064, 4
        %v2313 = vadd.f32 %v2064, %v2312
        %v2314 = vrot.slane %v2313, 2
        %v2315 = vadd.f32 %v2313, %v2314
        %v2316 = vrot.slane %v2315, 1
        %v2317 = vadd.f32 %v2315, %v2316
        %v2318 = vrot.slane %v2065, 4
        %v2319 = vadd.f32 %v2065, %v2318
        %v2320 = vrot.slane %v2319, 2
        %v2321 = vadd.f32 %v2319, %v2320
        %v2322 = vrot.slane %v2321, 1
        %v2323 = vadd.f32 %v2321, %v2322
        %v2324 = vrot.slane %v2066, 4
        %v2325 = vadd.f32 %v2066, %v2324
        %v2326 = vrot.slane %v2325, 2
        %v2327 = vadd.f32 %v2325, %v2326
        %v2328 = vrot.slane %v2327, 1
        %v2329 = vadd.f32 %v2327, %v2328
        %v2330 = vrot.slane %v2067, 4
        %v2331 = vadd.f32 %v2067, %v2330
        %v2332 = vrot.slane %v2331, 2
        %v2333 = vadd.f32 %v2331, %v2332
        %v2334 = vrot.slane %v2333, 1
        %v2335 = vadd.f32 %v2333, %v2334
        %v2336 = vrot.slane %v2068, 4
        %v2337 = vadd.f32 %v2068, %v2336
        %v2338 = vrot.slane %v2337, 2
        %v2339 = vadd.f32 %v2337, %v2338
        %v2340 = vrot.slane %v2339, 1
        %v2341 = vadd.f32 %v2339, %v2340
        %v2342 = vrot.slane %v2069, 4
        %v2343 = vadd.f32 %v2069, %v2342
        %v2344 = vrot.slane %v2343, 2
        %v2345 = vadd.f32 %v2343, %v2344
        %v2346 = vrot.slane %v2345, 1
        %v2347 = vadd.f32 %v2345, %v2346
        %v2348 = vrot.slane %v2070, 4
        %v2349 = vadd.f32 %v2070, %v2348
        %v2350 = vrot.slane %v2349, 2
        %v2351 = vadd.f32 %v2349, %v2350
        %v2352 = vrot.slane %v2351, 1
        %v2353 = vadd.f32 %v2351, %v2352
        %v2354 = vrot.slane %v2071, 4
        %v2355 = vadd.f32 %v2071, %v2354
        %v2356 = vrot.slane %v2355, 2
        %v2357 = vadd.f32 %v2355, %v2356
        %v2358 = vrot.slane %v2357, 1
        %v2359 = vadd.f32 %v2357, %v2358
        %v2360 = vrot.slane %v2072, 4
        %v2361 = vadd.f32 %v2072, %v2360
        %v2362 = vrot.slane %v2361, 2
        %v2363 = vadd.f32 %v2361, %v2362
        %v2364 = vrot.slane %v2363, 1
        %v2365 = vadd.f32 %v2363, %v2364
        %v2366 = vrot.slane %v2073, 4
        %v2367 = vadd.f32 %v2073, %v2366
        %v2368 = vrot.slane %v2367, 2
        %v2369 = vadd.f32 %v2367, %v2368
        %v2370 = vrot.slane %v2369, 1
        %v2371 = vadd.f32 %v2369, %v2370
        %v2372 = vrot.slane %v2074, 4
        %v2373 = vadd.f32 %v2074, %v2372
        %v2374 = vrot.slane %v2373, 2
        %v2375 = vadd.f32 %v2373, %v2374
        %v2376 = vrot.slane %v2375, 1
        %v2377 = vadd.f32 %v2375, %v2376
        %v2378 = vrot.slane %v2075, 4
        %v2379 = vadd.f32 %v2075, %v2378
        %v2380 = vrot.slane %v2379, 2
        %v2381 = vadd.f32 %v2379, %v2380
        %v2382 = vrot.slane %v2381, 1
        %v2383 = vadd.f32 %v2381, %v2382
        %v2384 = vrot.slane %v2076, 4
        %v2385 = vadd.f32 %v2076, %v2384
        %v2386 = vrot.slane %v2385, 2
        %v2387 = vadd.f32 %v2385, %v2386
        %v2388 = vrot.slane %v2387, 1
        %v2389 = vadd.f32 %v2387, %v2388
        %v2390 = vrot.slane %v2077, 4
        %v2391 = vadd.f32 %v2077, %v2390
        %v2392 = vrot.slane %v2391, 2
        %v2393 = vadd.f32 %v2391, %v2392
        %v2394 = vrot.slane %v2393, 1
        %v2395 = vadd.f32 %v2393, %v2394
        %v2396 = vrot.slane %v2078, 4
        %v2397 = vadd.f32 %v2078, %v2396
        %v2398 = vrot.slane %v2397, 2
        %v2399 = vadd.f32 %v2397, %v2398
        %v2400 = vrot.slane %v2399, 1
        %v2401 = vadd.f32 %v2399, %v2400
        %v2402 = vrot.slane %v2079, 4
        %v2403 = vadd.f32 %v2079, %v2402
        %v2404 = vrot.slane %v2403, 2
        %v2405 = vadd.f32 %v2403, %v2404
        %v2406 = vrot.slane %v2405, 1
        %v2407 = vadd.f32 %v2405, %v2406
        %v2408 = vrot.slane %v2080, 4
        %v2409 = vadd.f32 %v2080, %v2408
        %v2410 = vrot.slane %v2409, 2
        %v2411 = vadd.f32 %v2409, %v2410
        %v2412 = vrot.slane %v2411, 1
        %v2413 = vadd.f32 %v2411, %v2412
        %v2414 = vrot.slane %v2081, 4
        %v2415 = vadd.f32 %v2081, %v2414
        %v2416 = vrot.slane %v2415, 2
        %v2417 = vadd.f32 %v2415, %v2416
        %v2418 = vrot.slane %v2417, 1
        %v2419 = vadd.f32 %v2417, %v2418
        %v2420 = vrot.slane %v2082, 4
        %v2421 = vadd.f32 %v2082, %v2420
        %v2422 = vrot.slane %v2421, 2
        %v2423 = vadd.f32 %v2421, %v2422
        %v2424 = vrot.slane %v2423, 1
        %v2425 = vadd.f32 %v2423, %v2424
        %v2426 = vrot.slane %v2083, 4
        %v2427 = vadd.f32 %v2083, %v2426
        %v2428 = vrot.slane %v2427, 2
        %v2429 = vadd.f32 %v2427, %v2428
        %v2430 = vrot.slane %v2429, 1
        %v2431 = vadd.f32 %v2429, %v2430
        %v2432 = vrot.slane %v2084, 4
        %v2433 = vadd.f32 %v2084, %v2432
        %v2434 = vrot.slane %v2433, 2
        %v2435 = vadd.f32 %v2433, %v2434
        %v2436 = vrot.slane %v2435, 1
        %v2437 = vadd.f32 %v2435, %v2436
        %v2438 = vrot.slane %v2085, 4
        %v2439 = vadd.f32 %v2085, %v2438
        %v2440 = vrot.slane %v2439, 2
        %v2441 = vadd.f32 %v2439, %v2440
        %v2442 = vrot.slane %v2441, 1
        %v2443 = vadd.f32 %v2441, %v2442
        %v2444 = vrot.slane %v2086, 4
        %v2445 = vadd.f32 %v2086, %v2444
        %v2446 = vrot.slane %v2445, 2
        %v2447 = vadd.f32 %v2445, %v2446
        %v2448 = vrot.slane %v2447, 1
        %v2449 = vadd.f32 %v2447, %v2448
        %v2450 = vrot.slane %v2087, 4
        %v2451 = vadd.f32 %v2087, %v2450
        %v2452 = vrot.slane %v2451, 2
        %v2453 = vadd.f32 %v2451, %v2452
        %v2454 = vrot.slane %v2453, 1
        %v2455 = vadd.f32 %v2453, %v2454
        %v2456 = vrot.slane %v2088, 4
        %v2457 = vadd.f32 %v2088, %v2456
        %v2458 = vrot.slane %v2457, 2
        %v2459 = vadd.f32 %v2457, %v2458
        %v2460 = vrot.slane %v2459, 1
        %v2461 = vadd.f32 %v2459, %v2460
        %v2462 = vrot.slane %v2089, 4
        %v2463 = vadd.f32 %v2089, %v2462
        %v2464 = vrot.slane %v2463, 2
        %v2465 = vadd.f32 %v2463, %v2464
        %v2466 = vrot.slane %v2465, 1
        %v2467 = vadd.f32 %v2465, %v2466
        %v2468 = vrot.slane %v2090, 4
        %v2469 = vadd.f32 %v2090, %v2468
        %v2470 = vrot.slane %v2469, 2
        %v2471 = vadd.f32 %v2469, %v2470
        %v2472 = vrot.slane %v2471, 1
        %v2473 = vadd.f32 %v2471, %v2472
        %v2474 = vrot.slane %v2091, 4
        %v2475 = vadd.f32 %v2091, %v2474
        %v2476 = vrot.slane %v2475, 2
        %v2477 = vadd.f32 %v2475, %v2476
        %v2478 = vrot.slane %v2477, 1
        %v2479 = vadd.f32 %v2477, %v2478
        %v2480 = vrot.slane %v2092, 4
        %v2481 = vadd.f32 %v2092, %v2480
        %v2482 = vrot.slane %v2481, 2
        %v2483 = vadd.f32 %v2481, %v2482
        %v2484 = vrot.slane %v2483, 1
        %v2485 = vadd.f32 %v2483, %v2484
        %v2486 = vrot.slane %v2093, 4
        %v2487 = vadd.f32 %v2093, %v2486
        %v2488 = vrot.slane %v2487, 2
        %v2489 = vadd.f32 %v2487, %v2488
        %v2490 = vrot.slane %v2489, 1
        %v2491 = vadd.f32 %v2489, %v2490
        %v2492 = vrot.slane %v2094, 4
        %v2493 = vadd.f32 %v2094, %v2492
        %v2494 = vrot.slane %v2493, 2
        %v2495 = vadd.f32 %v2493, %v2494
        %v2496 = vrot.slane %v2495, 1
        %v2497 = vadd.f32 %v2495, %v2496
        %v2498 = vrot.slane %v2095, 4
        %v2499 = vadd.f32 %v2095, %v2498
        %v2500 = vrot.slane %v2499, 2
        %v2501 = vadd.f32 %v2499, %v2500
        %v2502 = vrot.slane %v2501, 1
        %v2503 = vadd.f32 %v2501, %v2502
        %v2504 = vrot.slane %v2096, 4
        %v2505 = vadd.f32 %v2096, %v2504
        %v2506 = vrot.slane %v2505, 2
        %v2507 = vadd.f32 %v2505, %v2506
        %v2508 = vrot.slane %v2507, 1
        %v2509 = vadd.f32 %v2507, %v2508
        %v2510 = vrot.slane %v2097, 4
        %v2511 = vadd.f32 %v2097, %v2510
        %v2512 = vrot.slane %v2511, 2
        %v2513 = vadd.f32 %v2511, %v2512
        %v2514 = vrot.slane %v2513, 1
        %v2515 = vadd.f32 %v2513, %v2514
        %v2516 = vrot.slane %v2098, 4
        %v2517 = vadd.f32 %v2098, %v2516
        %v2518 = vrot.slane %v2517, 2
        %v2519 = vadd.f32 %v2517, %v2518
        %v2520 = vrot.slane %v2519, 1
        %v2521 = vadd.f32 %v2519, %v2520
        %v2522 = vrot.slane %v2099, 4
        %v2523 = vadd.f32 %v2099, %v2522
        %v2524 = vrot.slane %v2523, 2
        %v2525 = vadd.f32 %v2523, %v2524
        %v2526 = vrot.slane %v2525, 1
        %v2527 = vadd.f32 %v2525, %v2526
        %v2528 = vrot.slane %v2100, 4
        %v2529 = vadd.f32 %v2100, %v2528
        %v2530 = vrot.slane %v2529, 2
        %v2531 = vadd.f32 %v2529, %v2530
        %v2532 = vrot.slane %v2531, 1
        %v2533 = vadd.f32 %v2531, %v2532
        %v2534 = vrot.slane %v2101, 4
        %v2535 = vadd.f32 %v2101, %v2534
        %v2536 = vrot.slane %v2535, 2
        %v2537 = vadd.f32 %v2535, %v2536
        %v2538 = vrot.slane %v2537, 1
        %v2539 = vadd.f32 %v2537, %v2538
        %v2540 = vrot.slane %v2102, 4
        %v2541 = vadd.f32 %v2102, %v2540
        %v2542 = vrot.slane %v2541, 2
        %v2543 = vadd.f32 %v2541, %v2542
        %v2544 = vrot.slane %v2543, 1
        %v2545 = vadd.f32 %v2543, %v2544
        %v2546 = vrot.slane %v2103, 4
        %v2547 = vadd.f32 %v2103, %v2546
        %v2548 = vrot.slane %v2547, 2
        %v2549 = vadd.f32 %v2547, %v2548
        %v2550 = vrot.slane %v2549, 1
        %v2551 = vadd.f32 %v2549, %v2550
        %v2552 = vrot.slane %v2104, 4
        %v2553 = vadd.f32 %v2104, %v2552
        %v2554 = vrot.slane %v2553, 2
        %v2555 = vadd.f32 %v2553, %v2554
        %v2556 = vrot.slane %v2555, 1
        %v2557 = vadd.f32 %v2555, %v2556
        %v2558 = vrot.slane %v2105, 4
        %v2559 = vadd.f32 %v2105, %v2558
        %v2560 = vrot.slane %v2559, 2
        %v2561 = vadd.f32 %v2559, %v2560
        %v2562 = vrot.slane %v2561, 1
        %v2563 = vadd.f32 %v2561, %v2562
        %v2564 = vrot.slane %v2106, 4
        %v2565 = vadd.f32 %v2106, %v2564
        %v2566 = vrot.slane %v2565, 2
        %v2567 = vadd.f32 %v2565, %v2566
        %v2568 = vrot.slane %v2567, 1
        %v2569 = vadd.f32 %v2567, %v2568
        %v2570 = vrot.slane %v2107, 4
        %v2571 = vadd.f32 %v2107, %v2570
        %v2572 = vrot.slane %v2571, 2
        %v2573 = vadd.f32 %v2571, %v2572
        %v2574 = vrot.slane %v2573, 1
        %v2575 = vadd.f32 %v2573, %v2574
        %v2576 = vrot.slane %v2108, 4
        %v2577 = vadd.f32 %v2108, %v2576
        %v2578 = vrot.slane %v2577, 2
        %v2579 = vadd.f32 %v2577, %v2578
        %v2580 = vrot.slane %v2579, 1
        %v2581 = vadd.f32 %v2579, %v2580
        %v2582 = vrot.slane %v2109, 4
        %v2583 = vadd.f32 %v2109, %v2582
        %v2584 = vrot.slane %v2583, 2
        %v2585 = vadd.f32 %v2583, %v2584
        %v2586 = vrot.slane %v2585, 1
        %v2587 = vadd.f32 %v2585, %v2586
        %v2588 = vrot.slane %v2110, 4
        %v2589 = vadd.f32 %v2110, %v2588
        %v2590 = vrot.slane %v2589, 2
        %v2591 = vadd.f32 %v2589, %v2590
        %v2592 = vrot.slane %v2591, 1
        %v2593 = vadd.f32 %v2591, %v2592
        %v2594 = vrot.slane %v2111, 4
        %v2595 = vadd.f32 %v2111, %v2594
        %v2596 = vrot.slane %v2595, 2
        %v2597 = vadd.f32 %v2595, %v2596
        %v2598 = vrot.slane %v2597, 1
        %v2599 = vadd.f32 %v2597, %v2598
        %v2600 = vrot.slane %v2112, 4
        %v2601 = vadd.f32 %v2112, %v2600
        %v2602 = vrot.slane %v2601, 2
        %v2603 = vadd.f32 %v2601, %v2602
        %v2604 = vrot.slane %v2603, 1
        %v2605 = vadd.f32 %v2603, %v2604
        %v2606 = vrot.slane %v2113, 4
        %v2607 = vadd.f32 %v2113, %v2606
        %v2608 = vrot.slane %v2607, 2
        %v2609 = vadd.f32 %v2607, %v2608
        %v2610 = vrot.slane %v2609, 1
        %v2611 = vadd.f32 %v2609, %v2610
        %v2612 = vrot.slane %v2114, 4
        %v2613 = vadd.f32 %v2114, %v2612
        %v2614 = vrot.slane %v2613, 2
        %v2615 = vadd.f32 %v2613, %v2614
        %v2616 = vrot.slane %v2615, 1
        %v2617 = vadd.f32 %v2615, %v2616
        %v2618 = vrot.slane %v2115, 4
        %v2619 = vadd.f32 %v2115, %v2618
        %v2620 = vrot.slane %v2619, 2
        %v2621 = vadd.f32 %v2619, %v2620
        %v2622 = vrot.slane %v2621, 1
        %v2623 = vadd.f32 %v2621, %v2622
        %v2624 = vrot.slane %v2116, 4
        %v2625 = vadd.f32 %v2116, %v2624
        %v2626 = vrot.slane %v2625, 2
        %v2627 = vadd.f32 %v2625, %v2626
        %v2628 = vrot.slane %v2627, 1
        %v2629 = vadd.f32 %v2627, %v2628
        %v2630 = vrot.slane %v2117, 4
        %v2631 = vadd.f32 %v2117, %v2630
        %v2632 = vrot.slane %v2631, 2
        %v2633 = vadd.f32 %v2631, %v2632
        %v2634 = vrot.slane %v2633, 1
        %v2635 = vadd.f32 %v2633, %v2634
        %v2636 = vrot.slane %v2118, 4
        %v2637 = vadd.f32 %v2118, %v2636
        %v2638 = vrot.slane %v2637, 2
        %v2639 = vadd.f32 %v2637, %v2638
        %v2640 = vrot.slane %v2639, 1
        %v2641 = vadd.f32 %v2639, %v2640
        %v2642 = vrot.slane %v2119, 4
        %v2643 = vadd.f32 %v2119, %v2642
        %v2644 = vrot.slane %v2643, 2
        %v2645 = vadd.f32 %v2643, %v2644
        %v2646 = vrot.slane %v2645, 1
        %v2647 = vadd.f32 %v2645, %v2646
        %v2648 = vrot.slane %v2120, 4
        %v2649 = vadd.f32 %v2120, %v2648
        %v2650 = vrot.slane %v2649, 2
        %v2651 = vadd.f32 %v2649, %v2650
        %v2652 = vrot.slane %v2651, 1
        %v2653 = vadd.f32 %v2651, %v2652
        %v2654 = vrot.slane %v2121, 4
        %v2655 = vadd.f32 %v2121, %v2654
        %v2656 = vrot.slane %v2655, 2
        %v2657 = vadd.f32 %v2655, %v2656
        %v2658 = vrot.slane %v2657, 1
        %v2659 = vadd.f32 %v2657, %v2658
        %v2660 = vrot.slane %v2122, 4
        %v2661 = vadd.f32 %v2122, %v2660
        %v2662 = vrot.slane %v2661, 2
        %v2663 = vadd.f32 %v2661, %v2662
        %v2664 = vrot.slane %v2663, 1
        %v2665 = vadd.f32 %v2663, %v2664
        %v2666 = vrot.slane %v2123, 4
        %v2667 = vadd.f32 %v2123, %v2666
        %v2668 = vrot.slane %v2667, 2
        %v2669 = vadd.f32 %v2667, %v2668
        %v2670 = vrot.slane %v2669, 1
        %v2671 = vadd.f32 %v2669, %v2670
        %v2672 = vrot.slane %v2124, 4
        %v2673 = vadd.f32 %v2124, %v2672
        %v2674 = vrot.slane %v2673, 2
        %v2675 = vadd.f32 %v2673, %v2674
        %v2676 = vrot.slane %v2675, 1
        %v2677 = vadd.f32 %v2675, %v2676
        %v2678 = vrot.slane %v2125, 4
        %v2679 = vadd.f32 %v2125, %v2678
        %v2680 = vrot.slane %v2679, 2
        %v2681 = vadd.f32 %v2679, %v2680
        %v2682 = vrot.slane %v2681, 1
        %v2683 = vadd.f32 %v2681, %v2682
        %v2684 = vrot.slane %v2126, 4
        %v2685 = vadd.f32 %v2126, %v2684
        %v2686 = vrot.slane %v2685, 2
        %v2687 = vadd.f32 %v2685, %v2686
        %v2688 = vrot.slane %v2687, 1
        %v2689 = vadd.f32 %v2687, %v2688
        %v2690 = vrot.slane %v2127, 4
        %v2691 = vadd.f32 %v2127, %v2690
        %v2692 = vrot.slane %v2691, 2
        %v2693 = vadd.f32 %v2691, %v2692
        %v2694 = vrot.slane %v2693, 1
        %v2695 = vadd.f32 %v2693, %v2694
        %v2696 = vrot.slane %v2128, 4
        %v2697 = vadd.f32 %v2128, %v2696
        %v2698 = vrot.slane %v2697, 2
        %v2699 = vadd.f32 %v2697, %v2698
        %v2700 = vrot.slane %v2699, 1
        %v2701 = vadd.f32 %v2699, %v2700
        %v2702 = vrot.slane %v2129, 4
        %v2703 = vadd.f32 %v2129, %v2702
        %v2704 = vrot.slane %v2703, 2
        %v2705 = vadd.f32 %v2703, %v2704
        %v2706 = vrot.slane %v2705, 1
        %v2707 = vadd.f32 %v2705, %v2706
        %v2708 = vrot.slane %v2130, 4
        %v2709 = vadd.f32 %v2130, %v2708
        %v2710 = vrot.slane %v2709, 2
        %v2711 = vadd.f32 %v2709, %v2710
        %v2712 = vrot.slane %v2711, 1
        %v2713 = vadd.f32 %v2711, %v2712
        %v2714 = vrot.slane %v2131, 4
        %v2715 = vadd.f32 %v2131, %v2714
        %v2716 = vrot.slane %v2715, 2
        %v2717 = vadd.f32 %v2715, %v2716
        %v2718 = vrot.slane %v2717, 1
        %v2719 = vadd.f32 %v2717, %v2718
        %v2720 = vrot.slane %v2132, 4
        %v2721 = vadd.f32 %v2132, %v2720
        %v2722 = vrot.slane %v2721, 2
        %v2723 = vadd.f32 %v2721, %v2722
        %v2724 = vrot.slane %v2723, 1
        %v2725 = vadd.f32 %v2723, %v2724
        %v2726 = vrot.slane %v2133, 4
        %v2727 = vadd.f32 %v2133, %v2726
        %v2728 = vrot.slane %v2727, 2
        %v2729 = vadd.f32 %v2727, %v2728
        %v2730 = vrot.slane %v2729, 1
        %v2731 = vadd.f32 %v2729, %v2730
        %v2732 = vrot.slane %v2134, 4
        %v2733 = vadd.f32 %v2134, %v2732
        %v2734 = vrot.slane %v2733, 2
        %v2735 = vadd.f32 %v2733, %v2734
        %v2736 = vrot.slane %v2735, 1
        %v2737 = vadd.f32 %v2735, %v2736
        %v2738 = vrot.slane %v2135, 4
        %v2739 = vadd.f32 %v2135, %v2738
        %v2740 = vrot.slane %v2739, 2
        %v2741 = vadd.f32 %v2739, %v2740
        %v2742 = vrot.slane %v2741, 1
        %v2743 = vadd.f32 %v2741, %v2742
        %v2744 = vrot.slane %v2136, 4
        %v2745 = vadd.f32 %v2136, %v2744
        %v2746 = vrot.slane %v2745, 2
        %v2747 = vadd.f32 %v2745, %v2746
        %v2748 = vrot.slane %v2747, 1
        %v2749 = vadd.f32 %v2747, %v2748
        %v2750 = vrot.slane %v2137, 4
        %v2751 = vadd.f32 %v2137, %v2750
        %v2752 = vrot.slane %v2751, 2
        %v2753 = vadd.f32 %v2751, %v2752
        %v2754 = vrot.slane %v2753, 1
        %v2755 = vadd.f32 %v2753, %v2754
        %v2756 = vrot.slane %v2138, 4
        %v2757 = vadd.f32 %v2138, %v2756
        %v2758 = vrot.slane %v2757, 2
        %v2759 = vadd.f32 %v2757, %v2758
        %v2760 = vrot.slane %v2759, 1
        %v2761 = vadd.f32 %v2759, %v2760
        %v2762 = vrot.slane %v2139, 4
        %v2763 = vadd.f32 %v2139, %v2762
        %v2764 = vrot.slane %v2763, 2
        %v2765 = vadd.f32 %v2763, %v2764
        %v2766 = vrot.slane %v2765, 1
        %v2767 = vadd.f32 %v2765, %v2766
        %v2768 = vrot.slane %v2140, 4
        %v2769 = vadd.f32 %v2140, %v2768
        %v2770 = vrot.slane %v2769, 2
        %v2771 = vadd.f32 %v2769, %v2770
        %v2772 = vrot.slane %v2771, 1
        %v2773 = vadd.f32 %v2771, %v2772
        %v2774 = vrot.slane %v2141, 4
        %v2775 = vadd.f32 %v2141, %v2774
        %v2776 = vrot.slane %v2775, 2
        %v2777 = vadd.f32 %v2775, %v2776
        %v2778 = vrot.slane %v2777, 1
        %v2779 = vadd.f32 %v2777, %v2778
        %v2780 = vrot.slane %v2142, 4
        %v2781 = vadd.f32 %v2142, %v2780
        %v2782 = vrot.slane %v2781, 2
        %v2783 = vadd.f32 %v2781, %v2782
        %v2784 = vrot.slane %v2783, 1
        %v2785 = vadd.f32 %v2783, %v2784
        %v2786 = vrot.slane %v2143, 4
        %v2787 = vadd.f32 %v2143, %v2786
        %v2788 = vrot.slane %v2787, 2
        %v2789 = vadd.f32 %v2787, %v2788
        %v2790 = vrot.slane %v2789, 1
        %v2791 = vadd.f32 %v2789, %v2790
        %v2792 = vrot.slane %v2144, 4
        %v2793 = vadd.f32 %v2144, %v2792
        %v2794 = vrot.slane %v2793, 2
        %v2795 = vadd.f32 %v2793, %v2794
        %v2796 = vrot.slane %v2795, 1
        %v2797 = vadd.f32 %v2795, %v2796
        %v2798 = vrot.slane %v2145, 4
        %v2799 = vadd.f32 %v2145, %v2798
        %v2800 = vrot.slane %v2799, 2
        %v2801 = vadd.f32 %v2799, %v2800
        %v2802 = vrot.slane %v2801, 1
        %v2803 = vadd.f32 %v2801, %v2802
        %v2804 = vrot.slane %v2146, 4
        %v2805 = vadd.f32 %v2146, %v2804
        %v2806 = vrot.slane %v2805, 2
        %v2807 = vadd.f32 %v2805, %v2806
        %v2808 = vrot.slane %v2807, 1
        %v2809 = vadd.f32 %v2807, %v2808
        %v2810 = vrot.slane %v2147, 4
        %v2811 = vadd.f32 %v2147, %v2810
        %v2812 = vrot.slane %v2811, 2
        %v2813 = vadd.f32 %v2811, %v2812
        %v2814 = vrot.slane %v2813, 1
        %v2815 = vadd.f32 %v2813, %v2814
        %v2816 = vrot.slane %v2148, 4
        %v2817 = vadd.f32 %v2148, %v2816
        %v2818 = vrot.slane %v2817, 2
        %v2819 = vadd.f32 %v2817, %v2818
        %v2820 = vrot.slane %v2819, 1
        %v2821 = vadd.f32 %v2819, %v2820
        %v2822 = vrot.slane %v2149, 4
        %v2823 = vadd.f32 %v2149, %v2822
        %v2824 = vrot.slane %v2823, 2
        %v2825 = vadd.f32 %v2823, %v2824
        %v2826 = vrot.slane %v2825, 1
        %v2827 = vadd.f32 %v2825, %v2826
        %v2828 = vrot.slane %v2150, 4
        %v2829 = vadd.f32 %v2150, %v2828
        %v2830 = vrot.slane %v2829, 2
        %v2831 = vadd.f32 %v2829, %v2830
        %v2832 = vrot.slane %v2831, 1
        %v2833 = vadd.f32 %v2831, %v2832
        %v2834 = vrot.slane %v2151, 4
        %v2835 = vadd.f32 %v2151, %v2834
        %v2836 = vrot.slane %v2835, 2
        %v2837 = vadd.f32 %v2835, %v2836
        %v2838 = vrot.slane %v2837, 1
        %v2839 = vadd.f32 %v2837, %v2838
        %v2840 = vrot.slane %v2152, 4
        %v2841 = vadd.f32 %v2152, %v2840
        %v2842 = vrot.slane %v2841, 2
        %v2843 = vadd.f32 %v2841, %v2842
        %v2844 = vrot.slane %v2843, 1
        %v2845 = vadd.f32 %v2843, %v2844
        %v2846 = vrot.slane %v2153, 4
        %v2847 = vadd.f32 %v2153, %v2846
        %v2848 = vrot.slane %v2847, 2
        %v2849 = vadd.f32 %v2847, %v2848
        %v2850 = vrot.slane %v2849, 1
        %v2851 = vadd.f32 %v2849, %v2850
        %v2852 = vrot.slane %v2154, 4
        %v2853 = vadd.f32 %v2154, %v2852
        %v2854 = vrot.slane %v2853, 2
        %v2855 = vadd.f32 %v2853, %v2854
        %v2856 = vrot.slane %v2855, 1
        %v2857 = vadd.f32 %v2855, %v2856
        %v2858 = vrot.slane %v2155, 4
        %v2859 = vadd.f32 %v2155, %v2858
        %v2860 = vrot.slane %v2859, 2
        %v2861 = vadd.f32 %v2859, %v2860
        %v2862 = vrot.slane %v2861, 1
        %v2863 = vadd.f32 %v2861, %v2862
        %v2864 = vrot.slane %v2156, 4
        %v2865 = vadd.f32 %v2156, %v2864
        %v2866 = vrot.slane %v2865, 2
        %v2867 = vadd.f32 %v2865, %v2866
        %v2868 = vrot.slane %v2867, 1
        %v2869 = vadd.f32 %v2867, %v2868
        %v2870 = vrot.slane %v2157, 4
        %v2871 = vadd.f32 %v2157, %v2870
        %v2872 = vrot.slane %v2871, 2
        %v2873 = vadd.f32 %v2871, %v2872
        %v2874 = vrot.slane %v2873, 1
        %v2875 = vadd.f32 %v2873, %v2874
        %v2876 = vrot.slane %v2158, 4
        %v2877 = vadd.f32 %v2158, %v2876
        %v2878 = vrot.slane %v2877, 2
        %v2879 = vadd.f32 %v2877, %v2878
        %v2880 = vrot.slane %v2879, 1
        %v2881 = vadd.f32 %v2879, %v2880
        %v2882 = vrot.slane %v2159, 4
        %v2883 = vadd.f32 %v2159, %v2882
        %v2884 = vrot.slane %v2883, 2
        %v2885 = vadd.f32 %v2883, %v2884
        %v2886 = vrot.slane %v2885, 1
        %v2887 = vadd.f32 %v2885, %v2886
        %v2888 = vrot.slane %v2160, 4
        %v2889 = vadd.f32 %v2160, %v2888
        %v2890 = vrot.slane %v2889, 2
        %v2891 = vadd.f32 %v2889, %v2890
        %v2892 = vrot.slane %v2891, 1
        %v2893 = vadd.f32 %v2891, %v2892
        %v2894 = vrot.slane %v2161, 4
        %v2895 = vadd.f32 %v2161, %v2894
        %v2896 = vrot.slane %v2895, 2
        %v2897 = vadd.f32 %v2895, %v2896
        %v2898 = vrot.slane %v2897, 1
        %v2899 = vadd.f32 %v2897, %v2898
        %v2900 = vrot.slane %v2162, 4
        %v2901 = vadd.f32 %v2162, %v2900
        %v2902 = vrot.slane %v2901, 2
        %v2903 = vadd.f32 %v2901, %v2902
        %v2904 = vrot.slane %v2903, 1
        %v2905 = vadd.f32 %v2903, %v2904
        %v2906 = vrot.slane %v2163, 4
        %v2907 = vadd.f32 %v2163, %v2906
        %v2908 = vrot.slane %v2907, 2
        %v2909 = vadd.f32 %v2907, %v2908
        %v2910 = vrot.slane %v2909, 1
        %v2911 = vadd.f32 %v2909, %v2910
        %v2912 = vrot.slane %v2164, 4
        %v2913 = vadd.f32 %v2164, %v2912
        %v2914 = vrot.slane %v2913, 2
        %v2915 = vadd.f32 %v2913, %v2914
        %v2916 = vrot.slane %v2915, 1
        %v2917 = vadd.f32 %v2915, %v2916
        %v2918 = vrot.slane %v2165, 4
        %v2919 = vadd.f32 %v2165, %v2918
        %v2920 = vrot.slane %v2919, 2
        %v2921 = vadd.f32 %v2919, %v2920
        %v2922 = vrot.slane %v2921, 1
        %v2923 = vadd.f32 %v2921, %v2922
        %v2924 = vrot.slane %v2166, 4
        %v2925 = vadd.f32 %v2166, %v2924
        %v2926 = vrot.slane %v2925, 2
        %v2927 = vadd.f32 %v2925, %v2926
        %v2928 = vrot.slane %v2927, 1
        %v2929 = vadd.f32 %v2927, %v2928
        %v2930 = vrot.slane %v2167, 4
        %v2931 = vadd.f32 %v2167, %v2930
        %v2932 = vrot.slane %v2931, 2
        %v2933 = vadd.f32 %v2931, %v2932
        %v2934 = vrot.slane %v2933, 1
        %v2935 = vadd.f32 %v2933, %v2934
        %2937 = vset.pattern.permute.xlu0 0
        %2938 = vperm.xlu0 %2937, %v1112
        %v2939 = vpop.permute.xlu0 %2938
        %2941 = vset.pattern.permute.xlu0 0
        %2942 = vperm.xlu0 %2941, %v1113
        %v2943 = vpop.permute.xlu0 %2942
        %2945 = vset.pattern.permute.xlu0 0
        %2946 = vperm.xlu0 %2945, %v1114
        %v2947 = vpop.permute.xlu0 %2946
        %2949 = vset.pattern.permute.xlu0 0
        %2950 = vperm.xlu0 %2949, %v1115
        %v2951 = vpop.permute.xlu0 %2950
        %2953 = vset.pattern.permute.xlu0 0
        %2954 = vperm.xlu0 %2953, %v1116
        %v2955 = vpop.permute.xlu0 %2954
        %2957 = vset.pattern.permute.xlu0 0
        %2958 = vperm.xlu0 %2957, %v1117
        %v2959 = vpop.permute.xlu0 %2958
        %2961 = vset.pattern.permute.xlu0 0
        %2962 = vperm.xlu0 %2961, %v1118
        %v2963 = vpop.permute.xlu0 %2962
        %2965 = vset.pattern.permute.xlu0 0
        %2966 = vperm.xlu0 %2965, %v1119
        %v2967 = vpop.permute.xlu0 %2966
        %2969 = vset.pattern.permute.xlu0 0
        %2970 = vperm.xlu0 %2969, %v1120
        %v2971 = vpop.permute.xlu0 %2970
        %2973 = vset.pattern.permute.xlu0 0
        %2974 = vperm.xlu0 %2973, %v1121
        %v2975 = vpop.permute.xlu0 %2974
        %2977 = vset.pattern.permute.xlu0 0
        %2978 = vperm.xlu0 %2977, %v1122
        %v2979 = vpop.permute.xlu0 %2978
        %2981 = vset.pattern.permute.xlu0 0
        %2982 = vperm.xlu0 %2981, %v1123
        %v2983 = vpop.permute.xlu0 %2982
        %2985 = vset.pattern.permute.xlu0 0
        %2986 = vperm.xlu0 %2985, %v1124
        %v2987 = vpop.permute.xlu0 %2986
        %2989 = vset.pattern.permute.xlu0 0
        %2990 = vperm.xlu0 %2989, %v1125
        %v2991 = vpop.permute.xlu0 %2990
        %2993 = vset.pattern.permute.xlu0 0
        %2994 = vperm.xlu0 %2993, %v1126
        %v2995 = vpop.permute.xlu0 %2994
        %2997 = vset.pattern.permute.xlu0 0
        %2998 = vperm.xlu0 %2997, %v1127
        %v2999 = vpop.permute.xlu0 %2998
        %v3000 = vrot.slane %v2939, 1
        %v3001 = vrot.slane %v2939, 2
        %v3002 = vrot.slane %v2939, 3
        %v3003 = vrot.slane %v2939, 4
        %v3004 = vrot.slane %v2939, 5
        %v3005 = vrot.slane %v2939, 6
        %v3006 = vrot.slane %v2939, 7
        %v3007 = vrot.slane %v2943, 1
        %v3008 = vrot.slane %v2943, 2
        %v3009 = vrot.slane %v2943, 3
        %v3010 = vrot.slane %v2943, 4
        %v3011 = vrot.slane %v2943, 5
        %v3012 = vrot.slane %v2943, 6
        %v3013 = vrot.slane %v2943, 7
        %v3014 = vrot.slane %v2947, 1
        %v3015 = vrot.slane %v2947, 2
        %v3016 = vrot.slane %v2947, 3
        %v3017 = vrot.slane %v2947, 4
        %v3018 = vrot.slane %v2947, 5
        %v3019 = vrot.slane %v2947, 6
        %v3020 = vrot.slane %v2947, 7
        %v3021 = vrot.slane %v2951, 1
        %v3022 = vrot.slane %v2951, 2
        %v3023 = vrot.slane %v2951, 3
        %v3024 = vrot.slane %v2951, 4
        %v3025 = vrot.slane %v2951, 5
        %v3026 = vrot.slane %v2951, 6
        %v3027 = vrot.slane %v2951, 7
        %v3028 = vrot.slane %v2955, 1
        %v3029 = vrot.slane %v2955, 2
        %v3030 = vrot.slane %v2955, 3
        %v3031 = vrot.slane %v2955, 4
        %v3032 = vrot.slane %v2955, 5
        %v3033 = vrot.slane %v2955, 6
        %v3034 = vrot.slane %v2955, 7
        %v3035 = vrot.slane %v2959, 1
        %v3036 = vrot.slane %v2959, 2
        %v3037 = vrot.slane %v2959, 3
        %v3038 = vrot.slane %v2959, 4
        %v3039 = vrot.slane %v2959, 5
        %v3040 = vrot.slane %v2959, 6
        %v3041 = vrot.slane %v2959, 7
        %v3042 = vrot.slane %v2963, 1
        %v3043 = vrot.slane %v2963, 2
        %v3044 = vrot.slane %v2963, 3
        %v3045 = vrot.slane %v2963, 4
        %v3046 = vrot.slane %v2963, 5
        %v3047 = vrot.slane %v2963, 6
        %v3048 = vrot.slane %v2963, 7
        %v3049 = vrot.slane %v2967, 1
        %v3050 = vrot.slane %v2967, 2
        %v3051 = vrot.slane %v2967, 3
        %v3052 = vrot.slane %v2967, 4
        %v3053 = vrot.slane %v2967, 5
        %v3054 = vrot.slane %v2967, 6
        %v3055 = vrot.slane %v2967, 7
        %v3056 = vrot.slane %v2971, 1
        %v3057 = vrot.slane %v2971, 2
        %v3058 = vrot.slane %v2971, 3
        %v3059 = vrot.slane %v2971, 4
        %v3060 = vrot.slane %v2971, 5
        %v3061 = vrot.slane %v2971, 6
        %v3062 = vrot.slane %v2971, 7
        %v3063 = vrot.slane %v2975, 1
        %v3064 = vrot.slane %v2975, 2
        %v3065 = vrot.slane %v2975, 3
        %v3066 = vrot.slane %v2975, 4
        %v3067 = vrot.slane %v2975, 5
        %v3068 = vrot.slane %v2975, 6
        %v3069 = vrot.slane %v2975, 7
        %v3070 = vrot.slane %v2979, 1
        %v3071 = vrot.slane %v2979, 2
        %v3072 = vrot.slane %v2979, 3
        %v3073 = vrot.slane %v2979, 4
        %v3074 = vrot.slane %v2979, 5
        %v3075 = vrot.slane %v2979, 6
        %v3076 = vrot.slane %v2979, 7
        %v3077 = vrot.slane %v2983, 1
        %v3078 = vrot.slane %v2983, 2
        %v3079 = vrot.slane %v2983, 3
        %v3080 = vrot.slane %v2983, 4
        %v3081 = vrot.slane %v2983, 5
        %v3082 = vrot.slane %v2983, 6
        %v3083 = vrot.slane %v2983, 7
        %v3084 = vrot.slane %v2987, 1
        %v3085 = vrot.slane %v2987, 2
        %v3086 = vrot.slane %v2987, 3
        %v3087 = vrot.slane %v2987, 4
        %v3088 = vrot.slane %v2987, 5
        %v3089 = vrot.slane %v2987, 6
        %v3090 = vrot.slane %v2987, 7
        %v3091 = vrot.slane %v2991, 1
        %v3092 = vrot.slane %v2991, 2
        %v3093 = vrot.slane %v2991, 3
        %v3094 = vrot.slane %v2991, 4
        %v3095 = vrot.slane %v2991, 5
        %v3096 = vrot.slane %v2991, 6
        %v3097 = vrot.slane %v2991, 7
        %v3098 = vrot.slane %v2995, 1
        %v3099 = vrot.slane %v2995, 2
        %v3100 = vrot.slane %v2995, 3
        %v3101 = vrot.slane %v2995, 4
        %v3102 = vrot.slane %v2995, 5
        %v3103 = vrot.slane %v2995, 6
        %v3104 = vrot.slane %v2995, 7
        %v3105 = vrot.slane %v2999, 1
        %v3106 = vrot.slane %v2999, 2
        %v3107 = vrot.slane %v2999, 3
        %v3108 = vrot.slane %v2999, 4
        %v3109 = vrot.slane %v2999, 5
        %v3110 = vrot.slane %v2999, 6
        %v3111 = vrot.slane %v2999, 7
        %v3240 = vmul.f32 %v2173, %v2939
        %v3241 = vmul.f32 %v2179, %v3000
        %v3242 = vmul.f32 %v2185, %v3001
        %v3243 = vmul.f32 %v2191, %v3002
        %v3244 = vmul.f32 %v2197, %v3003
        %v3245 = vmul.f32 %v2203, %v3004
        %v3246 = vmul.f32 %v2209, %v3005
        %v3247 = vmul.f32 %v2215, %v3006
        %v3248 = vmul.f32 %v2221, %v2943
        %v3249 = vmul.f32 %v2227, %v3007
        %v3250 = vmul.f32 %v2233, %v3008
        %v3251 = vmul.f32 %v2239, %v3009
        %v3252 = vmul.f32 %v2245, %v3010
        %v3253 = vmul.f32 %v2251, %v3011
        %v3254 = vmul.f32 %v2257, %v3012
        %v3255 = vmul.f32 %v2263, %v3013
        %v3256 = vmul.f32 %v2269, %v2947
        %v3257 = vmul.f32 %v2275, %v3014
        %v3258 = vmul.f32 %v2281, %v3015
        %v3259 = vmul.f32 %v2287, %v3016
        %v3260 = vmul.f32 %v2293, %v3017
        %v3261 = vmul.f32 %v2299, %v3018
        %v3262 = vmul.f32 %v2305, %v3019
        %v3263 = vmul.f32 %v2311, %v3020
        %v3264 = vmul.f32 %v2317, %v2951
        %v3265 = vmul.f32 %v2323, %v3021
        %v3266 = vmul.f32 %v2329, %v3022
        %v3267 = vmul.f32 %v2335, %v3023
        %v3268 = vmul.f32 %v2341, %v3024
        %v3269 = vmul.f32 %v2347, %v3025
        %v3270 = vmul.f32 %v2353, %v3026
        %v3271 = vmul.f32 %v2359, %v3027
        %v3272 = vmul.f32 %v2365, %v2955
        %v3273 = vmul.f32 %v2371, %v3028
        %v3274 = vmul.f32 %v2377, %v3029
        %v3275 = vmul.f32 %v2383, %v3030
        %v3276 = vmul.f32 %v2389, %v3031
        %v3277 = vmul.f32 %v2395, %v3032
        %v3278 = vmul.f32 %v2401, %v3033
        %v3279 = vmul.f32 %v2407, %v3034
        %v3280 = vmul.f32 %v2413, %v2959
        %v3281 = vmul.f32 %v2419, %v3035
        %v3282 = vmul.f32 %v2425, %v3036
        %v3283 = vmul.f32 %v2431, %v3037
        %v3284 = vmul.f32 %v2437, %v3038
        %v3285 = vmul.f32 %v2443, %v3039
        %v3286 = vmul.f32 %v2449, %v3040
        %v3287 = vmul.f32 %v2455, %v3041
        %v3288 = vmul.f32 %v2461, %v2963
        %v3289 = vmul.f32 %v2467, %v3042
        %v3290 = vmul.f32 %v2473, %v3043
        %v3291 = vmul.f32 %v2479, %v3044
        %v3292 = vmul.f32 %v2485, %v3045
        %v3293 = vmul.f32 %v2491, %v3046
        %v3294 = vmul.f32 %v2497, %v3047
        %v3295 = vmul.f32 %v2503, %v3048
        %v3296 = vmul.f32 %v2509, %v2967
        %v3297 = vmul.f32 %v2515, %v3049
        %v3298 = vmul.f32 %v2521, %v3050
        %v3299 = vmul.f32 %v2527, %v3051
        %v3300 = vmul.f32 %v2533, %v3052
        %v3301 = vmul.f32 %v2539, %v3053
        %v3302 = vmul.f32 %v2545, %v3054
        %v3303 = vmul.f32 %v2551, %v3055
        %v3304 = vmul.f32 %v2557, %v2971
        %v3305 = vmul.f32 %v2563, %v3056
        %v3306 = vmul.f32 %v2569, %v3057
        %v3307 = vmul.f32 %v2575, %v3058
        %v3308 = vmul.f32 %v2581, %v3059
        %v3309 = vmul.f32 %v2587, %v3060
        %v3310 = vmul.f32 %v2593, %v3061
        %v3311 = vmul.f32 %v2599, %v3062
        %v3312 = vmul.f32 %v2605, %v2975
        %v3313 = vmul.f32 %v2611, %v3063
        %v3314 = vmul.f32 %v2617, %v3064
        %v3315 = vmul.f32 %v2623, %v3065
        %v3316 = vmul.f32 %v2629, %v3066
        %v3317 = vmul.f32 %v2635, %v3067
        %v3318 = vmul.f32 %v2641, %v3068
        %v3319 = vmul.f32 %v2647, %v3069
        %v3320 = vmul.f32 %v2653, %v2979
        %v3321 = vmul.f32 %v2659, %v3070
        %v3322 = vmul.f32 %v2665, %v3071
        %v3323 = vmul.f32 %v2671, %v3072
        %v3324 = vmul.f32 %v2677, %v3073
        %v3325 = vmul.f32 %v2683, %v3074
        %v3326 = vmul.f32 %v2689, %v3075
        %v3327 = vmul.f32 %v2695, %v3076
        %v3328 = vmul.f32 %v2701, %v2983
        %v3329 = vmul.f32 %v2707, %v3077
        %v3330 = vmul.f32 %v2713, %v3078
        %v3331 = vmul.f32 %v2719, %v3079
        %v3332 = vmul.f32 %v2725, %v3080
        %v3333 = vmul.f32 %v2731, %v3081
        %v3334 = vmul.f32 %v2737, %v3082
        %v3335 = vmul.f32 %v2743, %v3083
        %v3336 = vmul.f32 %v2749, %v2987
        %v3337 = vmul.f32 %v2755, %v3084
        %v3338 = vmul.f32 %v2761, %v3085
        %v3339 = vmul.f32 %v2767, %v3086
        %v3340 = vmul.f32 %v2773, %v3087
        %v3341 = vmul.f32 %v2779, %v3088
        %v3342 = vmul.f32 %v2785, %v3089
        %v3343 = vmul.f32 %v2791, %v3090
        %v3344 = vmul.f32 %v2797, %v2991
        %v3345 = vmul.f32 %v2803, %v3091
        %v3346 = vmul.f32 %v2809, %v3092
        %v3347 = vmul.f32 %v2815, %v3093
        %v3348 = vmul.f32 %v2821, %v3094
        %v3349 = vmul.f32 %v2827, %v3095
        %v3350 = vmul.f32 %v2833, %v3096
        %v3351 = vmul.f32 %v2839, %v3097
        %v3352 = vmul.f32 %v2845, %v2995
        %v3353 = vmul.f32 %v2851, %v3098
        %v3354 = vmul.f32 %v2857, %v3099
        %v3355 = vmul.f32 %v2863, %v3100
        %v3356 = vmul.f32 %v2869, %v3101
        %v3357 = vmul.f32 %v2875, %v3102
        %v3358 = vmul.f32 %v2881, %v3103
        %v3359 = vmul.f32 %v2887, %v3104
        %v3360 = vmul.f32 %v2893, %v2999
        %v3361 = vmul.f32 %v2899, %v3105
        %v3362 = vmul.f32 %v2905, %v3106
        %v3363 = vmul.f32 %v2911, %v3107
        %v3364 = vmul.f32 %v2917, %v3108
        %v3365 = vmul.f32 %v2923, %v3109
        %v3366 = vmul.f32 %v2929, %v3110
        %v3367 = vmul.f32 %v2935, %v3111
        %v3496 = vrot.slane %v3241, 7
        %vm3497 = vcmask 1041409
        %v3498 = vsel %vm3497, %v3496, %v3240
        %v3499 = vrot.slane %v3242, 6
        %vm3500 = vcmask 1042434
        %v3501 = vsel %vm3500, %v3499, %v3498
        %v3502 = vrot.slane %v3243, 5
        %vm3503 = vcmask 1043459
        %v3504 = vsel %vm3503, %v3502, %v3501
        %v3505 = vrot.slane %v3244, 4
        %vm3506 = vcmask 1044484
        %v3507 = vsel %vm3506, %v3505, %v3504
        %v3508 = vrot.slane %v3245, 3
        %vm3509 = vcmask 1045509
        %v3510 = vsel %vm3509, %v3508, %v3507
        %v3511 = vrot.slane %v3246, 2
        %vm3512 = vcmask 1046534
        %v3513 = vsel %vm3512, %v3511, %v3510
        %v3514 = vrot.slane %v3247, 1
        %vm3515 = vcmask 1047559
        %v3516 = vsel %vm3515, %v3514, %v3513
        %v3517 = vrot.slane %v3249, 7
        %v3518 = vsel %vm3497, %v3517, %v3248
        %v3519 = vrot.slane %v3250, 6
        %v3520 = vsel %vm3500, %v3519, %v3518
        %v3521 = vrot.slane %v3251, 5
        %v3522 = vsel %vm3503, %v3521, %v3520
        %v3523 = vrot.slane %v3252, 4
        %v3524 = vsel %vm3506, %v3523, %v3522
        %v3525 = vrot.slane %v3253, 3
        %v3526 = vsel %vm3509, %v3525, %v3524
        %v3527 = vrot.slane %v3254, 2
        %v3528 = vsel %vm3512, %v3527, %v3526
        %v3529 = vrot.slane %v3255, 1
        %v3530 = vsel %vm3515, %v3529, %v3528
        %v3531 = vrot.slane %v3257, 7
        %v3532 = vsel %vm3497, %v3531, %v3256
        %v3533 = vrot.slane %v3258, 6
        %v3534 = vsel %vm3500, %v3533, %v3532
        %v3535 = vrot.slane %v3259, 5
        %v3536 = vsel %vm3503, %v3535, %v3534
        %v3537 = vrot.slane %v3260, 4
        %v3538 = vsel %vm3506, %v3537, %v3536
        %v3539 = vrot.slane %v3261, 3
        %v3540 = vsel %vm3509, %v3539, %v3538
        %v3541 = vrot.slane %v3262, 2
        %v3542 = vsel %vm3512, %v3541, %v3540
        %v3543 = vrot.slane %v3263, 1
        %v3544 = vsel %vm3515, %v3543, %v3542
        %v3545 = vrot.slane %v3265, 7
        %v3546 = vsel %vm3497, %v3545, %v3264
        %v3547 = vrot.slane %v3266, 6
        %v3548 = vsel %vm3500, %v3547, %v3546
        %v3549 = vrot.slane %v3267, 5
        %v3550 = vsel %vm3503, %v3549, %v3548
        %v3551 = vrot.slane %v3268, 4
        %v3552 = vsel %vm3506, %v3551, %v3550
        %v3553 = vrot.slane %v3269, 3
        %v3554 = vsel %vm3509, %v3553, %v3552
        %v3555 = vrot.slane %v3270, 2
        %v3556 = vsel %vm3512, %v3555, %v3554
        %v3557 = vrot.slane %v3271, 1
        %v3558 = vsel %vm3515, %v3557, %v3556
        %v3559 = vrot.slane %v3273, 7
        %v3560 = vsel %vm3497, %v3559, %v3272
        %v3561 = vrot.slane %v3274, 6
        %v3562 = vsel %vm3500, %v3561, %v3560
        %v3563 = vrot.slane %v3275, 5
        %v3564 = vsel %vm3503, %v3563, %v3562
        %v3565 = vrot.slane %v3276, 4
        %v3566 = vsel %vm3506, %v3565, %v3564
        %v3567 = vrot.slane %v3277, 3
        %v3568 = vsel %vm3509, %v3567, %v3566
        %v3569 = vrot.slane %v3278, 2
        %v3570 = vsel %vm3512, %v3569, %v3568
        %v3571 = vrot.slane %v3279, 1
        %v3572 = vsel %vm3515, %v3571, %v3570
        %v3573 = vrot.slane %v3281, 7
        %v3574 = vsel %vm3497, %v3573, %v3280
        %v3575 = vrot.slane %v3282, 6
        %v3576 = vsel %vm3500, %v3575, %v3574
        %v3577 = vrot.slane %v3283, 5
        %v3578 = vsel %vm3503, %v3577, %v3576
        %v3579 = vrot.slane %v3284, 4
        %v3580 = vsel %vm3506, %v3579, %v3578
        %v3581 = vrot.slane %v3285, 3
        %v3582 = vsel %vm3509, %v3581, %v3580
        %v3583 = vrot.slane %v3286, 2
        %v3584 = vsel %vm3512, %v3583, %v3582
        %v3585 = vrot.slane %v3287, 1
        %v3586 = vsel %vm3515, %v3585, %v3584
        %v3587 = vrot.slane %v3289, 7
        %v3588 = vsel %vm3497, %v3587, %v3288
        %v3589 = vrot.slane %v3290, 6
        %v3590 = vsel %vm3500, %v3589, %v3588
        %v3591 = vrot.slane %v3291, 5
        %v3592 = vsel %vm3503, %v3591, %v3590
        %v3593 = vrot.slane %v3292, 4
        %v3594 = vsel %vm3506, %v3593, %v3592
        %v3595 = vrot.slane %v3293, 3
        %v3596 = vsel %vm3509, %v3595, %v3594
        %v3597 = vrot.slane %v3294, 2
        %v3598 = vsel %vm3512, %v3597, %v3596
        %v3599 = vrot.slane %v3295, 1
        %v3600 = vsel %vm3515, %v3599, %v3598
        %v3601 = vrot.slane %v3297, 7
        %v3602 = vsel %vm3497, %v3601, %v3296
        %v3603 = vrot.slane %v3298, 6
        %v3604 = vsel %vm3500, %v3603, %v3602
        %v3605 = vrot.slane %v3299, 5
        %v3606 = vsel %vm3503, %v3605, %v3604
        %v3607 = vrot.slane %v3300, 4
        %v3608 = vsel %vm3506, %v3607, %v3606
        %v3609 = vrot.slane %v3301, 3
        %v3610 = vsel %vm3509, %v3609, %v3608
        %v3611 = vrot.slane %v3302, 2
        %v3612 = vsel %vm3512, %v3611, %v3610
        %v3613 = vrot.slane %v3303, 1
        %v3614 = vsel %vm3515, %v3613, %v3612
        %v3615 = vrot.slane %v3305, 7
        %v3616 = vsel %vm3497, %v3615, %v3304
        %v3617 = vrot.slane %v3306, 6
        %v3618 = vsel %vm3500, %v3617, %v3616
        %v3619 = vrot.slane %v3307, 5
        %v3620 = vsel %vm3503, %v3619, %v3618
        %v3621 = vrot.slane %v3308, 4
        %v3622 = vsel %vm3506, %v3621, %v3620
        %v3623 = vrot.slane %v3309, 3
        %v3624 = vsel %vm3509, %v3623, %v3622
        %v3625 = vrot.slane %v3310, 2
        %v3626 = vsel %vm3512, %v3625, %v3624
        %v3627 = vrot.slane %v3311, 1
        %v3628 = vsel %vm3515, %v3627, %v3626
        %v3629 = vrot.slane %v3313, 7
        %v3630 = vsel %vm3497, %v3629, %v3312
        %v3631 = vrot.slane %v3314, 6
        %v3632 = vsel %vm3500, %v3631, %v3630
        %v3633 = vrot.slane %v3315, 5
        %v3634 = vsel %vm3503, %v3633, %v3632
        %v3635 = vrot.slane %v3316, 4
        %v3636 = vsel %vm3506, %v3635, %v3634
        %v3637 = vrot.slane %v3317, 3
        %v3638 = vsel %vm3509, %v3637, %v3636
        %v3639 = vrot.slane %v3318, 2
        %v3640 = vsel %vm3512, %v3639, %v3638
        %v3641 = vrot.slane %v3319, 1
        %v3642 = vsel %vm3515, %v3641, %v3640
        %v3643 = vrot.slane %v3321, 7
        %v3644 = vsel %vm3497, %v3643, %v3320
        %v3645 = vrot.slane %v3322, 6
        %v3646 = vsel %vm3500, %v3645, %v3644
        %v3647 = vrot.slane %v3323, 5
        %v3648 = vsel %vm3503, %v3647, %v3646
        %v3649 = vrot.slane %v3324, 4
        %v3650 = vsel %vm3506, %v3649, %v3648
        %v3651 = vrot.slane %v3325, 3
        %v3652 = vsel %vm3509, %v3651, %v3650
        %v3653 = vrot.slane %v3326, 2
        %v3654 = vsel %vm3512, %v3653, %v3652
        %v3655 = vrot.slane %v3327, 1
        %v3656 = vsel %vm3515, %v3655, %v3654
        %v3657 = vrot.slane %v3329, 7
        %v3658 = vsel %vm3497, %v3657, %v3328
        %v3659 = vrot.slane %v3330, 6
        %v3660 = vsel %vm3500, %v3659, %v3658
        %v3661 = vrot.slane %v3331, 5
        %v3662 = vsel %vm3503, %v3661, %v3660
        %v3663 = vrot.slane %v3332, 4
        %v3664 = vsel %vm3506, %v3663, %v3662
        %v3665 = vrot.slane %v3333, 3
        %v3666 = vsel %vm3509, %v3665, %v3664
        %v3667 = vrot.slane %v3334, 2
        %v3668 = vsel %vm3512, %v3667, %v3666
        %v3669 = vrot.slane %v3335, 1
        %v3670 = vsel %vm3515, %v3669, %v3668
        %v3671 = vrot.slane %v3337, 7
        %v3672 = vsel %vm3497, %v3671, %v3336
        %v3673 = vrot.slane %v3338, 6
        %v3674 = vsel %vm3500, %v3673, %v3672
        %v3675 = vrot.slane %v3339, 5
        %v3676 = vsel %vm3503, %v3675, %v3674
        %v3677 = vrot.slane %v3340, 4
        %v3678 = vsel %vm3506, %v3677, %v3676
        %v3679 = vrot.slane %v3341, 3
        %v3680 = vsel %vm3509, %v3679, %v3678
        %v3681 = vrot.slane %v3342, 2
        %v3682 = vsel %vm3512, %v3681, %v3680
        %v3683 = vrot.slane %v3343, 1
        %v3684 = vsel %vm3515, %v3683, %v3682
        %v3685 = vrot.slane %v3345, 7
        %v3686 = vsel %vm3497, %v3685, %v3344
        %v3687 = vrot.slane %v3346, 6
        %v3688 = vsel %vm3500, %v3687, %v3686
        %v3689 = vrot.slane %v3347, 5
        %v3690 = vsel %vm3503, %v3689, %v3688
        %v3691 = vrot.slane %v3348, 4
        %v3692 = vsel %vm3506, %v3691, %v3690
        %v3693 = vrot.slane %v3349, 3
        %v3694 = vsel %vm3509, %v3693, %v3692
        %v3695 = vrot.slane %v3350, 2
        %v3696 = vsel %vm3512, %v3695, %v3694
        %v3697 = vrot.slane %v3351, 1
        %v3698 = vsel %vm3515, %v3697, %v3696
        %v3699 = vrot.slane %v3353, 7
        %v3700 = vsel %vm3497, %v3699, %v3352
        %v3701 = vrot.slane %v3354, 6
        %v3702 = vsel %vm3500, %v3701, %v3700
        %v3703 = vrot.slane %v3355, 5
        %v3704 = vsel %vm3503, %v3703, %v3702
        %v3705 = vrot.slane %v3356, 4
        %v3706 = vsel %vm3506, %v3705, %v3704
        %v3707 = vrot.slane %v3357, 3
        %v3708 = vsel %vm3509, %v3707, %v3706
        %v3709 = vrot.slane %v3358, 2
        %v3710 = vsel %vm3512, %v3709, %v3708
        %v3711 = vrot.slane %v3359, 1
        %v3712 = vsel %vm3515, %v3711, %v3710
        %v3713 = vrot.slane %v3361, 7
        %v3714 = vsel %vm3497, %v3713, %v3360
        %v3715 = vrot.slane %v3362, 6
        %v3716 = vsel %vm3500, %v3715, %v3714
        %v3717 = vrot.slane %v3363, 5
        %v3718 = vsel %vm3503, %v3717, %v3716
        %v3719 = vrot.slane %v3364, 4
        %v3720 = vsel %vm3506, %v3719, %v3718
        %v3721 = vrot.slane %v3365, 3
        %v3722 = vsel %vm3509, %v3721, %v3720
        %v3723 = vrot.slane %v3366, 2
        %v3724 = vsel %vm3512, %v3723, %v3722
        %v3725 = vrot.slane %v3367, 1
        %v3726 = vsel %vm3515, %v3725, %v3724
        %3743 = vst [vmem:[%s288] sm:$0xff] %v3516
        %3744 = vst [vmem:[%s288 + $0x8] sm:$0xff] %v3530
        %3745 = vst [vmem:[%s288 + $0x10] sm:$0xff] %v3544
        %3746 = vst [vmem:[%s288 + $0x18] sm:$0xff] %v3558
        %3747 = vst [vmem:[%s288 + $0x20] sm:$0xff] %v3572
        %3748 = vst [vmem:[%s288 + $0x28] sm:$0xff] %v3586
        %3749 = vst [vmem:[%s288 + $0x30] sm:$0xff] %v3600
        %3750 = vst [vmem:[%s288 + $0x38] sm:$0xff] %v3614
        %3751 = vst [vmem:[%s288 + $0x40] sm:$0xff] %v3628
        %3752 = vst [vmem:[%s288 + $0x48] sm:$0xff] %v3642
        %3753 = vst [vmem:[%s288 + $0x50] sm:$0xff] %v3656
        %3754 = vst [vmem:[%s288 + $0x58] sm:$0xff] %v3670
        %3755 = vst [vmem:[%s288 + $0x60] sm:$0xff] %v3684
        %3756 = vst [vmem:[%s288 + $0x68] sm:$0xff] %v3698
        %3757 = vst [vmem:[%s288 + $0x70] sm:$0xff] %v3712
        %3758 = vst [vmem:[%s288 + $0x78] sm:$0xff] %v3726
        %s3759 = sand.u32 %s138, 1
        %s3760 = scalar_lea.sflag [#allocation7], %s3759
        %s3761 = sand.u32 %s138, 1
        %s3762 = smul.addr %s3761, 128
        %s3763 = scalar_lea.vmem [#allocation10], %s3762
        // Predicated region
        $region53: #{tpu_custom_call.1} parent=35 // pred_check
          %p3764 = pneg %p148
        $region54: #{tpu_custom_call.1} parent=35 // pred_check_branch
          %3766 = sbr.rel (%p3764) target = $region56
        $region55: #{tpu_custom_call.1} parent=35 // pred_region
          %s3767 = smul.u32 16, %s26
          %s3769 = ssub.s32 2048, 2048
          %3770 = vsyncadd %s3760, %s3769
          %s3771 = smul.addr %s3767, 128
          %s3772 = scalar_lea.hbm %s5, %s3771
          %s3773 = sshll.u32 %s3763, 4
          %s3774 = int_to_ptr.vmem [resolvable:$true] %s3773
          %3779 = dma.vmem_to_hbm [thread:$0]  %s3774, 2048, %s3772, %s3760, 128, 128, 8
        $region56: #{tpu_custom_call.1} parent=35 // pred_fallthru
          _
      $region36: #{tpu_custom_call.1} parent=5 // pred_fallthru
        _
      %p3780 = scmp.le.s32.totalorder 2, %s21
      // Predicated region
      $region57: #{tpu_custom_call.1} parent=5 // pred_check
        %p3781 = pneg %p3780
      $region58: #{tpu_custom_call.1} parent=5 // pred_check_branch
        %3783 = sbr.rel (%p3781) target = $region60
      $region59: #{tpu_custom_call.1} parent=5 // pred_region
        %s3784 = ssub.s32 %s21, 2
        // Predicated region
        $region61: #{tpu_custom_call.1} parent=59 // pred_check
          %p3785 = pneg %p154
        $region62: #{tpu_custom_call.1} parent=59 // pred_check_branch
          %3787 = sbr.rel (%p3785) target = $region64
        $region63: #{tpu_custom_call.1} parent=59 // pred_region
          %s3788 = sand.u32 %s139, 1
          %s3789 = scalar_lea.sflag [#allocation7], %s3788
          %s3790 = sand.u32 %s139, 1
          %s3791 = smul.addr %s3790, 128
          %s3792 = scalar_lea.vmem [#allocation10], %s3791
          %3793 = dma.done %s3789, 2048
        $region64: #{tpu_custom_call.1} parent=59 // pred_fallthru
          _
      $region60: #{tpu_custom_call.1} parent=5 // pred_fallthru
        _
    $region6: #{tpu_custom_call.1} parent=1 // loop_footer
      %s25 = sadd.s32 1, %s21
    $region7: #{tpu_custom_call.1} parent=1 // loop_footer_branch
      %20 = sbr.rel target = $region3
    $region8: #{tpu_custom_call.1} parent=1 // loop_exit
      _
    %3794 = vsyncpa [#allocation6], 1
    %s3795 = scalar_lea.sflag [#allocation6], 1
    %3796 = vsyncpa %s3795, 1
    %3797 = vsyncpa [#allocation9], 1
    %s3798 = scalar_lea.sflag [#allocation9], 1
    %3799 = vsyncpa %s3798, 1
    %3800 = vsyncpa [#allocation7], 1
    %s3801 = scalar_lea.sflag [#allocation7], 1
    %3802 = vsyncpa %s3801, 1

</llo_original>
